<compile_context>
chip_gen: v7x
topology: tpu7x:2x2x1
jax: 0.10.0
libtpu: 0.0.40
codegen_flags: <defaults>
</compile_context>

<pallas_src>
import jax
import jax.numpy as jnp
import numpy as np
from jax.experimental import pallas as pl
from jax.experimental.pallas import tpu as pltpu


# ----------------------------- shared math helpers -----------------------------
def _clean(x):
    # torch.nan_to_num(x, nan=0.0, posinf=1.0, neginf=-1.0)
    x = jnp.where(jnp.isnan(x), jnp.float32(0.0), x)
    x = jnp.where(x == jnp.inf, jnp.float32(1.0), x)
    x = jnp.where(x == -jnp.inf, jnp.float32(-1.0), x)
    return x


def _mish(x):
    # x * tanh(softplus(x)), numerically stable softplus.
    sp = jnp.maximum(x, 0.0) + jnp.log1p(jnp.exp(-jnp.abs(x)))
    return x * jnp.tanh(sp)


# --------------------------------- the kernel ----------------------------------
def _make_tcn_kernel(level_cfgs, shift_index):
    """level_cfgs: list of dicts {dilation, K, has_down} (static).
    shift_index: dict shift_amount -> row in the stacked shift-matrix input."""

    def kernel(x_ref, shifts_ref, *refs):
        out_ref = refs[-1]
        p = refs[:-1]

        # Clean + load the per-batch [S, C_in] slab once.
        h = _clean(x_ref[0])

        i = 0
        for cfg in level_cfgs:
            d, K = cfg["dilation"], cfg["K"]
            w1_ref, b1_ref, s1_ref, t1_ref = p[i], p[i + 1], p[i + 2], p[i + 3]
            w2_ref, b2_ref, s2_ref, t2_ref = p[i + 4], p[i + 5], p[i + 6], p[i + 7]
            i += 8

            def conv(z, w_ref, b_ref, _d=d, _K=K):
                # Causal dilated conv: tap K-1 is the un-shifted one.
                acc = jnp.dot(z, w_ref[_K - 1],
                              preferred_element_type=jnp.float32)
                for k in range(_K - 1):
                    shift = (_K - 1 - k) * _d
                    sh = shifts_ref[shift_index[shift]]          # [S, S]
                    zs = jnp.dot(sh, z, preferred_element_type=jnp.float32)
                    acc = acc + jnp.dot(zs, w_ref[k],
                                        preferred_element_type=jnp.float32)
                return acc + b_ref[...]

            out = conv(h, w1_ref, b1_ref)
            out = _mish(out * s1_ref[...] + t1_ref[...])   # BN1 (eval) + Mish
            out = conv(out, w2_ref, b2_ref)
            out = _mish(out * s2_ref[...] + t2_ref[...])   # BN2 (eval) + Mish

            if cfg["has_down"]:
                wd_ref, bd_ref = p[i], p[i + 1]
                i += 2
                res = jnp.dot(h, wd_ref[...],
                              preferred_element_type=jnp.float32) + bd_ref[...]
            else:
                res = h
            h = out + res

        out_ref[0] = h

    return kernel


# --------------------------------- the wrapper ----------------------------------
def temporal_conv_net(x, level_params):
    """x: [B, S, C_in] float32.  level_params: list of per-level dicts with
    PyTorch-layout tensors (conv*_w [Cout,Cin,K], conv*_b [Cout], bn*_{gamma,
    beta,mean,var} [Cout], optional down_w [Cout,Cin,1], down_b [Cout])."""
    B, S, C_in = x.shape
    eps = 1e-5

    flat, specs, level_cfgs = [], [], []

    def resident(arr):
        zeros = (0,) * arr.ndim
        specs.append(pl.BlockSpec(arr.shape, lambda b, _z=zeros: _z))
        flat.append(arr)

    # Unique causal shift amounts across all levels -> one resident stack of
    # [S, S] shift matrices (x[t] -> x[t - shift], zero-padded on the left).
    shifts_needed = set()
    for i, lp in enumerate(level_params):
        d = 2 ** i
        K = lp["conv1_w"].shape[-1]
        for k in range(K - 1):
            shifts_needed.add((K - 1 - k) * d)
    shift_list = sorted(shifts_needed)
    shift_index = {s: j for j, s in enumerate(shift_list)}
    shift_mats = jnp.stack(
        [jnp.eye(S, k=-s, dtype=jnp.float32) for s in shift_list])

    # Weight re-layout + eval-mode BN folding (free wrapper-side plumbing).
    for i, lp in enumerate(level_params):
        d = 2 ** i
        K = lp["conv1_w"].shape[-1]
        has_down = "down_w" in lp
        level_cfgs.append({"dilation": d, "K": K, "has_down": has_down})

        s1 = lp["bn1_gamma"] / jnp.sqrt(lp["bn1_var"] + eps)
        t1 = lp["bn1_beta"] - lp["bn1_mean"] * s1
        s2 = lp["bn2_gamma"] / jnp.sqrt(lp["bn2_var"] + eps)
        t2 = lp["bn2_beta"] - lp["bn2_mean"] * s2

        resident(jnp.transpose(lp["conv1_w"], (2, 1, 0)))   # [K, Cin, Cout]
        resident(lp["conv1_b"].reshape(1, -1))
        resident(s1.reshape(1, -1))
        resident(t1.reshape(1, -1))
        resident(jnp.transpose(lp["conv2_w"], (2, 1, 0)))   # [K, Cout, Cout]
        resident(lp["conv2_b"].reshape(1, -1))
        resident(s2.reshape(1, -1))
        resident(t2.reshape(1, -1))
        if has_down:
            resident(jnp.transpose(lp["down_w"][:, :, 0]))  # [Cin, Cout]
            resident(lp["down_b"].reshape(1, -1))

    C_out = level_params[-1]["conv1_w"].shape[0]
    kernel = _make_tcn_kernel(level_cfgs, shift_index)

    x_spec = pl.BlockSpec((1, S, C_in), lambda b: (b, 0, 0))
    shift_spec = pl.BlockSpec(shift_mats.shape, lambda b: (0, 0, 0))
    out_spec = pl.BlockSpec((1, S, C_out), lambda b: (b, 0, 0))

    return pl.pallas_call(
        kernel,
        out_shape=jax.ShapeDtypeStruct((B, S, C_out), jnp.float32),
        grid_spec=pltpu.PrefetchScalarGridSpec(
            num_scalar_prefetch=0,
            grid=(B,),
            in_specs=[x_spec, shift_spec] + specs,
            out_specs=out_spec,
        ),
        compiler_params=pltpu.CompilerParams(
            dimension_semantics=("parallel",)),
    )(x, shift_mats, *flat)


# ---------------- pure-JAX reference (for the correctness check) ----------------
def reference_forward(x, level_params):
    eps = 1e-5
    S = x.shape[1]
    h = _clean(x)                                            # [B, S, C]
    for i, lp in enumerate(level_params):
        d = 2 ** i
        K = lp["conv1_w"].shape[-1]

        def conv(z, w, b):
            pad = (K - 1) * d
            zp = jnp.pad(z, ((0, 0), (pad, 0), (0, 0)))
            out = jnp.zeros(z.shape[:2] + (w.shape[0],), jnp.float32)
            for k in range(K):
                out = out + jnp.einsum("bsc,oc->bso",
                                       zp[:, k * d:k * d + S, :], w[:, :, k])
            return out + b

        def bn(z, g, bt, m, v):
            return (z - m) / jnp.sqrt(v + eps) * g + bt

        out = _mish(bn(conv(h, lp["conv1_w"], lp["conv1_b"]),
                       lp["bn1_gamma"], lp["bn1_beta"],
                       lp["bn1_mean"], lp["bn1_var"]))
        out = _mish(bn(conv(out, lp["conv2_w"], lp["conv2_b"]),
                       lp["bn2_gamma"], lp["bn2_beta"],
                       lp["bn2_mean"], lp["bn2_var"]))
        if "down_w" in lp:
            res = jnp.einsum("bsc,oc->bso", h, lp["down_w"][:, :, 0]) + lp["down_b"]
        else:
            res = h
        h = out + res
    return h


# ------------------------------------ main ---------------------------------------
def _make_level_params(key, cin, cout, K):
    ks = jax.random.split(key, 12)
    p = {
        "conv1_w": 0.3 * jax.random.normal(ks[0], (cout, cin, K), dtype=jnp.float32),
        "conv1_b": 0.1 * jax.random.normal(ks[1], (cout,), dtype=jnp.float32),
        "bn1_gamma": 1.0 + 0.1 * jax.random.normal(ks[2], (cout,), dtype=jnp.float32),
        "bn1_beta": 0.1 * jax.random.normal(ks[3], (cout,), dtype=jnp.float32),
        "bn1_mean": 0.1 * jax.random.normal(ks[4], (cout,), dtype=jnp.float32),
        "bn1_var": jax.random.uniform(ks[5], (cout,), minval=0.5, maxval=1.5,
                                      dtype=jnp.float32),
        "conv2_w": 0.3 * jax.random.normal(ks[6], (cout, cout, K), dtype=jnp.float32),
        "conv2_b": 0.1 * jax.random.normal(ks[7], (cout,), dtype=jnp.float32),
        "bn2_gamma": 1.0 + 0.1 * jax.random.normal(ks[8], (cout,), dtype=jnp.float32),
        "bn2_beta": 0.1 * jax.random.normal(ks[9], (cout,), dtype=jnp.float32),
        "bn2_mean": 0.1 * jax.random.normal(ks[10], (cout,), dtype=jnp.float32),
        "bn2_var": jax.random.uniform(ks[11], (cout,), minval=0.5, maxval=1.5,
                                      dtype=jnp.float32),
    }
    if cin != cout:
        kd1, kd2 = jax.random.split(jax.random.fold_in(key, 99))
        p["down_w"] = 0.3 * jax.random.normal(kd1, (cout, cin, 1), dtype=jnp.float32)
        p["down_b"] = 0.1 * jax.random.normal(kd2, (cout,), dtype=jnp.float32)
    return p


if __name__ == "__main__":
    B, S, C_in = 2, 16, 8
    NUM_CHANNELS = [16, 16, 32]     # dilations 1, 2, 4; exercises both residual paths
    K = 3

    key = jax.random.PRNGKey(0)
    key, kx = jax.random.split(key)
    x = jax.random.normal(kx, (B, S, C_in), dtype=jnp.float32)
    # Exercise the nan_to_num path.
    x = x.at[0, 0, 0].set(jnp.nan)
    x = x.at[1, 3, 2].set(jnp.inf)
    x = x.at[0, 7, 5].set(-jnp.inf)

    level_params = []
    cin = C_in
    for cout in NUM_CHANNELS:
        key, kl = jax.random.split(key)
        level_params.append(_make_level_params(kl, cin, cout, K))
        cin = cout

    run = jax.jit(temporal_conv_net)
    out = jax.block_until_ready(run(x, level_params))

    ref = reference_forward(x, level_params)
    np.testing.assert_allclose(np.asarray(out), np.asarray(ref),
                               rtol=1e-3, atol=1e-3)

    print("KERNEL_OK")
</pallas_src>

<mosaic_0001>
module attributes {stable_mosaic.version = 11 : i64} {
  func.func @kernel(%arg0: i32, %arg1: memref<1x16x8xf32, #tpu.memory_space<vmem>>, %arg2: memref<4x16x16xf32, #tpu.memory_space<vmem>>, %arg3: memref<3x8x16xf32, #tpu.memory_space<vmem>>, %arg4: memref<1x16xf32, #tpu.memory_space<vmem>>, %arg5: memref<1x16xf32, #tpu.memory_space<vmem>>, %arg6: memref<1x16xf32, #tpu.memory_space<vmem>>, %arg7: memref<3x16x16xf32, #tpu.memory_space<vmem>>, %arg8: memref<1x16xf32, #tpu.memory_space<vmem>>, %arg9: memref<1x16xf32, #tpu.memory_space<vmem>>, %arg10: memref<1x16xf32, #tpu.memory_space<vmem>>, %arg11: memref<8x16xf32, #tpu.memory_space<vmem>>, %arg12: memref<1x16xf32, #tpu.memory_space<vmem>>, %arg13: memref<3x16x16xf32, #tpu.memory_space<vmem>>, %arg14: memref<1x16xf32, #tpu.memory_space<vmem>>, %arg15: memref<1x16xf32, #tpu.memory_space<vmem>>, %arg16: memref<1x16xf32, #tpu.memory_space<vmem>>, %arg17: memref<3x16x16xf32, #tpu.memory_space<vmem>>, %arg18: memref<1x16xf32, #tpu.memory_space<vmem>>, %arg19: memref<1x16xf32, #tpu.memory_space<vmem>>, %arg20: memref<1x16xf32, #tpu.memory_space<vmem>>, %arg21: memref<3x16x32xf32, #tpu.memory_space<vmem>>, %arg22: memref<1x32xf32, #tpu.memory_space<vmem>>, %arg23: memref<1x32xf32, #tpu.memory_space<vmem>>, %arg24: memref<1x32xf32, #tpu.memory_space<vmem>>, %arg25: memref<3x32x32xf32, #tpu.memory_space<vmem>>, %arg26: memref<1x32xf32, #tpu.memory_space<vmem>>, %arg27: memref<1x32xf32, #tpu.memory_space<vmem>>, %arg28: memref<1x32xf32, #tpu.memory_space<vmem>>, %arg29: memref<16x32xf32, #tpu.memory_space<vmem>>, %arg30: memref<1x32xf32, #tpu.memory_space<vmem>>, %arg31: memref<1x16x32xf32, #tpu.memory_space<vmem>>) attributes {dimension_semantics = [#tpu.dimension_semantics<parallel>], iteration_bounds = array<i64: 2>, scalar_prefetch = 0 : i64, scratch_operands = 0 : i64, tpu.core_type = #tpu.core_type<tc>, window_params = [{transform_indices = @transform_0, window_bounds = array<i64: 1, 16, 8>}, {pipeline_mode = #tpu.pipeline_mode<synchronous>, transform_indices = @transform_1, window_bounds = array<i64: 4, 16, 16>}, {pipeline_mode = #tpu.pipeline_mode<synchronous>, transform_indices = @transform_2, window_bounds = array<i64: 3, 8, 16>}, {pipeline_mode = #tpu.pipeline_mode<synchronous>, transform_indices = @transform_3, window_bounds = array<i64: 1, 16>}, {pipeline_mode = #tpu.pipeline_mode<synchronous>, transform_indices = @transform_4, window_bounds = array<i64: 1, 16>}, {pipeline_mode = #tpu.pipeline_mode<synchronous>, transform_indices = @transform_5, window_bounds = array<i64: 1, 16>}, {pipeline_mode = #tpu.pipeline_mode<synchronous>, transform_indices = @transform_6, window_bounds = array<i64: 3, 16, 16>}, {pipeline_mode = #tpu.pipeline_mode<synchronous>, transform_indices = @transform_7, window_bounds = array<i64: 1, 16>}, {pipeline_mode = #tpu.pipeline_mode<synchronous>, transform_indices = @transform_8, window_bounds = array<i64: 1, 16>}, {pipeline_mode = #tpu.pipeline_mode<synchronous>, transform_indices = @transform_9, window_bounds = array<i64: 1, 16>}, {pipeline_mode = #tpu.pipeline_mode<synchronous>, transform_indices = @transform_10, window_bounds = array<i64: 8, 16>}, {pipeline_mode = #tpu.pipeline_mode<synchronous>, transform_indices = @transform_11, window_bounds = array<i64: 1, 16>}, {pipeline_mode = #tpu.pipeline_mode<synchronous>, transform_indices = @transform_12, window_bounds = array<i64: 3, 16, 16>}, {pipeline_mode = #tpu.pipeline_mode<synchronous>, transform_indices = @transform_13, window_bounds = array<i64: 1, 16>}, {pipeline_mode = #tpu.pipeline_mode<synchronous>, transform_indices = @transform_14, window_bounds = array<i64: 1, 16>}, {pipeline_mode = #tpu.pipeline_mode<synchronous>, transform_indices = @transform_15, window_bounds = array<i64: 1, 16>}, {pipeline_mode = #tpu.pipeline_mode<synchronous>, transform_indices = @transform_16, window_bounds = array<i64: 3, 16, 16>}, {pipeline_mode = #tpu.pipeline_mode<synchronous>, transform_indices = @transform_17, window_bounds = array<i64: 1, 16>}, {pipeline_mode = #tpu.pipeline_mode<synchronous>, transform_indices = @transform_18, window_bounds = array<i64: 1, 16>}, {pipeline_mode = #tpu.pipeline_mode<synchronous>, transform_indices = @transform_19, window_bounds = array<i64: 1, 16>}, {pipeline_mode = #tpu.pipeline_mode<synchronous>, transform_indices = @transform_20, window_bounds = array<i64: 3, 16, 32>}, {pipeline_mode = #tpu.pipeline_mode<synchronous>, transform_indices = @transform_21, window_bounds = array<i64: 1, 32>}, {pipeline_mode = #tpu.pipeline_mode<synchronous>, transform_indices = @transform_22, window_bounds = array<i64: 1, 32>}, {pipeline_mode = #tpu.pipeline_mode<synchronous>, transform_indices = @transform_23, window_bounds = array<i64: 1, 32>}, {pipeline_mode = #tpu.pipeline_mode<synchronous>, transform_indices = @transform_24, window_bounds = array<i64: 3, 32, 32>}, {pipeline_mode = #tpu.pipeline_mode<synchronous>, transform_indices = @transform_25, window_bounds = array<i64: 1, 32>}, {pipeline_mode = #tpu.pipeline_mode<synchronous>, transform_indices = @transform_26, window_bounds = array<i64: 1, 32>}, {pipeline_mode = #tpu.pipeline_mode<synchronous>, transform_indices = @transform_27, window_bounds = array<i64: 1, 32>}, {pipeline_mode = #tpu.pipeline_mode<synchronous>, transform_indices = @transform_28, window_bounds = array<i64: 16, 32>}, {pipeline_mode = #tpu.pipeline_mode<synchronous>, transform_indices = @transform_29, window_bounds = array<i64: 1, 32>}, {transform_indices = @transform_30, window_bounds = array<i64: 1, 16, 32>}]} {
    %c0 = arith.constant 0 : index
    %c0_0 = arith.constant 0 : index
    %c0_1 = arith.constant 0 : index
    %0 = vector.load %arg1[%c0, %c0_0, %c0_1] : memref<1x16x8xf32, #tpu.memory_space<vmem>>, vector<1x16x8xf32>
    %1 = vector.shape_cast %0 : vector<1x16x8xf32> to vector<16x8xf32>
    %2 = arith.cmpf one, %1, %1 : vector<16x8xf32>
    %cst = arith.constant 0.000000e+00 : f32
    %3 = vector.broadcast %cst : f32 to vector<16x8xf32>
    %4 = arith.select %2, %3, %1 : vector<16x8xi1>, vector<16x8xf32>
    %cst_2 = arith.constant 0x7F800000 : f32
    %5 = vector.broadcast %cst_2 : f32 to vector<16x8xf32>
    %6 = arith.cmpf oeq, %4, %5 : vector<16x8xf32>
    %cst_3 = arith.constant 1.000000e+00 : f32
    %7 = vector.broadcast %cst_3 : f32 to vector<16x8xf32>
    %8 = arith.select %6, %7, %4 : vector<16x8xi1>, vector<16x8xf32>
    %cst_4 = arith.constant 0xFF800000 : f32
    %9 = vector.broadcast %cst_4 : f32 to vector<16x8xf32>
    %10 = arith.cmpf oeq, %8, %9 : vector<16x8xf32>
    %cst_5 = arith.constant -1.000000e+00 : f32
    %11 = vector.broadcast %cst_5 : f32 to vector<16x8xf32>
    %12 = arith.select %10, %11, %8 : vector<16x8xi1>, vector<16x8xf32>
    %c2 = arith.constant 2 : index
    %c0_6 = arith.constant 0 : index
    %c0_7 = arith.constant 0 : index
    %13 = vector.load %arg3[%c2, %c0_6, %c0_7] : memref<3x8x16xf32, #tpu.memory_space<vmem>>, vector<1x8x16xf32>
    %14 = vector.shape_cast %13 : vector<1x8x16xf32> to vector<8x16xf32>
    %cst_8 = arith.constant dense<0.000000e+00> : vector<16x16xf32>
    %15 = tpu.matmul %12, %14, %cst_8 {dimension_numbers = #tpu.dot_dimension_numbers<[1], [0], [0], [1], [0, 0, 1, 1], [], []>} : vector<16x8xf32>, vector<8x16xf32>, vector<16x16xf32> -> vector<16x16xf32>
    %c1 = arith.constant 1 : index
    %c0_9 = arith.constant 0 : index
    %c0_10 = arith.constant 0 : index
    %16 = vector.load %arg2[%c1, %c0_9, %c0_10] : memref<4x16x16xf32, #tpu.memory_space<vmem>>, vector<1x16x16xf32>
    %17 = vector.shape_cast %16 : vector<1x16x16xf32> to vector<16x16xf32>
    %cst_11 = arith.constant dense<0.000000e+00> : vector<16x8xf32>
    %18 = tpu.matmul %17, %12, %cst_11 {dimension_numbers = #tpu.dot_dimension_numbers<[1], [0], [0], [1], [0, 0, 1, 1], [], []>} : vector<16x16xf32>, vector<16x8xf32>, vector<16x8xf32> -> vector<16x8xf32>
    %c0_12 = arith.constant 0 : index
    %c0_13 = arith.constant 0 : index
    %c0_14 = arith.constant 0 : index
    %19 = vector.load %arg3[%c0_12, %c0_13, %c0_14] : memref<3x8x16xf32, #tpu.memory_space<vmem>>, vector<1x8x16xf32>
    %20 = vector.shape_cast %19 : vector<1x8x16xf32> to vector<8x16xf32>
    %cst_15 = arith.constant dense<0.000000e+00> : vector<16x16xf32>
    %21 = tpu.matmul %18, %20, %cst_15 {dimension_numbers = #tpu.dot_dimension_numbers<[1], [0], [0], [1], [0, 0, 1, 1], [], []>} : vector<16x8xf32>, vector<8x16xf32>, vector<16x16xf32> -> vector<16x16xf32>
    %22 = arith.addf %15, %21 : vector<16x16xf32>
    %c0_16 = arith.constant 0 : index
    %c0_17 = arith.constant 0 : index
    %c0_18 = arith.constant 0 : index
    %23 = vector.load %arg2[%c0_16, %c0_17, %c0_18] : memref<4x16x16xf32, #tpu.memory_space<vmem>>, vector<1x16x16xf32>
    %24 = vector.shape_cast %23 : vector<1x16x16xf32> to vector<16x16xf32>
    %cst_19 = arith.constant dense<0.000000e+00> : vector<16x8xf32>
    %25 = tpu.matmul %24, %12, %cst_19 {dimension_numbers = #tpu.dot_dimension_numbers<[1], [0], [0], [1], [0, 0, 1, 1], [], []>} : vector<16x16xf32>, vector<16x8xf32>, vector<16x8xf32> -> vector<16x8xf32>
    %c1_20 = arith.constant 1 : index
    %c0_21 = arith.constant 0 : index
    %c0_22 = arith.constant 0 : index
    %26 = vector.load %arg3[%c1_20, %c0_21, %c0_22] : memref<3x8x16xf32, #tpu.memory_space<vmem>>, vector<1x8x16xf32>
    %27 = vector.shape_cast %26 : vector<1x8x16xf32> to vector<8x16xf32>
    %cst_23 = arith.constant dense<0.000000e+00> : vector<16x16xf32>
    %28 = tpu.matmul %25, %27, %cst_23 {dimension_numbers = #tpu.dot_dimension_numbers<[1], [0], [0], [1], [0, 0, 1, 1], [], []>} : vector<16x8xf32>, vector<8x16xf32>, vector<16x16xf32> -> vector<16x16xf32>
    %29 = arith.addf %22, %28 : vector<16x16xf32>
    %c0_24 = arith.constant 0 : index
    %c0_25 = arith.constant 0 : index
    %30 = vector.load %arg4[%c0_24, %c0_25] : memref<1x16xf32, #tpu.memory_space<vmem>>, vector<1x16xf32>
    %31 = vector.broadcast %30 : vector<1x16xf32> to vector<16x16xf32>
    %32 = arith.addf %29, %31 : vector<16x16xf32>
    %c0_26 = arith.constant 0 : index
    %c0_27 = arith.constant 0 : index
    %33 = vector.load %arg5[%c0_26, %c0_27] : memref<1x16xf32, #tpu.memory_space<vmem>>, vector<1x16xf32>
    %34 = vector.broadcast %33 : vector<1x16xf32> to vector<16x16xf32>
    %35 = arith.mulf %32, %34 : vector<16x16xf32>
    %c0_28 = arith.constant 0 : index
    %c0_29 = arith.constant 0 : index
    %36 = vector.load %arg6[%c0_28, %c0_29] : memref<1x16xf32, #tpu.memory_space<vmem>>, vector<1x16xf32>
    %37 = vector.broadcast %36 : vector<1x16xf32> to vector<16x16xf32>
    %38 = arith.addf %35, %37 : vector<16x16xf32>
    %cst_30 = arith.constant 0.000000e+00 : f32
    %39 = vector.broadcast %cst_30 : f32 to vector<16x16xf32>
    %40 = arith.maximumf %38, %39 : vector<16x16xf32>
    %41 = math.absf %38 : vector<16x16xf32>
    %cst_31 = arith.constant 0.000000e+00 : f32
    %42 = vector.broadcast %cst_31 : f32 to vector<16x16xf32>
    %43 = arith.subf %42, %41 : vector<16x16xf32>
    %44 = math.exp %43 : vector<16x16xf32>
    %45 = math.log1p %44 : vector<16x16xf32>
    %46 = arith.addf %40, %45 : vector<16x16xf32>
    %47 = math.tanh %46 : vector<16x16xf32>
    %48 = arith.mulf %38, %47 : vector<16x16xf32>
    %c2_32 = arith.constant 2 : index
    %c0_33 = arith.constant 0 : index
    %c0_34 = arith.constant 0 : index
    %49 = vector.load %arg7[%c2_32, %c0_33, %c0_34] : memref<3x16x16xf32, #tpu.memory_space<vmem>>, vector<1x16x16xf32>
    %50 = vector.shape_cast %49 : vector<1x16x16xf32> to vector<16x16xf32>
    %cst_35 = arith.constant dense<0.000000e+00> : vector<16x16xf32>
    %51 = tpu.matmul %48, %50, %cst_35 {dimension_numbers = #tpu.dot_dimension_numbers<[1], [0], [0], [1], [0, 0, 1, 1], [], []>} : vector<16x16xf32>, vector<16x16xf32>, vector<16x16xf32> -> vector<16x16xf32>
    %c1_36 = arith.constant 1 : index
    %c0_37 = arith.constant 0 : index
    %c0_38 = arith.constant 0 : index
    %52 = vector.load %arg2[%c1_36, %c0_37, %c0_38] : memref<4x16x16xf32, #tpu.memory_space<vmem>>, vector<1x16x16xf32>
    %53 = vector.shape_cast %52 : vector<1x16x16xf32> to vector<16x16xf32>
    %cst_39 = arith.constant dense<0.000000e+00> : vector<16x16xf32>
    %54 = tpu.matmul %53, %48, %cst_39 {dimension_numbers = #tpu.dot_dimension_numbers<[1], [0], [0], [1], [0, 0, 1, 1], [], []>} : vector<16x16xf32>, vector<16x16xf32>, vector<16x16xf32> -> vector<16x16xf32>
    %c0_40 = arith.constant 0 : index
    %c0_41 = arith.constant 0 : index
    %c0_42 = arith.constant 0 : index
    %55 = vector.load %arg7[%c0_40, %c0_41, %c0_42] : memref<3x16x16xf32, #tpu.memory_space<vmem>>, vector<1x16x16xf32>
    %56 = vector.shape_cast %55 : vector<1x16x16xf32> to vector<16x16xf32>
    %cst_43 = arith.constant dense<0.000000e+00> : vector<16x16xf32>
    %57 = tpu.matmul %54, %56, %cst_43 {dimension_numbers = #tpu.dot_dimension_numbers<[1], [0], [0], [1], [0, 0, 1, 1], [], []>} : vector<16x16xf32>, vector<16x16xf32>, vector<16x16xf32> -> vector<16x16xf32>
    %58 = arith.addf %51, %57 : vector<16x16xf32>
    %c0_44 = arith.constant 0 : index
    %c0_45 = arith.constant 0 : index
    %c0_46 = arith.constant 0 : index
    %59 = vector.load %arg2[%c0_44, %c0_45, %c0_46] : memref<4x16x16xf32, #tpu.memory_space<vmem>>, vector<1x16x16xf32>
    %60 = vector.shape_cast %59 : vector<1x16x16xf32> to vector<16x16xf32>
    %cst_47 = arith.constant dense<0.000000e+00> : vector<16x16xf32>
    %61 = tpu.matmul %60, %48, %cst_47 {dimension_numbers = #tpu.dot_dimension_numbers<[1], [0], [0], [1], [0, 0, 1, 1], [], []>} : vector<16x16xf32>, vector<16x16xf32>, vector<16x16xf32> -> vector<16x16xf32>
    %c1_48 = arith.constant 1 : index
    %c0_49 = arith.constant 0 : index
    %c0_50 = arith.constant 0 : index
    %62 = vector.load %arg7[%c1_48, %c0_49, %c0_50] : memref<3x16x16xf32, #tpu.memory_space<vmem>>, vector<1x16x16xf32>
    %63 = vector.shape_cast %62 : vector<1x16x16xf32> to vector<16x16xf32>
    %cst_51 = arith.constant dense<0.000000e+00> : vector<16x16xf32>
    %64 = tpu.matmul %61, %63, %cst_51 {dimension_numbers = #tpu.dot_dimension_numbers<[1], [0], [0], [1], [0, 0, 1, 1], [], []>} : vector<16x16xf32>, vector<16x16xf32>, vector<16x16xf32> -> vector<16x16xf32>
    %65 = arith.addf %58, %64 : vector<16x16xf32>
    %c0_52 = arith.constant 0 : index
    %c0_53 = arith.constant 0 : index
    %66 = vector.load %arg8[%c0_52, %c0_53] : memref<1x16xf32, #tpu.memory_space<vmem>>, vector<1x16xf32>
    %67 = vector.broadcast %66 : vector<1x16xf32> to vector<16x16xf32>
    %68 = arith.addf %65, %67 : vector<16x16xf32>
    %c0_54 = arith.constant 0 : index
    %c0_55 = arith.constant 0 : index
    %69 = vector.load %arg9[%c0_54, %c0_55] : memref<1x16xf32, #tpu.memory_space<vmem>>, vector<1x16xf32>
    %70 = vector.broadcast %69 : vector<1x16xf32> to vector<16x16xf32>
    %71 = arith.mulf %68, %70 : vector<16x16xf32>
    %c0_56 = arith.constant 0 : index
    %c0_57 = arith.constant 0 : index
    %72 = vector.load %arg10[%c0_56, %c0_57] : memref<1x16xf32, #tpu.memory_space<vmem>>, vector<1x16xf32>
    %73 = vector.broadcast %72 : vector<1x16xf32> to vector<16x16xf32>
    %74 = arith.addf %71, %73 : vector<16x16xf32>
    %cst_58 = arith.constant 0.000000e+00 : f32
    %75 = vector.broadcast %cst_58 : f32 to vector<16x16xf32>
    %76 = arith.maximumf %74, %75 : vector<16x16xf32>
    %77 = math.absf %74 : vector<16x16xf32>
    %cst_59 = arith.constant 0.000000e+00 : f32
    %78 = vector.broadcast %cst_59 : f32 to vector<16x16xf32>
    %79 = arith.subf %78, %77 : vector<16x16xf32>
    %80 = math.exp %79 : vector<16x16xf32>
    %81 = math.log1p %80 : vector<16x16xf32>
    %82 = arith.addf %76, %81 : vector<16x16xf32>
    %83 = math.tanh %82 : vector<16x16xf32>
    %84 = arith.mulf %74, %83 : vector<16x16xf32>
    %c0_60 = arith.constant 0 : index
    %c0_61 = arith.constant 0 : index
    %85 = vector.load %arg11[%c0_60, %c0_61] : memref<8x16xf32, #tpu.memory_space<vmem>>, vector<8x16xf32>
    %cst_62 = arith.constant dense<0.000000e+00> : vector<16x16xf32>
    %86 = tpu.matmul %12, %85, %cst_62 {dimension_numbers = #tpu.dot_dimension_numbers<[1], [0], [0], [1], [0, 0, 1, 1], [], []>} : vector<16x8xf32>, vector<8x16xf32>, vector<16x16xf32> -> vector<16x16xf32>
    %c0_63 = arith.constant 0 : index
    %c0_64 = arith.constant 0 : index
    %87 = vector.load %arg12[%c0_63, %c0_64] : memref<1x16xf32, #tpu.memory_space<vmem>>, vector<1x16xf32>
    %88 = vector.broadcast %87 : vector<1x16xf32> to vector<16x16xf32>
    %89 = arith.addf %86, %88 : vector<16x16xf32>
    %90 = arith.addf %84, %89 : vector<16x16xf32>
    %c2_65 = arith.constant 2 : index
    %c0_66 = arith.constant 0 : index
    %c0_67 = arith.constant 0 : index
    %91 = vector.load %arg13[%c2_65, %c0_66, %c0_67] : memref<3x16x16xf32, #tpu.memory_space<vmem>>, vector<1x16x16xf32>
    %92 = vector.shape_cast %91 : vector<1x16x16xf32> to vector<16x16xf32>
    %cst_68 = arith.constant dense<0.000000e+00> : vector<16x16xf32>
    %93 = tpu.matmul %90, %92, %cst_68 {dimension_numbers = #tpu.dot_dimension_numbers<[1], [0], [0], [1], [0, 0, 1, 1], [], []>} : vector<16x16xf32>, vector<16x16xf32>, vector<16x16xf32> -> vector<16x16xf32>
    %c2_69 = arith.constant 2 : index
    %c0_70 = arith.constant 0 : index
    %c0_71 = arith.constant 0 : index
    %94 = vector.load %arg2[%c2_69, %c0_70, %c0_71] : memref<4x16x16xf32, #tpu.memory_space<vmem>>, vector<1x16x16xf32>
    %95 = vector.shape_cast %94 : vector<1x16x16xf32> to vector<16x16xf32>
    %cst_72 = arith.constant dense<0.000000e+00> : vector<16x16xf32>
    %96 = tpu.matmul %95, %90, %cst_72 {dimension_numbers = #tpu.dot_dimension_numbers<[1], [0], [0], [1], [0, 0, 1, 1], [], []>} : vector<16x16xf32>, vector<16x16xf32>, vector<16x16xf32> -> vector<16x16xf32>
    %c0_73 = arith.constant 0 : index
    %c0_74 = arith.constant 0 : index
    %c0_75 = arith.constant 0 : index
    %97 = vector.load %arg13[%c0_73, %c0_74, %c0_75] : memref<3x16x16xf32, #tpu.memory_space<vmem>>, vector<1x16x16xf32>
    %98 = vector.shape_cast %97 : vector<1x16x16xf32> to vector<16x16xf32>
    %cst_76 = arith.constant dense<0.000000e+00> : vector<16x16xf32>
    %99 = tpu.matmul %96, %98, %cst_76 {dimension_numbers = #tpu.dot_dimension_numbers<[1], [0], [0], [1], [0, 0, 1, 1], [], []>} : vector<16x16xf32>, vector<16x16xf32>, vector<16x16xf32> -> vector<16x16xf32>
    %100 = arith.addf %93, %99 : vector<16x16xf32>
    %c1_77 = arith.constant 1 : index
    %c0_78 = arith.constant 0 : index
    %c0_79 = arith.constant 0 : index
    %101 = vector.load %arg2[%c1_77, %c0_78, %c0_79] : memref<4x16x16xf32, #tpu.memory_space<vmem>>, vector<1x16x16xf32>
    %102 = vector.shape_cast %101 : vector<1x16x16xf32> to vector<16x16xf32>
    %cst_80 = arith.constant dense<0.000000e+00> : vector<16x16xf32>
    %103 = tpu.matmul %102, %90, %cst_80 {dimension_numbers = #tpu.dot_dimension_numbers<[1], [0], [0], [1], [0, 0, 1, 1], [], []>} : vector<16x16xf32>, vector<16x16xf32>, vector<16x16xf32> -> vector<16x16xf32>
    %c1_81 = arith.constant 1 : index
    %c0_82 = arith.constant 0 : index
    %c0_83 = arith.constant 0 : index
    %104 = vector.load %arg13[%c1_81, %c0_82, %c0_83] : memref<3x16x16xf32, #tpu.memory_space<vmem>>, vector<1x16x16xf32>
    %105 = vector.shape_cast %104 : vector<1x16x16xf32> to vector<16x16xf32>
    %cst_84 = arith.constant dense<0.000000e+00> : vector<16x16xf32>
    %106 = tpu.matmul %103, %105, %cst_84 {dimension_numbers = #tpu.dot_dimension_numbers<[1], [0], [0], [1], [0, 0, 1, 1], [], []>} : vector<16x16xf32>, vector<16x16xf32>, vector<16x16xf32> -> vector<16x16xf32>
    %107 = arith.addf %100, %106 : vector<16x16xf32>
    %c0_85 = arith.constant 0 : index
    %c0_86 = arith.constant 0 : index
    %108 = vector.load %arg14[%c0_85, %c0_86] : memref<1x16xf32, #tpu.memory_space<vmem>>, vector<1x16xf32>
    %109 = vector.broadcast %108 : vector<1x16xf32> to vector<16x16xf32>
    %110 = arith.addf %107, %109 : vector<16x16xf32>
    %c0_87 = arith.constant 0 : index
    %c0_88 = arith.constant 0 : index
    %111 = vector.load %arg15[%c0_87, %c0_88] : memref<1x16xf32, #tpu.memory_space<vmem>>, vector<1x16xf32>
    %112 = vector.broadcast %111 : vector<1x16xf32> to vector<16x16xf32>
    %113 = arith.mulf %110, %112 : vector<16x16xf32>
    %c0_89 = arith.constant 0 : index
    %c0_90 = arith.constant 0 : index
    %114 = vector.load %arg16[%c0_89, %c0_90] : memref<1x16xf32, #tpu.memory_space<vmem>>, vector<1x16xf32>
    %115 = vector.broadcast %114 : vector<1x16xf32> to vector<16x16xf32>
    %116 = arith.addf %113, %115 : vector<16x16xf32>
    %cst_91 = arith.constant 0.000000e+00 : f32
    %117 = vector.broadcast %cst_91 : f32 to vector<16x16xf32>
    %118 = arith.maximumf %116, %117 : vector<16x16xf32>
    %119 = math.absf %116 : vector<16x16xf32>
    %cst_92 = arith.constant 0.000000e+00 : f32
    %120 = vector.broadcast %cst_92 : f32 to vector<16x16xf32>
    %121 = arith.subf %120, %119 : vector<16x16xf32>
    %122 = math.exp %121 : vector<16x16xf32>
    %123 = math.log1p %122 : vector<16x16xf32>
    %124 = arith.addf %118, %123 : vector<16x16xf32>
    %125 = math.tanh %124 : vector<16x16xf32>
    %126 = arith.mulf %116, %125 : vector<16x16xf32>
    %c2_93 = arith.constant 2 : index
    %c0_94 = arith.constant 0 : index
    %c0_95 = arith.constant 0 : index
    %127 = vector.load %arg17[%c2_93, %c0_94, %c0_95] : memref<3x16x16xf32, #tpu.memory_space<vmem>>, vector<1x16x16xf32>
    %128 = vector.shape_cast %127 : vector<1x16x16xf32> to vector<16x16xf32>
    %cst_96 = arith.constant dense<0.000000e+00> : vector<16x16xf32>
    %129 = tpu.matmul %126, %128, %cst_96 {dimension_numbers = #tpu.dot_dimension_numbers<[1], [0], [0], [1], [0, 0, 1, 1], [], []>} : vector<16x16xf32>, vector<16x16xf32>, vector<16x16xf32> -> vector<16x16xf32>
    %c2_97 = arith.constant 2 : index
    %c0_98 = arith.constant 0 : index
    %c0_99 = arith.constant 0 : index
    %130 = vector.load %arg2[%c2_97, %c0_98, %c0_99] : memref<4x16x16xf32, #tpu.memory_space<vmem>>, vector<1x16x16xf32>
    %131 = vector.shape_cast %130 : vector<1x16x16xf32> to vector<16x16xf32>
    %cst_100 = arith.constant dense<0.000000e+00> : vector<16x16xf32>
    %132 = tpu.matmul %131, %126, %cst_100 {dimension_numbers = #tpu.dot_dimension_numbers<[1], [0], [0], [1], [0, 0, 1, 1], [], []>} : vector<16x16xf32>, vector<16x16xf32>, vector<16x16xf32> -> vector<16x16xf32>
    %c0_101 = arith.constant 0 : index
    %c0_102 = arith.constant 0 : index
    %c0_103 = arith.constant 0 : index
    %133 = vector.load %arg17[%c0_101, %c0_102, %c0_103] : memref<3x16x16xf32, #tpu.memory_space<vmem>>, vector<1x16x16xf32>
    %134 = vector.shape_cast %133 : vector<1x16x16xf32> to vector<16x16xf32>
    %cst_104 = arith.constant dense<0.000000e+00> : vector<16x16xf32>
    %135 = tpu.matmul %132, %134, %cst_104 {dimension_numbers = #tpu.dot_dimension_numbers<[1], [0], [0], [1], [0, 0, 1, 1], [], []>} : vector<16x16xf32>, vector<16x16xf32>, vector<16x16xf32> -> vector<16x16xf32>
    %136 = arith.addf %129, %135 : vector<16x16xf32>
    %c1_105 = arith.constant 1 : index
    %c0_106 = arith.constant 0 : index
    %c0_107 = arith.constant 0 : index
    %137 = vector.load %arg2[%c1_105, %c0_106, %c0_107] : memref<4x16x16xf32, #tpu.memory_space<vmem>>, vector<1x16x16xf32>
    %138 = vector.shape_cast %137 : vector<1x16x16xf32> to vector<16x16xf32>
    %cst_108 = arith.constant dense<0.000000e+00> : vector<16x16xf32>
    %139 = tpu.matmul %138, %126, %cst_108 {dimension_numbers = #tpu.dot_dimension_numbers<[1], [0], [0], [1], [0, 0, 1, 1], [], []>} : vector<16x16xf32>, vector<16x16xf32>, vector<16x16xf32> -> vector<16x16xf32>
    %c1_109 = arith.constant 1 : index
    %c0_110 = arith.constant 0 : index
    %c0_111 = arith.constant 0 : index
    %140 = vector.load %arg17[%c1_109, %c0_110, %c0_111] : memref<3x16x16xf32, #tpu.memory_space<vmem>>, vector<1x16x16xf32>
    %141 = vector.shape_cast %140 : vector<1x16x16xf32> to vector<16x16xf32>
    %cst_112 = arith.constant dense<0.000000e+00> : vector<16x16xf32>
    %142 = tpu.matmul %139, %141, %cst_112 {dimension_numbers = #tpu.dot_dimension_numbers<[1], [0], [0], [1], [0, 0, 1, 1], [], []>} : vector<16x16xf32>, vector<16x16xf32>, vector<16x16xf32> -> vector<16x16xf32>
    %143 = arith.addf %136, %142 : vector<16x16xf32>
    %c0_113 = arith.constant 0 : index
    %c0_114 = arith.constant 0 : index
    %144 = vector.load %arg18[%c0_113, %c0_114] : memref<1x16xf32, #tpu.memory_space<vmem>>, vector<1x16xf32>
    %145 = vector.broadcast %144 : vector<1x16xf32> to vector<16x16xf32>
    %146 = arith.addf %143, %145 : vector<16x16xf32>
    %c0_115 = arith.constant 0 : index
    %c0_116 = arith.constant 0 : index
    %147 = vector.load %arg19[%c0_115, %c0_116] : memref<1x16xf32, #tpu.memory_space<vmem>>, vector<1x16xf32>
    %148 = vector.broadcast %147 : vector<1x16xf32> to vector<16x16xf32>
    %149 = arith.mulf %146, %148 : vector<16x16xf32>
    %c0_117 = arith.constant 0 : index
    %c0_118 = arith.constant 0 : index
    %150 = vector.load %arg20[%c0_117, %c0_118] : memref<1x16xf32, #tpu.memory_space<vmem>>, vector<1x16xf32>
    %151 = vector.broadcast %150 : vector<1x16xf32> to vector<16x16xf32>
    %152 = arith.addf %149, %151 : vector<16x16xf32>
    %cst_119 = arith.constant 0.000000e+00 : f32
    %153 = vector.broadcast %cst_119 : f32 to vector<16x16xf32>
    %154 = arith.maximumf %152, %153 : vector<16x16xf32>
    %155 = math.absf %152 : vector<16x16xf32>
    %cst_120 = arith.constant 0.000000e+00 : f32
    %156 = vector.broadcast %cst_120 : f32 to vector<16x16xf32>
    %157 = arith.subf %156, %155 : vector<16x16xf32>
    %158 = math.exp %157 : vector<16x16xf32>
    %159 = math.log1p %158 : vector<16x16xf32>
    %160 = arith.addf %154, %159 : vector<16x16xf32>
    %161 = math.tanh %160 : vector<16x16xf32>
    %162 = arith.mulf %152, %161 : vector<16x16xf32>
    %163 = arith.addf %162, %90 : vector<16x16xf32>
    %c2_121 = arith.constant 2 : index
    %c0_122 = arith.constant 0 : index
    %c0_123 = arith.constant 0 : index
    %164 = vector.load %arg21[%c2_121, %c0_122, %c0_123] : memref<3x16x32xf32, #tpu.memory_space<vmem>>, vector<1x16x32xf32>
    %165 = vector.shape_cast %164 : vector<1x16x32xf32> to vector<16x32xf32>
    %cst_124 = arith.constant dense<0.000000e+00> : vector<16x32xf32>
    %166 = tpu.matmul %163, %165, %cst_124 {dimension_numbers = #tpu.dot_dimension_numbers<[1], [0], [0], [1], [0, 0, 1, 1], [], []>} : vector<16x16xf32>, vector<16x32xf32>, vector<16x32xf32> -> vector<16x32xf32>
    %c3 = arith.constant 3 : index
    %c0_125 = arith.constant 0 : index
    %c0_126 = arith.constant 0 : index
    %167 = vector.load %arg2[%c3, %c0_125, %c0_126] : memref<4x16x16xf32, #tpu.memory_space<vmem>>, vector<1x16x16xf32>
    %168 = vector.shape_cast %167 : vector<1x16x16xf32> to vector<16x16xf32>
    %cst_127 = arith.constant dense<0.000000e+00> : vector<16x16xf32>
    %169 = tpu.matmul %168, %163, %cst_127 {dimension_numbers = #tpu.dot_dimension_numbers<[1], [0], [0], [1], [0, 0, 1, 1], [], []>} : vector<16x16xf32>, vector<16x16xf32>, vector<16x16xf32> -> vector<16x16xf32>
    %c0_128 = arith.constant 0 : index
    %c0_129 = arith.constant 0 : index
    %c0_130 = arith.constant 0 : index
    %170 = vector.load %arg21[%c0_128, %c0_129, %c0_130] : memref<3x16x32xf32, #tpu.memory_space<vmem>>, vector<1x16x32xf32>
    %171 = vector.shape_cast %170 : vector<1x16x32xf32> to vector<16x32xf32>
    %cst_131 = arith.constant dense<0.000000e+00> : vector<16x32xf32>
    %172 = tpu.matmul %169, %171, %cst_131 {dimension_numbers = #tpu.dot_dimension_numbers<[1], [0], [0], [1], [0, 0, 1, 1], [], []>} : vector<16x16xf32>, vector<16x32xf32>, vector<16x32xf32> -> vector<16x32xf32>
    %173 = arith.addf %166, %172 : vector<16x32xf32>
    %c2_132 = arith.constant 2 : index
    %c0_133 = arith.constant 0 : index
    %c0_134 = arith.constant 0 : index
    %174 = vector.load %arg2[%c2_132, %c0_133, %c0_134] : memref<4x16x16xf32, #tpu.memory_space<vmem>>, vector<1x16x16xf32>
    %175 = vector.shape_cast %174 : vector<1x16x16xf32> to vector<16x16xf32>
    %cst_135 = arith.constant dense<0.000000e+00> : vector<16x16xf32>
    %176 = tpu.matmul %175, %163, %cst_135 {dimension_numbers = #tpu.dot_dimension_numbers<[1], [0], [0], [1], [0, 0, 1, 1], [], []>} : vector<16x16xf32>, vector<16x16xf32>, vector<16x16xf32> -> vector<16x16xf32>
    %c1_136 = arith.constant 1 : index
    %c0_137 = arith.constant 0 : index
    %c0_138 = arith.constant 0 : index
    %177 = vector.load %arg21[%c1_136, %c0_137, %c0_138] : memref<3x16x32xf32, #tpu.memory_space<vmem>>, vector<1x16x32xf32>
    %178 = vector.shape_cast %177 : vector<1x16x32xf32> to vector<16x32xf32>
    %cst_139 = arith.constant dense<0.000000e+00> : vector<16x32xf32>
    %179 = tpu.matmul %176, %178, %cst_139 {dimension_numbers = #tpu.dot_dimension_numbers<[1], [0], [0], [1], [0, 0, 1, 1], [], []>} : vector<16x16xf32>, vector<16x32xf32>, vector<16x32xf32> -> vector<16x32xf32>
    %180 = arith.addf %173, %179 : vector<16x32xf32>
    %c0_140 = arith.constant 0 : index
    %c0_141 = arith.constant 0 : index
    %181 = vector.load %arg22[%c0_140, %c0_141] : memref<1x32xf32, #tpu.memory_space<vmem>>, vector<1x32xf32>
    %182 = vector.broadcast %181 : vector<1x32xf32> to vector<16x32xf32>
    %183 = arith.addf %180, %182 : vector<16x32xf32>
    %c0_142 = arith.constant 0 : index
    %c0_143 = arith.constant 0 : index
    %184 = vector.load %arg23[%c0_142, %c0_143] : memref<1x32xf32, #tpu.memory_space<vmem>>, vector<1x32xf32>
    %185 = vector.broadcast %184 : vector<1x32xf32> to vector<16x32xf32>
    %186 = arith.mulf %183, %185 : vector<16x32xf32>
    %c0_144 = arith.constant 0 : index
    %c0_145 = arith.constant 0 : index
    %187 = vector.load %arg24[%c0_144, %c0_145] : memref<1x32xf32, #tpu.memory_space<vmem>>, vector<1x32xf32>
    %188 = vector.broadcast %187 : vector<1x32xf32> to vector<16x32xf32>
    %189 = arith.addf %186, %188 : vector<16x32xf32>
    %cst_146 = arith.constant 0.000000e+00 : f32
    %190 = vector.broadcast %cst_146 : f32 to vector<16x32xf32>
    %191 = arith.maximumf %189, %190 : vector<16x32xf32>
    %192 = math.absf %189 : vector<16x32xf32>
    %cst_147 = arith.constant 0.000000e+00 : f32
    %193 = vector.broadcast %cst_147 : f32 to vector<16x32xf32>
    %194 = arith.subf %193, %192 : vector<16x32xf32>
    %195 = math.exp %194 : vector<16x32xf32>
    %196 = math.log1p %195 : vector<16x32xf32>
    %197 = arith.addf %191, %196 : vector<16x32xf32>
    %198 = math.tanh %197 : vector<16x32xf32>
    %199 = arith.mulf %189, %198 : vector<16x32xf32>
    %c2_148 = arith.constant 2 : index
    %c0_149 = arith.constant 0 : index
    %c0_150 = arith.constant 0 : index
    %200 = vector.load %arg25[%c2_148, %c0_149, %c0_150] : memref<3x32x32xf32, #tpu.memory_space<vmem>>, vector<1x32x32xf32>
    %201 = vector.shape_cast %200 : vector<1x32x32xf32> to vector<32x32xf32>
    %cst_151 = arith.constant dense<0.000000e+00> : vector<16x32xf32>
    %202 = tpu.matmul %199, %201, %cst_151 {dimension_numbers = #tpu.dot_dimension_numbers<[1], [0], [0], [1], [0, 0, 1, 1], [], []>} : vector<16x32xf32>, vector<32x32xf32>, vector<16x32xf32> -> vector<16x32xf32>
    %c3_152 = arith.constant 3 : index
    %c0_153 = arith.constant 0 : index
    %c0_154 = arith.constant 0 : index
    %203 = vector.load %arg2[%c3_152, %c0_153, %c0_154] : memref<4x16x16xf32, #tpu.memory_space<vmem>>, vector<1x16x16xf32>
    %204 = vector.shape_cast %203 : vector<1x16x16xf32> to vector<16x16xf32>
    %cst_155 = arith.constant dense<0.000000e+00> : vector<16x32xf32>
    %205 = tpu.matmul %204, %199, %cst_155 {dimension_numbers = #tpu.dot_dimension_numbers<[1], [0], [0], [1], [0, 0, 1, 1], [], []>} : vector<16x16xf32>, vector<16x32xf32>, vector<16x32xf32> -> vector<16x32xf32>
    %c0_156 = arith.constant 0 : index
    %c0_157 = arith.constant 0 : index
    %c0_158 = arith.constant 0 : index
    %206 = vector.load %arg25[%c0_156, %c0_157, %c0_158] : memref<3x32x32xf32, #tpu.memory_space<vmem>>, vector<1x32x32xf32>
    %207 = vector.shape_cast %206 : vector<1x32x32xf32> to vector<32x32xf32>
    %cst_159 = arith.constant dense<0.000000e+00> : vector<16x32xf32>
    %208 = tpu.matmul %205, %207, %cst_159 {dimension_numbers = #tpu.dot_dimension_numbers<[1], [0], [0], [1], [0, 0, 1, 1], [], []>} : vector<16x32xf32>, vector<32x32xf32>, vector<16x32xf32> -> vector<16x32xf32>
    %209 = arith.addf %202, %208 : vector<16x32xf32>
    %c2_160 = arith.constant 2 : index
    %c0_161 = arith.constant 0 : index
    %c0_162 = arith.constant 0 : index
    %210 = vector.load %arg2[%c2_160, %c0_161, %c0_162] : memref<4x16x16xf32, #tpu.memory_space<vmem>>, vector<1x16x16xf32>
    %211 = vector.shape_cast %210 : vector<1x16x16xf32> to vector<16x16xf32>
    %cst_163 = arith.constant dense<0.000000e+00> : vector<16x32xf32>
    %212 = tpu.matmul %211, %199, %cst_163 {dimension_numbers = #tpu.dot_dimension_numbers<[1], [0], [0], [1], [0, 0, 1, 1], [], []>} : vector<16x16xf32>, vector<16x32xf32>, vector<16x32xf32> -> vector<16x32xf32>
    %c1_164 = arith.constant 1 : index
    %c0_165 = arith.constant 0 : index
    %c0_166 = arith.constant 0 : index
    %213 = vector.load %arg25[%c1_164, %c0_165, %c0_166] : memref<3x32x32xf32, #tpu.memory_space<vmem>>, vector<1x32x32xf32>
    %214 = vector.shape_cast %213 : vector<1x32x32xf32> to vector<32x32xf32>
    %cst_167 = arith.constant dense<0.000000e+00> : vector<16x32xf32>
    %215 = tpu.matmul %212, %214, %cst_167 {dimension_numbers = #tpu.dot_dimension_numbers<[1], [0], [0], [1], [0, 0, 1, 1], [], []>} : vector<16x32xf32>, vector<32x32xf32>, vector<16x32xf32> -> vector<16x32xf32>
    %216 = arith.addf %209, %215 : vector<16x32xf32>
    %c0_168 = arith.constant 0 : index
    %c0_169 = arith.constant 0 : index
    %217 = vector.load %arg26[%c0_168, %c0_169] : memref<1x32xf32, #tpu.memory_space<vmem>>, vector<1x32xf32>
    %218 = vector.broadcast %217 : vector<1x32xf32> to vector<16x32xf32>
    %219 = arith.addf %216, %218 : vector<16x32xf32>
    %c0_170 = arith.constant 0 : index
    %c0_171 = arith.constant 0 : index
    %220 = vector.load %arg27[%c0_170, %c0_171] : memref<1x32xf32, #tpu.memory_space<vmem>>, vector<1x32xf32>
    %221 = vector.broadcast %220 : vector<1x32xf32> to vector<16x32xf32>
    %222 = arith.mulf %219, %221 : vector<16x32xf32>
    %c0_172 = arith.constant 0 : index
    %c0_173 = arith.constant 0 : index
    %223 = vector.load %arg28[%c0_172, %c0_173] : memref<1x32xf32, #tpu.memory_space<vmem>>, vector<1x32xf32>
    %224 = vector.broadcast %223 : vector<1x32xf32> to vector<16x32xf32>
    %225 = arith.addf %222, %224 : vector<16x32xf32>
    %cst_174 = arith.constant 0.000000e+00 : f32
    %226 = vector.broadcast %cst_174 : f32 to vector<16x32xf32>
    %227 = arith.maximumf %225, %226 : vector<16x32xf32>
    %228 = math.absf %225 : vector<16x32xf32>
    %cst_175 = arith.constant 0.000000e+00 : f32
    %229 = vector.broadcast %cst_175 : f32 to vector<16x32xf32>
    %230 = arith.subf %229, %228 : vector<16x32xf32>
    %231 = math.exp %230 : vector<16x32xf32>
    %232 = math.log1p %231 : vector<16x32xf32>
    %233 = arith.addf %227, %232 : vector<16x32xf32>
    %234 = math.tanh %233 : vector<16x32xf32>
    %235 = arith.mulf %225, %234 : vector<16x32xf32>
    %c0_176 = arith.constant 0 : index
    %c0_177 = arith.constant 0 : index
    %236 = vector.load %arg29[%c0_176, %c0_177] : memref<16x32xf32, #tpu.memory_space<vmem>>, vector<16x32xf32>
    %cst_178 = arith.constant dense<0.000000e+00> : vector<16x32xf32>
    %237 = tpu.matmul %163, %236, %cst_178 {dimension_numbers = #tpu.dot_dimension_numbers<[1], [0], [0], [1], [0, 0, 1, 1], [], []>} : vector<16x16xf32>, vector<16x32xf32>, vector<16x32xf32> -> vector<16x32xf32>
    %c0_179 = arith.constant 0 : index
    %c0_180 = arith.constant 0 : index
    %238 = vector.load %arg30[%c0_179, %c0_180] : memref<1x32xf32, #tpu.memory_space<vmem>>, vector<1x32xf32>
    %239 = vector.broadcast %238 : vector<1x32xf32> to vector<16x32xf32>
    %240 = arith.addf %237, %239 : vector<16x32xf32>
    %241 = arith.addf %235, %240 : vector<16x32xf32>
    %c0_181 = arith.constant 0 : index
    %c0_182 = arith.constant 0 : index
    %c0_183 = arith.constant 0 : index
    %242 = vector.load %arg31[%c0_181, %c0_182, %c0_183] : memref<1x16x32xf32, #tpu.memory_space<vmem>>, vector<1x16x32xf32>
    %243 = vector.shape_cast %242 : vector<1x16x32xf32> to vector<16x32xf32>
    %244 = vector.shape_cast %241 : vector<16x32xf32> to vector<1x16x32xf32>
    tpu.vector_store %arg31[%c0_181, %c0_182, %c0_183], %244 {strides = array<i32>} : memref<1x16x32xf32, #tpu.memory_space<vmem>>, vector<1x16x32xf32>,
    return
  }
  func.func @transform_0(%arg0: i32) -> (i32, i32, i32) {
    %c0_i32 = arith.constant 0 : i32
    %c0_i32_0 = arith.constant 0 : i32
    %c0_i32_1 = arith.constant 0 : i32
    return %arg0, %c0_i32, %c0_i32_0 : i32, i32, i32
  }
  func.func @transform_1(%arg0: i32) -> (i32, i32, i32) {
    %c0_i32 = arith.constant 0 : i32
    %c0_i32_0 = arith.constant 0 : i32
    %c0_i32_1 = arith.constant 0 : i32
    %c0_i32_2 = arith.constant 0 : i32
    return %c0_i32, %c0_i32_0, %c0_i32_1 : i32, i32, i32
  }
  func.func @transform_2(%arg0: i32) -> (i32, i32, i32) {
    %c0_i32 = arith.constant 0 : i32
    %c0_i32_0 = arith.constant 0 : i32
    %c0_i32_1 = arith.constant 0 : i32
    %c0_i32_2 = arith.constant 0 : i32
    return %c0_i32, %c0_i32_0, %c0_i32_1 : i32, i32, i32
  }
  func.func @transform_3(%arg0: i32) -> (i32, i32) {
    %c0_i32 = arith.constant 0 : i32
    %c0_i32_0 = arith.constant 0 : i32
    %c0_i32_1 = arith.constant 0 : i32
    return %c0_i32, %c0_i32_0 : i32, i32
  }
  func.func @transform_4(%arg0: i32) -> (i32, i32) {
    %c0_i32 = arith.constant 0 : i32
    %c0_i32_0 = arith.constant 0 : i32
    %c0_i32_1 = arith.constant 0 : i32
    return %c0_i32, %c0_i32_0 : i32, i32
  }
  func.func @transform_5(%arg0: i32) -> (i32, i32) {
    %c0_i32 = arith.constant 0 : i32
    %c0_i32_0 = arith.constant 0 : i32
    %c0_i32_1 = arith.constant 0 : i32
    return %c0_i32, %c0_i32_0 : i32, i32
  }
  func.func @transform_6(%arg0: i32) -> (i32, i32, i32) {
    %c0_i32 = arith.constant 0 : i32
    %c0_i32_0 = arith.constant 0 : i32
    %c0_i32_1 = arith.constant 0 : i32
    %c0_i32_2 = arith.constant 0 : i32
    return %c0_i32, %c0_i32_0, %c0_i32_1 : i32, i32, i32
  }
  func.func @transform_7(%arg0: i32) -> (i32, i32) {
    %c0_i32 = arith.constant 0 : i32
    %c0_i32_0 = arith.constant 0 : i32
    %c0_i32_1 = arith.constant 0 : i32
    return %c0_i32, %c0_i32_0 : i32, i32
  }
  func.func @transform_8(%arg0: i32) -> (i32, i32) {
    %c0_i32 = arith.constant 0 : i32
    %c0_i32_0 = arith.constant 0 : i32
    %c0_i32_1 = arith.constant 0 : i32
    return %c0_i32, %c0_i32_0 : i32, i32
  }
  func.func @transform_9(%arg0: i32) -> (i32, i32) {
    %c0_i32 = arith.constant 0 : i32
    %c0_i32_0 = arith.constant 0 : i32
    %c0_i32_1 = arith.constant 0 : i32
    return %c0_i32, %c0_i32_0 : i32, i32
  }
  func.func @transform_10(%arg0: i32) -> (i32, i32) {
    %c0_i32 = arith.constant 0 : i32
    %c0_i32_0 = arith.constant 0 : i32
    %c0_i32_1 = arith.constant 0 : i32
    return %c0_i32, %c0_i32_0 : i32, i32
  }
  func.func @transform_11(%arg0: i32) -> (i32, i32) {
    %c0_i32 = arith.constant 0 : i32
    %c0_i32_0 = arith.constant 0 : i32
    %c0_i32_1 = arith.constant 0 : i32
    return %c0_i32, %c0_i32_0 : i32, i32
  }
  func.func @transform_12(%arg0: i32) -> (i32, i32, i32) {
    %c0_i32 = arith.constant 0 : i32
    %c0_i32_0 = arith.constant 0 : i32
    %c0_i32_1 = arith.constant 0 : i32
    %c0_i32_2 = arith.constant 0 : i32
    return %c0_i32, %c0_i32_0, %c0_i32_1 : i32, i32, i32
  }
  func.func @transform_13(%arg0: i32) -> (i32, i32) {
    %c0_i32 = arith.constant 0 : i32
    %c0_i32_0 = arith.constant 0 : i32
    %c0_i32_1 = arith.constant 0 : i32
    return %c0_i32, %c0_i32_0 : i32, i32
  }
  func.func @transform_14(%arg0: i32) -> (i32, i32) {
    %c0_i32 = arith.constant 0 : i32
    %c0_i32_0 = arith.constant 0 : i32
    %c0_i32_1 = arith.constant 0 : i32
    return %c0_i32, %c0_i32_0 : i32, i32
  }
  func.func @transform_15(%arg0: i32) -> (i32, i32) {
    %c0_i32 = arith.constant 0 : i32
    %c0_i32_0 = arith.constant 0 : i32
    %c0_i32_1 = arith.constant 0 : i32
    return %c0_i32, %c0_i32_0 : i32, i32
  }
  func.func @transform_16(%arg0: i32) -> (i32, i32, i32) {
    %c0_i32 = arith.constant 0 : i32
    %c0_i32_0 = arith.constant 0 : i32
    %c0_i32_1 = arith.constant 0 : i32
    %c0_i32_2 = arith.constant 0 : i32
    return %c0_i32, %c0_i32_0, %c0_i32_1 : i32, i32, i32
  }
  func.func @transform_17(%arg0: i32) -> (i32, i32) {
    %c0_i32 = arith.constant 0 : i32
    %c0_i32_0 = arith.constant 0 : i32
    %c0_i32_1 = arith.constant 0 : i32
    return %c0_i32, %c0_i32_0 : i32, i32
  }
  func.func @transform_18(%arg0: i32) -> (i32, i32) {
    %c0_i32 = arith.constant 0 : i32
    %c0_i32_0 = arith.constant 0 : i32
    %c0_i32_1 = arith.constant 0 : i32
    return %c0_i32, %c0_i32_0 : i32, i32
  }
  func.func @transform_19(%arg0: i32) -> (i32, i32) {
    %c0_i32 = arith.constant 0 : i32
    %c0_i32_0 = arith.constant 0 : i32
    %c0_i32_1 = arith.constant 0 : i32
    return %c0_i32, %c0_i32_0 : i32, i32
  }
  func.func @transform_20(%arg0: i32) -> (i32, i32, i32) {
    %c0_i32 = arith.constant 0 : i32
    %c0_i32_0 = arith.constant 0 : i32
    %c0_i32_1 = arith.constant 0 : i32
    %c0_i32_2 = arith.constant 0 : i32
    return %c0_i32, %c0_i32_0, %c0_i32_1 : i32, i32, i32
  }
  func.func @transform_21(%arg0: i32) -> (i32, i32) {
    %c0_i32 = arith.constant 0 : i32
    %c0_i32_0 = arith.constant 0 : i32
    %c0_i32_1 = arith.constant 0 : i32
    return %c0_i32, %c0_i32_0 : i32, i32
  }
  func.func @transform_22(%arg0: i32) -> (i32, i32) {
    %c0_i32 = arith.constant 0 : i32
    %c0_i32_0 = arith.constant 0 : i32
    %c0_i32_1 = arith.constant 0 : i32
    return %c0_i32, %c0_i32_0 : i32, i32
  }
  func.func @transform_23(%arg0: i32) -> (i32, i32) {
    %c0_i32 = arith.constant 0 : i32
    %c0_i32_0 = arith.constant 0 : i32
    %c0_i32_1 = arith.constant 0 : i32
    return %c0_i32, %c0_i32_0 : i32, i32
  }
  func.func @transform_24(%arg0: i32) -> (i32, i32, i32) {
    %c0_i32 = arith.constant 0 : i32
    %c0_i32_0 = arith.constant 0 : i32
    %c0_i32_1 = arith.constant 0 : i32
    %c0_i32_2 = arith.constant 0 : i32
    return %c0_i32, %c0_i32_0, %c0_i32_1 : i32, i32, i32
  }
  func.func @transform_25(%arg0: i32) -> (i32, i32) {
    %c0_i32 = arith.constant 0 : i32
    %c0_i32_0 = arith.constant 0 : i32
    %c0_i32_1 = arith.constant 0 : i32
    return %c0_i32, %c0_i32_0 : i32, i32
  }
  func.func @transform_26(%arg0: i32) -> (i32, i32) {
    %c0_i32 = arith.constant 0 : i32
    %c0_i32_0 = arith.constant 0 : i32
    %c0_i32_1 = arith.constant 0 : i32
    return %c0_i32, %c0_i32_0 : i32, i32
  }
  func.func @transform_27(%arg0: i32) -> (i32, i32) {
    %c0_i32 = arith.constant 0 : i32
    %c0_i32_0 = arith.constant 0 : i32
    %c0_i32_1 = arith.constant 0 : i32
    return %c0_i32, %c0_i32_0 : i32, i32
  }
  func.func @transform_28(%arg0: i32) -> (i32, i32) {
    %c0_i32 = arith.constant 0 : i32
    %c0_i32_0 = arith.constant 0 : i32
    %c0_i32_1 = arith.constant 0 : i32
    return %c0_i32, %c0_i32_0 : i32, i32
  }
  func.func @transform_29(%arg0: i32) -> (i32, i32) {
    %c0_i32 = arith.constant 0 : i32
    %c0_i32_0 = arith.constant 0 : i32
    %c0_i32_1 = arith.constant 0 : i32
    return %c0_i32, %c0_i32_0 : i32, i32
  }
  func.func @transform_30(%arg0: i32) -> (i32, i32, i32) {
    %c0_i32 = arith.constant 0 : i32
    %c0_i32_0 = arith.constant 0 : i32
    %c0_i32_1 = arith.constant 0 : i32
    return %arg0, %c0_i32, %c0_i32_0 : i32, i32, i32
  }
}

</mosaic_0001>

<llo_original>
// kernel: temporal_conv_net.1
$region0: #{temporal_conv_net.1}
  #allocation0 [shape = 'u32[]', space=smem, size = 0x4, offset = 0x4, fixed_abs, tag = 'smem constant byte address 0x4 - core index']
  #allocation1 [shape = 'u32[144,128]{1,0:T(1,128)}', space=vmem, size = 0x12000, scoped, tag = 'internal scratch']
  %s0 = inlined_call_operand.smem [shape: u32[31], index: -1, kind: input, shape index: {}]
  %s1 = sld [smem:[%s0]]
  %s2 = scalar_lea.smem %s0, 1
  %s3 = sld [smem:[%s2]]
  %s4 = scalar_lea.smem %s0, 2
  %s5 = sld [smem:[%s4]]
  %s6 = scalar_lea.smem %s0, 3
  %s7 = sld [smem:[%s6]]
  %s8 = scalar_lea.smem %s0, 4
  %s9 = sld [smem:[%s8]]
  %s10 = scalar_lea.smem %s0, 5
  %s11 = sld [smem:[%s10]]
  %s12 = scalar_lea.smem %s0, 6
  %s13 = sld [smem:[%s12]]
  %s14 = scalar_lea.smem %s0, 7
  %s15 = sld [smem:[%s14]]
  %s16 = scalar_lea.smem %s0, 8
  %s17 = sld [smem:[%s16]]
  %s18 = scalar_lea.smem %s0, 9
  %s19 = sld [smem:[%s18]]
  %s20 = scalar_lea.smem %s0, 10
  %s21 = sld [smem:[%s20]]
  %s22 = scalar_lea.smem %s0, 11
  %s23 = sld [smem:[%s22]]
  %s24 = scalar_lea.smem %s0, 12
  %s25 = sld [smem:[%s24]]
  %s26 = scalar_lea.smem %s0, 13
  %s27 = sld [smem:[%s26]]
  %s28 = scalar_lea.smem %s0, 14
  %s29 = sld [smem:[%s28]]
  %s30 = scalar_lea.smem %s0, 15
  %s31 = sld [smem:[%s30]]
  %s32 = scalar_lea.smem %s0, 16
  %s33 = sld [smem:[%s32]]
  %s34 = scalar_lea.smem %s0, 17
  %s35 = sld [smem:[%s34]]
  %s36 = scalar_lea.smem %s0, 18
  %s37 = sld [smem:[%s36]]
  %s38 = scalar_lea.smem %s0, 19
  %s39 = sld [smem:[%s38]]
  %s40 = scalar_lea.smem %s0, 20
  %s41 = sld [smem:[%s40]]
  %s42 = scalar_lea.smem %s0, 21
  %s43 = sld [smem:[%s42]]
  %s44 = scalar_lea.smem %s0, 22
  %s45 = sld [smem:[%s44]]
  %s46 = scalar_lea.smem %s0, 23
  %s47 = sld [smem:[%s46]]
  %s48 = scalar_lea.smem %s0, 24
  %s49 = sld [smem:[%s48]]
  %s50 = scalar_lea.smem %s0, 25
  %s51 = sld [smem:[%s50]]
  %s52 = scalar_lea.smem %s0, 26
  %s53 = sld [smem:[%s52]]
  %s54 = scalar_lea.smem %s0, 27
  %s55 = sld [smem:[%s54]]
  %s56 = scalar_lea.smem %s0, 28
  %s57 = sld [smem:[%s56]]
  %s58 = scalar_lea.smem %s0, 29
  %s59 = sld [smem:[%s58]]
  %s60 = scalar_lea.smem %s0, 30
  %s61 = sld [smem:[%s60]]
  %s62 = sld [smem:[#allocation0]]
  $region153: #{temporal_conv_net.1} parent=0
    _
  %s64 = ssub.s32 1, %s62
  %s65 = scalar_select 0, %s64, %s62
  $region1: #{temporal_conv_net.1} parent=0
    #allocation2 [shape = 'u8[16384]{0}', space=vmem, size = 0x4000, scoped, tag = 'output window, operand 0']
    #allocation3 [shape = 's32[2]{0}', space=sflag, size = 0x8, scoped, tag = 'scoped memory for temporal_conv_net.1']
    %66 = vsyncpa [#allocation3], 0
    %s67 = scalar_lea.sflag [#allocation3], 1
    %68 = vsyncpa %s67, 0
    loop: start=0, step=1, limit=4
    $region2: #{temporal_conv_net.1} parent=1 // loop_pre_header
      _
    $region3: #{temporal_conv_net.1} parent=1 // loop_header
      %s70 = sphi 0, %s74
      %p71 = scmp.ge.s32.totalorder %s70, 4
      %s80 = sphi 0, %s82
      %s83 = sphi 0, %s80
      %s84 = sphi 0, %s83
      %s100 = sphi 0, %s84
      %s104 = sphi 0, %s104
      %s106 = sphi 0, %s104
      %s107 = sphi 0, %s106
      %s121 = sphi 0, %s107
      %s125 = sphi 0, %s125
      %s127 = sphi 0, %s125
      %s128 = sphi 0, %s127
      %s142 = sphi 0, %s128
      %s146 = sphi 0, %s146
      %s148 = sphi 0, %s146
      %s149 = sphi 0, %s148
      %s163 = sphi 0, %s149
      %s167 = sphi 0, %s167
      %s169 = sphi 0, %s167
      %s170 = sphi 0, %s169
      %s184 = sphi 0, %s170
      %s188 = sphi 0, %s188
      %s190 = sphi 0, %s188
      %s191 = sphi 0, %s190
      %s205 = sphi 0, %s191
      %s209 = sphi 0, %s209
      %s211 = sphi 0, %s209
      %s212 = sphi 0, %s211
      %s226 = sphi 0, %s212
      %s230 = sphi 0, %s230
      %s232 = sphi 0, %s230
      %s233 = sphi 0, %s232
      %s247 = sphi 0, %s233
      %s251 = sphi 0, %s251
      %s253 = sphi 0, %s251
      %s254 = sphi 0, %s253
      %s268 = sphi 0, %s254
      %s272 = sphi 0, %s272
      %s274 = sphi 0, %s272
      %s275 = sphi 0, %s274
      %s289 = sphi 0, %s275
      %s293 = sphi 0, %s293
      %s295 = sphi 0, %s293
      %s296 = sphi 0, %s295
      %s310 = sphi 0, %s296
      %s314 = sphi 0, %s314
      %s316 = sphi 0, %s314
      %s317 = sphi 0, %s316
      %s331 = sphi 0, %s317
      %s335 = sphi 0, %s335
      %s337 = sphi 0, %s335
      %s338 = sphi 0, %s337
      %s352 = sphi 0, %s338
      %s356 = sphi 0, %s356
      %s358 = sphi 0, %s356
      %s359 = sphi 0, %s358
      %s373 = sphi 0, %s359
      %s377 = sphi 0, %s377
      %s379 = sphi 0, %s377
      %s380 = sphi 0, %s379
      %s394 = sphi 0, %s380
      %s398 = sphi 0, %s398
      %s400 = sphi 0, %s398
      %s401 = sphi 0, %s400
      %s415 = sphi 0, %s401
      %s419 = sphi 0, %s419
      %s421 = sphi 0, %s419
      %s422 = sphi 0, %s421
      %s436 = sphi 0, %s422
      %s440 = sphi 0, %s440
      %s442 = sphi 0, %s440
      %s443 = sphi 0, %s442
      %s457 = sphi 0, %s443
      %s461 = sphi 0, %s461
      %s463 = sphi 0, %s461
      %s464 = sphi 0, %s463
      %s478 = sphi 0, %s464
      %s482 = sphi 0, %s482
      %s484 = sphi 0, %s482
      %s485 = sphi 0, %s484
      %s499 = sphi 0, %s485
      %s503 = sphi 0, %s503
      %s505 = sphi 0, %s503
      %s506 = sphi 0, %s505
      %s520 = sphi 0, %s506
      %s524 = sphi 0, %s524
      %s526 = sphi 0, %s524
      %s527 = sphi 0, %s526
      %s541 = sphi 0, %s527
      %s545 = sphi 0, %s545
      %s547 = sphi 0, %s545
      %s548 = sphi 0, %s547
      %s562 = sphi 0, %s548
      %s566 = sphi 0, %s566
      %s568 = sphi 0, %s566
      %s569 = sphi 0, %s568
      %s583 = sphi 0, %s569
      %s587 = sphi 0, %s587
      %s589 = sphi 0, %s587
      %s590 = sphi 0, %s589
      %s604 = sphi 0, %s590
      %s608 = sphi 0, %s608
      %s610 = sphi 0, %s608
      %s611 = sphi 0, %s610
      %s625 = sphi 0, %s611
      %s629 = sphi 0, %s629
      %s631 = sphi 0, %s629
      %s632 = sphi 0, %s631
      %s646 = sphi 0, %s632
      %s650 = sphi 0, %s650
      %s652 = sphi 0, %s650
      %s653 = sphi 0, %s652
      %s667 = sphi 0, %s653
      %s671 = sphi 0, %s671
      %s673 = sphi 0, %s671
      %s674 = sphi 0, %s673
      %s688 = sphi 0, %s674
      %s692 = sphi 0, %s692
      %s694 = sphi 0, %s692
      %s695 = sphi 0, %s694
      %s709 = sphi 0, %s695
      %s715 = sphi 0, %s717
      %s718 = sphi 0, %s715
      %s719 = sphi 0, %s718
      %s735 = sphi 0, %s719
    $region4: #{temporal_conv_net.1} parent=1 // loop_header_branch
      %73 = sbr.rel (%p71) target = $region8
    $region5: #{temporal_conv_net.1} parent=1 // loop_body
      %s75 = ssub.s32 %s70, 1
      %s76 = ssub.s32 %s70, 2
      %s77 = sadd.s32 %s70, 1
      %s78 = ssub.s32 %s70, %s77
      %p79 = scmp.eq.s32.totalorder %s78, 0
      %s81 = sadd.s32 %s80, 1
      %s82 = scalar_select %p79, %s80, %s81
      %p85 = pneg %p79
      %p86 = scmp.eq.s32.totalorder %s70, 1
      %p87 = por %p85, %p86
      %p88 = scmp.ne.s32.totalorder %s80, %s83
      %p89 = scmp.eq.s32.totalorder %s70, 0
      %p90 = por %p88, %p89
      %p91 = scmp.ne.s32.totalorder %s80, %s83
      %p92 = scmp.eq.s32.totalorder %s75, 1
      %p93 = por %p91, %p92
      %p94 = scmp.ne.s32.totalorder %s83, %s84
      %p95 = scmp.eq.s32.totalorder %s75, 0
      %p96 = por %p94, %p95
      %p97 = scmp.ne.s32.totalorder %s83, %s84
      %p98 = scmp.eq.s32.totalorder %s76, 1
      %p99 = por %p97, %p98
      %p101 = scmp.ne.s32.totalorder %s84, %s100
      %p102 = scmp.eq.s32.totalorder %s76, 0
      %p103 = por %p101, %p102
      %s105 = sadd.s32 %s104, 1
      %p108 = scmp.eq.s32.totalorder %s70, 1
      %p109 = scmp.ne.s32.totalorder %s104, %s106
      %p110 = scmp.eq.s32.totalorder %s70, 0
      %p111 = por %p109, %p110
      %p112 = scmp.ne.s32.totalorder %s104, %s106
      %p113 = scmp.eq.s32.totalorder %s75, 1
      %p114 = por %p112, %p113
      %p115 = scmp.ne.s32.totalorder %s106, %s107
      %p116 = scmp.eq.s32.totalorder %s75, 0
      %p117 = por %p115, %p116
      %p118 = scmp.ne.s32.totalorder %s106, %s107
      %p119 = scmp.eq.s32.totalorder %s76, 1
      %p120 = por %p118, %p119
      %p122 = scmp.ne.s32.totalorder %s107, %s121
      %p123 = scmp.eq.s32.totalorder %s76, 0
      %p124 = por %p122, %p123
      %s126 = sadd.s32 %s125, 1
      %p129 = scmp.eq.s32.totalorder %s70, 1
      %p130 = scmp.ne.s32.totalorder %s125, %s127
      %p131 = scmp.eq.s32.totalorder %s70, 0
      %p132 = por %p130, %p131
      %p133 = scmp.ne.s32.totalorder %s125, %s127
      %p134 = scmp.eq.s32.totalorder %s75, 1
      %p135 = por %p133, %p134
      %p136 = scmp.ne.s32.totalorder %s127, %s128
      %p137 = scmp.eq.s32.totalorder %s75, 0
      %p138 = por %p136, %p137
      %p139 = scmp.ne.s32.totalorder %s127, %s128
      %p140 = scmp.eq.s32.totalorder %s76, 1
      %p141 = por %p139, %p140
      %p143 = scmp.ne.s32.totalorder %s128, %s142
      %p144 = scmp.eq.s32.totalorder %s76, 0
      %p145 = por %p143, %p144
      %s147 = sadd.s32 %s146, 1
      %p150 = scmp.eq.s32.totalorder %s70, 1
      %p151 = scmp.ne.s32.totalorder %s146, %s148
      %p152 = scmp.eq.s32.totalorder %s70, 0
      %p153 = por %p151, %p152
      %p154 = scmp.ne.s32.totalorder %s146, %s148
      %p155 = scmp.eq.s32.totalorder %s75, 1
      %p156 = por %p154, %p155
      %p157 = scmp.ne.s32.totalorder %s148, %s149
      %p158 = scmp.eq.s32.totalorder %s75, 0
      %p159 = por %p157, %p158
      %p160 = scmp.ne.s32.totalorder %s148, %s149
      %p161 = scmp.eq.s32.totalorder %s76, 1
      %p162 = por %p160, %p161
      %p164 = scmp.ne.s32.totalorder %s149, %s163
      %p165 = scmp.eq.s32.totalorder %s76, 0
      %p166 = por %p164, %p165
      %s168 = sadd.s32 %s167, 1
      %p171 = scmp.eq.s32.totalorder %s70, 1
      %p172 = scmp.ne.s32.totalorder %s167, %s169
      %p173 = scmp.eq.s32.totalorder %s70, 0
      %p174 = por %p172, %p173
      %p175 = scmp.ne.s32.totalorder %s167, %s169
      %p176 = scmp.eq.s32.totalorder %s75, 1
      %p177 = por %p175, %p176
      %p178 = scmp.ne.s32.totalorder %s169, %s170
      %p179 = scmp.eq.s32.totalorder %s75, 0
      %p180 = por %p178, %p179
      %p181 = scmp.ne.s32.totalorder %s169, %s170
      %p182 = scmp.eq.s32.totalorder %s76, 1
      %p183 = por %p181, %p182
      %p185 = scmp.ne.s32.totalorder %s170, %s184
      %p186 = scmp.eq.s32.totalorder %s76, 0
      %p187 = por %p185, %p186
      %s189 = sadd.s32 %s188, 1
      %p192 = scmp.eq.s32.totalorder %s70, 1
      %p193 = scmp.ne.s32.totalorder %s188, %s190
      %p194 = scmp.eq.s32.totalorder %s70, 0
      %p195 = por %p193, %p194
      %p196 = scmp.ne.s32.totalorder %s188, %s190
      %p197 = scmp.eq.s32.totalorder %s75, 1
      %p198 = por %p196, %p197
      %p199 = scmp.ne.s32.totalorder %s190, %s191
      %p200 = scmp.eq.s32.totalorder %s75, 0
      %p201 = por %p199, %p200
      %p202 = scmp.ne.s32.totalorder %s190, %s191
      %p203 = scmp.eq.s32.totalorder %s76, 1
      %p204 = por %p202, %p203
      %p206 = scmp.ne.s32.totalorder %s191, %s205
      %p207 = scmp.eq.s32.totalorder %s76, 0
      %p208 = por %p206, %p207
      %s210 = sadd.s32 %s209, 1
      %p213 = scmp.eq.s32.totalorder %s70, 1
      %p214 = scmp.ne.s32.totalorder %s209, %s211
      %p215 = scmp.eq.s32.totalorder %s70, 0
      %p216 = por %p214, %p215
      %p217 = scmp.ne.s32.totalorder %s209, %s211
      %p218 = scmp.eq.s32.totalorder %s75, 1
      %p219 = por %p217, %p218
      %p220 = scmp.ne.s32.totalorder %s211, %s212
      %p221 = scmp.eq.s32.totalorder %s75, 0
      %p222 = por %p220, %p221
      %p223 = scmp.ne.s32.totalorder %s211, %s212
      %p224 = scmp.eq.s32.totalorder %s76, 1
      %p225 = por %p223, %p224
      %p227 = scmp.ne.s32.totalorder %s212, %s226
      %p228 = scmp.eq.s32.totalorder %s76, 0
      %p229 = por %p227, %p228
      %s231 = sadd.s32 %s230, 1
      %p234 = scmp.eq.s32.totalorder %s70, 1
      %p235 = scmp.ne.s32.totalorder %s230, %s232
      %p236 = scmp.eq.s32.totalorder %s70, 0
      %p237 = por %p235, %p236
      %p238 = scmp.ne.s32.totalorder %s230, %s232
      %p239 = scmp.eq.s32.totalorder %s75, 1
      %p240 = por %p238, %p239
      %p241 = scmp.ne.s32.totalorder %s232, %s233
      %p242 = scmp.eq.s32.totalorder %s75, 0
      %p243 = por %p241, %p242
      %p244 = scmp.ne.s32.totalorder %s232, %s233
      %p245 = scmp.eq.s32.totalorder %s76, 1
      %p246 = por %p244, %p245
      %p248 = scmp.ne.s32.totalorder %s233, %s247
      %p249 = scmp.eq.s32.totalorder %s76, 0
      %p250 = por %p248, %p249
      %s252 = sadd.s32 %s251, 1
      %p255 = scmp.eq.s32.totalorder %s70, 1
      %p256 = scmp.ne.s32.totalorder %s251, %s253
      %p257 = scmp.eq.s32.totalorder %s70, 0
      %p258 = por %p256, %p257
      %p259 = scmp.ne.s32.totalorder %s251, %s253
      %p260 = scmp.eq.s32.totalorder %s75, 1
      %p261 = por %p259, %p260
      %p262 = scmp.ne.s32.totalorder %s253, %s254
      %p263 = scmp.eq.s32.totalorder %s75, 0
      %p264 = por %p262, %p263
      %p265 = scmp.ne.s32.totalorder %s253, %s254
      %p266 = scmp.eq.s32.totalorder %s76, 1
      %p267 = por %p265, %p266
      %p269 = scmp.ne.s32.totalorder %s254, %s268
      %p270 = scmp.eq.s32.totalorder %s76, 0
      %p271 = por %p269, %p270
      %s273 = sadd.s32 %s272, 1
      %p276 = scmp.eq.s32.totalorder %s70, 1
      %p277 = scmp.ne.s32.totalorder %s272, %s274
      %p278 = scmp.eq.s32.totalorder %s70, 0
      %p279 = por %p277, %p278
      %p280 = scmp.ne.s32.totalorder %s272, %s274
      %p281 = scmp.eq.s32.totalorder %s75, 1
      %p282 = por %p280, %p281
      %p283 = scmp.ne.s32.totalorder %s274, %s275
      %p284 = scmp.eq.s32.totalorder %s75, 0
      %p285 = por %p283, %p284
      %p286 = scmp.ne.s32.totalorder %s274, %s275
      %p287 = scmp.eq.s32.totalorder %s76, 1
      %p288 = por %p286, %p287
      %p290 = scmp.ne.s32.totalorder %s275, %s289
      %p291 = scmp.eq.s32.totalorder %s76, 0
      %p292 = por %p290, %p291
      %s294 = sadd.s32 %s293, 1
      %p297 = scmp.eq.s32.totalorder %s70, 1
      %p298 = scmp.ne.s32.totalorder %s293, %s295
      %p299 = scmp.eq.s32.totalorder %s70, 0
      %p300 = por %p298, %p299
      %p301 = scmp.ne.s32.totalorder %s293, %s295
      %p302 = scmp.eq.s32.totalorder %s75, 1
      %p303 = por %p301, %p302
      %p304 = scmp.ne.s32.totalorder %s295, %s296
      %p305 = scmp.eq.s32.totalorder %s75, 0
      %p306 = por %p304, %p305
      %p307 = scmp.ne.s32.totalorder %s295, %s296
      %p308 = scmp.eq.s32.totalorder %s76, 1
      %p309 = por %p307, %p308
      %p311 = scmp.ne.s32.totalorder %s296, %s310
      %p312 = scmp.eq.s32.totalorder %s76, 0
      %p313 = por %p311, %p312
      %s315 = sadd.s32 %s314, 1
      %p318 = scmp.eq.s32.totalorder %s70, 1
      %p319 = scmp.ne.s32.totalorder %s314, %s316
      %p320 = scmp.eq.s32.totalorder %s70, 0
      %p321 = por %p319, %p320
      %p322 = scmp.ne.s32.totalorder %s314, %s316
      %p323 = scmp.eq.s32.totalorder %s75, 1
      %p324 = por %p322, %p323
      %p325 = scmp.ne.s32.totalorder %s316, %s317
      %p326 = scmp.eq.s32.totalorder %s75, 0
      %p327 = por %p325, %p326
      %p328 = scmp.ne.s32.totalorder %s316, %s317
      %p329 = scmp.eq.s32.totalorder %s76, 1
      %p330 = por %p328, %p329
      %p332 = scmp.ne.s32.totalorder %s317, %s331
      %p333 = scmp.eq.s32.totalorder %s76, 0
      %p334 = por %p332, %p333
      %s336 = sadd.s32 %s335, 1
      %p339 = scmp.eq.s32.totalorder %s70, 1
      %p340 = scmp.ne.s32.totalorder %s335, %s337
      %p341 = scmp.eq.s32.totalorder %s70, 0
      %p342 = por %p340, %p341
      %p343 = scmp.ne.s32.totalorder %s335, %s337
      %p344 = scmp.eq.s32.totalorder %s75, 1
      %p345 = por %p343, %p344
      %p346 = scmp.ne.s32.totalorder %s337, %s338
      %p347 = scmp.eq.s32.totalorder %s75, 0
      %p348 = por %p346, %p347
      %p349 = scmp.ne.s32.totalorder %s337, %s338
      %p350 = scmp.eq.s32.totalorder %s76, 1
      %p351 = por %p349, %p350
      %p353 = scmp.ne.s32.totalorder %s338, %s352
      %p354 = scmp.eq.s32.totalorder %s76, 0
      %p355 = por %p353, %p354
      %s357 = sadd.s32 %s356, 1
      %p360 = scmp.eq.s32.totalorder %s70, 1
      %p361 = scmp.ne.s32.totalorder %s356, %s358
      %p362 = scmp.eq.s32.totalorder %s70, 0
      %p363 = por %p361, %p362
      %p364 = scmp.ne.s32.totalorder %s356, %s358
      %p365 = scmp.eq.s32.totalorder %s75, 1
      %p366 = por %p364, %p365
      %p367 = scmp.ne.s32.totalorder %s358, %s359
      %p368 = scmp.eq.s32.totalorder %s75, 0
      %p369 = por %p367, %p368
      %p370 = scmp.ne.s32.totalorder %s358, %s359
      %p371 = scmp.eq.s32.totalorder %s76, 1
      %p372 = por %p370, %p371
      %p374 = scmp.ne.s32.totalorder %s359, %s373
      %p375 = scmp.eq.s32.totalorder %s76, 0
      %p376 = por %p374, %p375
      %s378 = sadd.s32 %s377, 1
      %p381 = scmp.eq.s32.totalorder %s70, 1
      %p382 = scmp.ne.s32.totalorder %s377, %s379
      %p383 = scmp.eq.s32.totalorder %s70, 0
      %p384 = por %p382, %p383
      %p385 = scmp.ne.s32.totalorder %s377, %s379
      %p386 = scmp.eq.s32.totalorder %s75, 1
      %p387 = por %p385, %p386
      %p388 = scmp.ne.s32.totalorder %s379, %s380
      %p389 = scmp.eq.s32.totalorder %s75, 0
      %p390 = por %p388, %p389
      %p391 = scmp.ne.s32.totalorder %s379, %s380
      %p392 = scmp.eq.s32.totalorder %s76, 1
      %p393 = por %p391, %p392
      %p395 = scmp.ne.s32.totalorder %s380, %s394
      %p396 = scmp.eq.s32.totalorder %s76, 0
      %p397 = por %p395, %p396
      %s399 = sadd.s32 %s398, 1
      %p402 = scmp.eq.s32.totalorder %s70, 1
      %p403 = scmp.ne.s32.totalorder %s398, %s400
      %p404 = scmp.eq.s32.totalorder %s70, 0
      %p405 = por %p403, %p404
      %p406 = scmp.ne.s32.totalorder %s398, %s400
      %p407 = scmp.eq.s32.totalorder %s75, 1
      %p408 = por %p406, %p407
      %p409 = scmp.ne.s32.totalorder %s400, %s401
      %p410 = scmp.eq.s32.totalorder %s75, 0
      %p411 = por %p409, %p410
      %p412 = scmp.ne.s32.totalorder %s400, %s401
      %p413 = scmp.eq.s32.totalorder %s76, 1
      %p414 = por %p412, %p413
      %p416 = scmp.ne.s32.totalorder %s401, %s415
      %p417 = scmp.eq.s32.totalorder %s76, 0
      %p418 = por %p416, %p417
      %s420 = sadd.s32 %s419, 1
      %p423 = scmp.eq.s32.totalorder %s70, 1
      %p424 = scmp.ne.s32.totalorder %s419, %s421
      %p425 = scmp.eq.s32.totalorder %s70, 0
      %p426 = por %p424, %p425
      %p427 = scmp.ne.s32.totalorder %s419, %s421
      %p428 = scmp.eq.s32.totalorder %s75, 1
      %p429 = por %p427, %p428
      %p430 = scmp.ne.s32.totalorder %s421, %s422
      %p431 = scmp.eq.s32.totalorder %s75, 0
      %p432 = por %p430, %p431
      %p433 = scmp.ne.s32.totalorder %s421, %s422
      %p434 = scmp.eq.s32.totalorder %s76, 1
      %p435 = por %p433, %p434
      %p437 = scmp.ne.s32.totalorder %s422, %s436
      %p438 = scmp.eq.s32.totalorder %s76, 0
      %p439 = por %p437, %p438
      %s441 = sadd.s32 %s440, 1
      %p444 = scmp.eq.s32.totalorder %s70, 1
      %p445 = scmp.ne.s32.totalorder %s440, %s442
      %p446 = scmp.eq.s32.totalorder %s70, 0
      %p447 = por %p445, %p446
      %p448 = scmp.ne.s32.totalorder %s440, %s442
      %p449 = scmp.eq.s32.totalorder %s75, 1
      %p450 = por %p448, %p449
      %p451 = scmp.ne.s32.totalorder %s442, %s443
      %p452 = scmp.eq.s32.totalorder %s75, 0
      %p453 = por %p451, %p452
      %p454 = scmp.ne.s32.totalorder %s442, %s443
      %p455 = scmp.eq.s32.totalorder %s76, 1
      %p456 = por %p454, %p455
      %p458 = scmp.ne.s32.totalorder %s443, %s457
      %p459 = scmp.eq.s32.totalorder %s76, 0
      %p460 = por %p458, %p459
      %s462 = sadd.s32 %s461, 1
      %p465 = scmp.eq.s32.totalorder %s70, 1
      %p466 = scmp.ne.s32.totalorder %s461, %s463
      %p467 = scmp.eq.s32.totalorder %s70, 0
      %p468 = por %p466, %p467
      %p469 = scmp.ne.s32.totalorder %s461, %s463
      %p470 = scmp.eq.s32.totalorder %s75, 1
      %p471 = por %p469, %p470
      %p472 = scmp.ne.s32.totalorder %s463, %s464
      %p473 = scmp.eq.s32.totalorder %s75, 0
      %p474 = por %p472, %p473
      %p475 = scmp.ne.s32.totalorder %s463, %s464
      %p476 = scmp.eq.s32.totalorder %s76, 1
      %p477 = por %p475, %p476
      %p479 = scmp.ne.s32.totalorder %s464, %s478
      %p480 = scmp.eq.s32.totalorder %s76, 0
      %p481 = por %p479, %p480
      %s483 = sadd.s32 %s482, 1
      %p486 = scmp.eq.s32.totalorder %s70, 1
      %p487 = scmp.ne.s32.totalorder %s482, %s484
      %p488 = scmp.eq.s32.totalorder %s70, 0
      %p489 = por %p487, %p488
      %p490 = scmp.ne.s32.totalorder %s482, %s484
      %p491 = scmp.eq.s32.totalorder %s75, 1
      %p492 = por %p490, %p491
      %p493 = scmp.ne.s32.totalorder %s484, %s485
      %p494 = scmp.eq.s32.totalorder %s75, 0
      %p495 = por %p493, %p494
      %p496 = scmp.ne.s32.totalorder %s484, %s485
      %p497 = scmp.eq.s32.totalorder %s76, 1
      %p498 = por %p496, %p497
      %p500 = scmp.ne.s32.totalorder %s485, %s499
      %p501 = scmp.eq.s32.totalorder %s76, 0
      %p502 = por %p500, %p501
      %s504 = sadd.s32 %s503, 1
      %p507 = scmp.eq.s32.totalorder %s70, 1
      %p508 = scmp.ne.s32.totalorder %s503, %s505
      %p509 = scmp.eq.s32.totalorder %s70, 0
      %p510 = por %p508, %p509
      %p511 = scmp.ne.s32.totalorder %s503, %s505
      %p512 = scmp.eq.s32.totalorder %s75, 1
      %p513 = por %p511, %p512
      %p514 = scmp.ne.s32.totalorder %s505, %s506
      %p515 = scmp.eq.s32.totalorder %s75, 0
      %p516 = por %p514, %p515
      %p517 = scmp.ne.s32.totalorder %s505, %s506
      %p518 = scmp.eq.s32.totalorder %s76, 1
      %p519 = por %p517, %p518
      %p521 = scmp.ne.s32.totalorder %s506, %s520
      %p522 = scmp.eq.s32.totalorder %s76, 0
      %p523 = por %p521, %p522
      %s525 = sadd.s32 %s524, 1
      %p528 = scmp.eq.s32.totalorder %s70, 1
      %p529 = scmp.ne.s32.totalorder %s524, %s526
      %p530 = scmp.eq.s32.totalorder %s70, 0
      %p531 = por %p529, %p530
      %p532 = scmp.ne.s32.totalorder %s524, %s526
      %p533 = scmp.eq.s32.totalorder %s75, 1
      %p534 = por %p532, %p533
      %p535 = scmp.ne.s32.totalorder %s526, %s527
      %p536 = scmp.eq.s32.totalorder %s75, 0
      %p537 = por %p535, %p536
      %p538 = scmp.ne.s32.totalorder %s526, %s527
      %p539 = scmp.eq.s32.totalorder %s76, 1
      %p540 = por %p538, %p539
      %p542 = scmp.ne.s32.totalorder %s527, %s541
      %p543 = scmp.eq.s32.totalorder %s76, 0
      %p544 = por %p542, %p543
      %s546 = sadd.s32 %s545, 1
      %p549 = scmp.eq.s32.totalorder %s70, 1
      %p550 = scmp.ne.s32.totalorder %s545, %s547
      %p551 = scmp.eq.s32.totalorder %s70, 0
      %p552 = por %p550, %p551
      %p553 = scmp.ne.s32.totalorder %s545, %s547
      %p554 = scmp.eq.s32.totalorder %s75, 1
      %p555 = por %p553, %p554
      %p556 = scmp.ne.s32.totalorder %s547, %s548
      %p557 = scmp.eq.s32.totalorder %s75, 0
      %p558 = por %p556, %p557
      %p559 = scmp.ne.s32.totalorder %s547, %s548
      %p560 = scmp.eq.s32.totalorder %s76, 1
      %p561 = por %p559, %p560
      %p563 = scmp.ne.s32.totalorder %s548, %s562
      %p564 = scmp.eq.s32.totalorder %s76, 0
      %p565 = por %p563, %p564
      %s567 = sadd.s32 %s566, 1
      %p570 = scmp.eq.s32.totalorder %s70, 1
      %p571 = scmp.ne.s32.totalorder %s566, %s568
      %p572 = scmp.eq.s32.totalorder %s70, 0
      %p573 = por %p571, %p572
      %p574 = scmp.ne.s32.totalorder %s566, %s568
      %p575 = scmp.eq.s32.totalorder %s75, 1
      %p576 = por %p574, %p575
      %p577 = scmp.ne.s32.totalorder %s568, %s569
      %p578 = scmp.eq.s32.totalorder %s75, 0
      %p579 = por %p577, %p578
      %p580 = scmp.ne.s32.totalorder %s568, %s569
      %p581 = scmp.eq.s32.totalorder %s76, 1
      %p582 = por %p580, %p581
      %p584 = scmp.ne.s32.totalorder %s569, %s583
      %p585 = scmp.eq.s32.totalorder %s76, 0
      %p586 = por %p584, %p585
      %s588 = sadd.s32 %s587, 1
      %p591 = scmp.eq.s32.totalorder %s70, 1
      %p592 = scmp.ne.s32.totalorder %s587, %s589
      %p593 = scmp.eq.s32.totalorder %s70, 0
      %p594 = por %p592, %p593
      %p595 = scmp.ne.s32.totalorder %s587, %s589
      %p596 = scmp.eq.s32.totalorder %s75, 1
      %p597 = por %p595, %p596
      %p598 = scmp.ne.s32.totalorder %s589, %s590
      %p599 = scmp.eq.s32.totalorder %s75, 0
      %p600 = por %p598, %p599
      %p601 = scmp.ne.s32.totalorder %s589, %s590
      %p602 = scmp.eq.s32.totalorder %s76, 1
      %p603 = por %p601, %p602
      %p605 = scmp.ne.s32.totalorder %s590, %s604
      %p606 = scmp.eq.s32.totalorder %s76, 0
      %p607 = por %p605, %p606
      %s609 = sadd.s32 %s608, 1
      %p612 = scmp.eq.s32.totalorder %s70, 1
      %p613 = scmp.ne.s32.totalorder %s608, %s610
      %p614 = scmp.eq.s32.totalorder %s70, 0
      %p615 = por %p613, %p614
      %p616 = scmp.ne.s32.totalorder %s608, %s610
      %p617 = scmp.eq.s32.totalorder %s75, 1
      %p618 = por %p616, %p617
      %p619 = scmp.ne.s32.totalorder %s610, %s611
      %p620 = scmp.eq.s32.totalorder %s75, 0
      %p621 = por %p619, %p620
      %p622 = scmp.ne.s32.totalorder %s610, %s611
      %p623 = scmp.eq.s32.totalorder %s76, 1
      %p624 = por %p622, %p623
      %p626 = scmp.ne.s32.totalorder %s611, %s625
      %p627 = scmp.eq.s32.totalorder %s76, 0
      %p628 = por %p626, %p627
      %s630 = sadd.s32 %s629, 1
      %p633 = scmp.eq.s32.totalorder %s70, 1
      %p634 = scmp.ne.s32.totalorder %s629, %s631
      %p635 = scmp.eq.s32.totalorder %s70, 0
      %p636 = por %p634, %p635
      %p637 = scmp.ne.s32.totalorder %s629, %s631
      %p638 = scmp.eq.s32.totalorder %s75, 1
      %p639 = por %p637, %p638
      %p640 = scmp.ne.s32.totalorder %s631, %s632
      %p641 = scmp.eq.s32.totalorder %s75, 0
      %p642 = por %p640, %p641
      %p643 = scmp.ne.s32.totalorder %s631, %s632
      %p644 = scmp.eq.s32.totalorder %s76, 1
      %p645 = por %p643, %p644
      %p647 = scmp.ne.s32.totalorder %s632, %s646
      %p648 = scmp.eq.s32.totalorder %s76, 0
      %p649 = por %p647, %p648
      %s651 = sadd.s32 %s650, 1
      %p654 = scmp.eq.s32.totalorder %s70, 1
      %p655 = scmp.ne.s32.totalorder %s650, %s652
      %p656 = scmp.eq.s32.totalorder %s70, 0
      %p657 = por %p655, %p656
      %p658 = scmp.ne.s32.totalorder %s650, %s652
      %p659 = scmp.eq.s32.totalorder %s75, 1
      %p660 = por %p658, %p659
      %p661 = scmp.ne.s32.totalorder %s652, %s653
      %p662 = scmp.eq.s32.totalorder %s75, 0
      %p663 = por %p661, %p662
      %p664 = scmp.ne.s32.totalorder %s652, %s653
      %p665 = scmp.eq.s32.totalorder %s76, 1
      %p666 = por %p664, %p665
      %p668 = scmp.ne.s32.totalorder %s653, %s667
      %p669 = scmp.eq.s32.totalorder %s76, 0
      %p670 = por %p668, %p669
      %s672 = sadd.s32 %s671, 1
      %p675 = scmp.eq.s32.totalorder %s70, 1
      %p676 = scmp.ne.s32.totalorder %s671, %s673
      %p677 = scmp.eq.s32.totalorder %s70, 0
      %p678 = por %p676, %p677
      %p679 = scmp.ne.s32.totalorder %s671, %s673
      %p680 = scmp.eq.s32.totalorder %s75, 1
      %p681 = por %p679, %p680
      %p682 = scmp.ne.s32.totalorder %s673, %s674
      %p683 = scmp.eq.s32.totalorder %s75, 0
      %p684 = por %p682, %p683
      %p685 = scmp.ne.s32.totalorder %s673, %s674
      %p686 = scmp.eq.s32.totalorder %s76, 1
      %p687 = por %p685, %p686
      %p689 = scmp.ne.s32.totalorder %s674, %s688
      %p690 = scmp.eq.s32.totalorder %s76, 0
      %p691 = por %p689, %p690
      %s693 = sadd.s32 %s692, 1
      %p696 = scmp.eq.s32.totalorder %s70, 1
      %p697 = scmp.ne.s32.totalorder %s692, %s694
      %p698 = scmp.eq.s32.totalorder %s70, 0
      %p699 = por %p697, %p698
      %p700 = scmp.ne.s32.totalorder %s692, %s694
      %p701 = scmp.eq.s32.totalorder %s75, 1
      %p702 = por %p700, %p701
      %p703 = scmp.ne.s32.totalorder %s694, %s695
      %p704 = scmp.eq.s32.totalorder %s75, 0
      %p705 = por %p703, %p704
      %p706 = scmp.ne.s32.totalorder %s694, %s695
      %p707 = scmp.eq.s32.totalorder %s76, 1
      %p708 = por %p706, %p707
      %p710 = scmp.ne.s32.totalorder %s695, %s709
      %p711 = scmp.eq.s32.totalorder %s76, 0
      %p712 = por %p710, %p711
      %s713 = ssub.s32 %s70, %s77
      %p714 = scmp.eq.s32.totalorder %s713, 0
      %s716 = sadd.s32 %s715, 1
      %s717 = scalar_select %p714, %s715, %s716
      %p720 = pneg %p714
      %p721 = scmp.eq.s32.totalorder %s70, 1
      %p722 = por %p720, %p721
      %p723 = scmp.ne.s32.totalorder %s715, %s718
      %p724 = scmp.eq.s32.totalorder %s70, 0
      %p725 = por %p723, %p724
      %p726 = scmp.ne.s32.totalorder %s715, %s718
      %p727 = scmp.eq.s32.totalorder %s75, 1
      %p728 = por %p726, %p727
      %p729 = scmp.ne.s32.totalorder %s718, %s719
      %p730 = scmp.eq.s32.totalorder %s75, 0
      %p731 = por %p729, %p730
      %p732 = scmp.ne.s32.totalorder %s718, %s719
      %p733 = scmp.eq.s32.totalorder %s76, 1
      %p734 = por %p732, %p733
      %p736 = scmp.ne.s32.totalorder %s719, %s735
      %p737 = scmp.eq.s32.totalorder %s76, 0
      %p738 = por %p736, %p737
      %p739 = scmp.le.s32.totalorder 1, %s70
      %p740 = scmp.lt.s32.totalorder %s70, 3
      %p741 = pnand %p739, %p740
      %p742 = pneg %p741
      // Predicated region
      $region9: #{temporal_conv_net.1} parent=5 // pred_check
        _
      $region10: #{temporal_conv_net.1} parent=5 // pred_check_branch
        %744 = sbr.rel (%p741) target = $region12
      $region11: #{temporal_conv_net.1} parent=5 // pred_region
        %s745 = ssub.s32 %s70, 1
        // Predicated region
        $region13: #{temporal_conv_net.1} parent=11 // pred_check
          %p746 = pneg %p117
        $region14: #{temporal_conv_net.1} parent=11 // pred_check_branch
          %748 = sbr.rel (%p746) target = $region16
        $region15: #{temporal_conv_net.1} parent=11 // pred_region
          _
        $region16: #{temporal_conv_net.1} parent=11 // pred_fallthru
          _
        // Predicated region
        $region17: #{temporal_conv_net.1} parent=11 // pred_check
          %p749 = pneg %p138
        $region18: #{temporal_conv_net.1} parent=11 // pred_check_branch
          %751 = sbr.rel (%p749) target = $region20
        $region19: #{temporal_conv_net.1} parent=11 // pred_region
          _
        $region20: #{temporal_conv_net.1} parent=11 // pred_fallthru
          _
        // Predicated region
        $region21: #{temporal_conv_net.1} parent=11 // pred_check
          %p752 = pneg %p159
        $region22: #{temporal_conv_net.1} parent=11 // pred_check_branch
          %754 = sbr.rel (%p752) target = $region24
        $region23: #{temporal_conv_net.1} parent=11 // pred_region
          _
        $region24: #{temporal_conv_net.1} parent=11 // pred_fallthru
          _
        // Predicated region
        $region25: #{temporal_conv_net.1} parent=11 // pred_check
          %p755 = pneg %p180
        $region26: #{temporal_conv_net.1} parent=11 // pred_check_branch
          %757 = sbr.rel (%p755) target = $region28
        $region27: #{temporal_conv_net.1} parent=11 // pred_region
          _
        $region28: #{temporal_conv_net.1} parent=11 // pred_fallthru
          _
        // Predicated region
        $region29: #{temporal_conv_net.1} parent=11 // pred_check
          %p758 = pneg %p201
        $region30: #{temporal_conv_net.1} parent=11 // pred_check_branch
          %760 = sbr.rel (%p758) target = $region32
        $region31: #{temporal_conv_net.1} parent=11 // pred_region
          _
        $region32: #{temporal_conv_net.1} parent=11 // pred_fallthru
          _
        // Predicated region
        $region33: #{temporal_conv_net.1} parent=11 // pred_check
          %p761 = pneg %p222
        $region34: #{temporal_conv_net.1} parent=11 // pred_check_branch
          %763 = sbr.rel (%p761) target = $region36
        $region35: #{temporal_conv_net.1} parent=11 // pred_region
          _
        $region36: #{temporal_conv_net.1} parent=11 // pred_fallthru
          _
        // Predicated region
        $region37: #{temporal_conv_net.1} parent=11 // pred_check
          %p764 = pneg %p243
        $region38: #{temporal_conv_net.1} parent=11 // pred_check_branch
          %766 = sbr.rel (%p764) target = $region40
        $region39: #{temporal_conv_net.1} parent=11 // pred_region
          _
        $region40: #{temporal_conv_net.1} parent=11 // pred_fallthru
          _
        // Predicated region
        $region41: #{temporal_conv_net.1} parent=11 // pred_check
          %p767 = pneg %p264
        $region42: #{temporal_conv_net.1} parent=11 // pred_check_branch
          %769 = sbr.rel (%p767) target = $region44
        $region43: #{temporal_conv_net.1} parent=11 // pred_region
          _
        $region44: #{temporal_conv_net.1} parent=11 // pred_fallthru
          _
        // Predicated region
        $region45: #{temporal_conv_net.1} parent=11 // pred_check
          %p770 = pneg %p285
        $region46: #{temporal_conv_net.1} parent=11 // pred_check_branch
          %772 = sbr.rel (%p770) target = $region48
        $region47: #{temporal_conv_net.1} parent=11 // pred_region
          _
        $region48: #{temporal_conv_net.1} parent=11 // pred_fallthru
          _
        // Predicated region
        $region49: #{temporal_conv_net.1} parent=11 // pred_check
          %p773 = pneg %p306
        $region50: #{temporal_conv_net.1} parent=11 // pred_check_branch
          %775 = sbr.rel (%p773) target = $region52
        $region51: #{temporal_conv_net.1} parent=11 // pred_region
          _
        $region52: #{temporal_conv_net.1} parent=11 // pred_fallthru
          _
        // Predicated region
        $region53: #{temporal_conv_net.1} parent=11 // pred_check
          %p776 = pneg %p327
        $region54: #{temporal_conv_net.1} parent=11 // pred_check_branch
          %778 = sbr.rel (%p776) target = $region56
        $region55: #{temporal_conv_net.1} parent=11 // pred_region
          _
        $region56: #{temporal_conv_net.1} parent=11 // pred_fallthru
          _
        // Predicated region
        $region57: #{temporal_conv_net.1} parent=11 // pred_check
          %p779 = pneg %p348
        $region58: #{temporal_conv_net.1} parent=11 // pred_check_branch
          %781 = sbr.rel (%p779) target = $region60
        $region59: #{temporal_conv_net.1} parent=11 // pred_region
          _
        $region60: #{temporal_conv_net.1} parent=11 // pred_fallthru
          _
        // Predicated region
        $region61: #{temporal_conv_net.1} parent=11 // pred_check
          %p782 = pneg %p369
        $region62: #{temporal_conv_net.1} parent=11 // pred_check_branch
          %784 = sbr.rel (%p782) target = $region64
        $region63: #{temporal_conv_net.1} parent=11 // pred_region
          _
        $region64: #{temporal_conv_net.1} parent=11 // pred_fallthru
          _
        // Predicated region
        $region65: #{temporal_conv_net.1} parent=11 // pred_check
          %p785 = pneg %p390
        $region66: #{temporal_conv_net.1} parent=11 // pred_check_branch
          %787 = sbr.rel (%p785) target = $region68
        $region67: #{temporal_conv_net.1} parent=11 // pred_region
          _
        $region68: #{temporal_conv_net.1} parent=11 // pred_fallthru
          _
        // Predicated region
        $region69: #{temporal_conv_net.1} parent=11 // pred_check
          %p788 = pneg %p411
        $region70: #{temporal_conv_net.1} parent=11 // pred_check_branch
          %790 = sbr.rel (%p788) target = $region72
        $region71: #{temporal_conv_net.1} parent=11 // pred_region
          _
        $region72: #{temporal_conv_net.1} parent=11 // pred_fallthru
          _
        // Predicated region
        $region73: #{temporal_conv_net.1} parent=11 // pred_check
          %p791 = pneg %p432
        $region74: #{temporal_conv_net.1} parent=11 // pred_check_branch
          %793 = sbr.rel (%p791) target = $region76
        $region75: #{temporal_conv_net.1} parent=11 // pred_region
          _
        $region76: #{temporal_conv_net.1} parent=11 // pred_fallthru
          _
        // Predicated region
        $region77: #{temporal_conv_net.1} parent=11 // pred_check
          %p794 = pneg %p453
        $region78: #{temporal_conv_net.1} parent=11 // pred_check_branch
          %796 = sbr.rel (%p794) target = $region80
        $region79: #{temporal_conv_net.1} parent=11 // pred_region
          _
        $region80: #{temporal_conv_net.1} parent=11 // pred_fallthru
          _
        // Predicated region
        $region81: #{temporal_conv_net.1} parent=11 // pred_check
          %p797 = pneg %p474
        $region82: #{temporal_conv_net.1} parent=11 // pred_check_branch
          %799 = sbr.rel (%p797) target = $region84
        $region83: #{temporal_conv_net.1} parent=11 // pred_region
          _
        $region84: #{temporal_conv_net.1} parent=11 // pred_fallthru
          _
        // Predicated region
        $region85: #{temporal_conv_net.1} parent=11 // pred_check
          %p800 = pneg %p495
        $region86: #{temporal_conv_net.1} parent=11 // pred_check_branch
          %802 = sbr.rel (%p800) target = $region88
        $region87: #{temporal_conv_net.1} parent=11 // pred_region
          _
        $region88: #{temporal_conv_net.1} parent=11 // pred_fallthru
          _
        // Predicated region
        $region89: #{temporal_conv_net.1} parent=11 // pred_check
          %p803 = pneg %p516
        $region90: #{temporal_conv_net.1} parent=11 // pred_check_branch
          %805 = sbr.rel (%p803) target = $region92
        $region91: #{temporal_conv_net.1} parent=11 // pred_region
          _
        $region92: #{temporal_conv_net.1} parent=11 // pred_fallthru
          _
        // Predicated region
        $region93: #{temporal_conv_net.1} parent=11 // pred_check
          %p806 = pneg %p537
        $region94: #{temporal_conv_net.1} parent=11 // pred_check_branch
          %808 = sbr.rel (%p806) target = $region96
        $region95: #{temporal_conv_net.1} parent=11 // pred_region
          _
        $region96: #{temporal_conv_net.1} parent=11 // pred_fallthru
          _
        // Predicated region
        $region97: #{temporal_conv_net.1} parent=11 // pred_check
          %p809 = pneg %p558
        $region98: #{temporal_conv_net.1} parent=11 // pred_check_branch
          %811 = sbr.rel (%p809) target = $region100
        $region99: #{temporal_conv_net.1} parent=11 // pred_region
          _
        $region100: #{temporal_conv_net.1} parent=11 // pred_fallthru
          _
        // Predicated region
        $region101: #{temporal_conv_net.1} parent=11 // pred_check
          %p812 = pneg %p579
        $region102: #{temporal_conv_net.1} parent=11 // pred_check_branch
          %814 = sbr.rel (%p812) target = $region104
        $region103: #{temporal_conv_net.1} parent=11 // pred_region
          _
        $region104: #{temporal_conv_net.1} parent=11 // pred_fallthru
          _
        // Predicated region
        $region105: #{temporal_conv_net.1} parent=11 // pred_check
          %p815 = pneg %p600
        $region106: #{temporal_conv_net.1} parent=11 // pred_check_branch
          %817 = sbr.rel (%p815) target = $region108
        $region107: #{temporal_conv_net.1} parent=11 // pred_region
          _
        $region108: #{temporal_conv_net.1} parent=11 // pred_fallthru
          _
        // Predicated region
        $region109: #{temporal_conv_net.1} parent=11 // pred_check
          %p818 = pneg %p621
        $region110: #{temporal_conv_net.1} parent=11 // pred_check_branch
          %820 = sbr.rel (%p818) target = $region112
        $region111: #{temporal_conv_net.1} parent=11 // pred_region
          _
        $region112: #{temporal_conv_net.1} parent=11 // pred_fallthru
          _
        // Predicated region
        $region113: #{temporal_conv_net.1} parent=11 // pred_check
          %p821 = pneg %p642
        $region114: #{temporal_conv_net.1} parent=11 // pred_check_branch
          %823 = sbr.rel (%p821) target = $region116
        $region115: #{temporal_conv_net.1} parent=11 // pred_region
          _
        $region116: #{temporal_conv_net.1} parent=11 // pred_fallthru
          _
        // Predicated region
        $region117: #{temporal_conv_net.1} parent=11 // pred_check
          %p824 = pneg %p663
        $region118: #{temporal_conv_net.1} parent=11 // pred_check_branch
          %826 = sbr.rel (%p824) target = $region120
        $region119: #{temporal_conv_net.1} parent=11 // pred_region
          _
        $region120: #{temporal_conv_net.1} parent=11 // pred_fallthru
          _
        // Predicated region
        $region121: #{temporal_conv_net.1} parent=11 // pred_check
          %p827 = pneg %p684
        $region122: #{temporal_conv_net.1} parent=11 // pred_check_branch
          %829 = sbr.rel (%p827) target = $region124
        $region123: #{temporal_conv_net.1} parent=11 // pred_region
          _
        $region124: #{temporal_conv_net.1} parent=11 // pred_fallthru
          _
        // Predicated region
        $region125: #{temporal_conv_net.1} parent=11 // pred_check
          %p830 = pneg %p705
        $region126: #{temporal_conv_net.1} parent=11 // pred_check_branch
          %832 = sbr.rel (%p830) target = $region128
        $region127: #{temporal_conv_net.1} parent=11 // pred_region
          _
        $region128: #{temporal_conv_net.1} parent=11 // pred_fallthru
          _
      $region12: #{temporal_conv_net.1} parent=5 // pred_fallthru
        _
      %p833 = scmp.lt.s32.totalorder %s70, 2
      // Predicated region
      $region129: #{temporal_conv_net.1} parent=5 // pred_check
        %p834 = pneg %p833
      $region130: #{temporal_conv_net.1} parent=5 // pred_check_branch
        %836 = sbr.rel (%p834) target = $region132
      $region131: #{temporal_conv_net.1} parent=5 // pred_region
        // Predicated region
        $region133: #{temporal_conv_net.1} parent=131 // pred_check
          %p837 = pneg %p90
        $region134: #{temporal_conv_net.1} parent=131 // pred_check_branch
          %839 = sbr.rel (%p837) target = $region136
        $region135: #{temporal_conv_net.1} parent=131 // pred_region
          %p840 = scmp.lt.s32.totalorder %s70, 1
          %s841 = scalar_select %p840, %s70, 1
          %s842 = smul.addr %s841, 2
          %s843 = smul.addr %s842, 8
          %s844 = scalar_lea.vmem %s1, %s843
        $region136: #{temporal_conv_net.1} parent=131 // pred_fallthru
          _
      $region132: #{temporal_conv_net.1} parent=5 // pred_fallthru
        _
      %p845 = scmp.le.s32.totalorder 1, %s70
      %p846 = scmp.lt.s32.totalorder %s70, 3
      %p847 = pnand %p845, %p846
      %p848 = pneg %p847
      // Predicated region
      $region137: #{temporal_conv_net.1} parent=5 // pred_check
        _
      $region138: #{temporal_conv_net.1} parent=5 // pred_check_branch
        %850 = sbr.rel (%p847) target = $region140
      $region139: #{temporal_conv_net.1} parent=5 // pred_region
        %s851 = ssub.s32 %s70, 1
        %p852 = scmp.lt.s32.totalorder %s75, 1
        %s853 = scalar_select %p852, %s75, 1
        %s854 = smul.addr %s853, 2
        %s855 = smul.addr %s854, 8
        %s856 = scalar_lea.vmem %s1, %s855
        %p857 = pneg %p96
        %p858 = pneg %p93
        %p859 = pneg %p117
        %p860 = pneg %p114
        %p861 = pneg %p138
        %p862 = pneg %p135
        %p863 = pneg %p159
        %p864 = pneg %p156
        %p865 = pneg %p180
        %p866 = pneg %p177
        %p867 = pneg %p201
        %p868 = pneg %p198
        %p869 = pneg %p222
        %p870 = pneg %p219
        %p871 = pneg %p243
        %p872 = pneg %p240
        %p873 = pneg %p264
        %p874 = pneg %p261
        %p875 = pneg %p285
        %p876 = pneg %p282
        %p877 = pneg %p306
        %p878 = pneg %p303
        %p879 = pneg %p327
        %p880 = pneg %p324
        %p881 = pneg %p348
        %p882 = pneg %p345
        %p883 = pneg %p369
        %p884 = pneg %p366
        %p885 = pneg %p390
        %p886 = pneg %p387
        %p887 = pneg %p411
        %p888 = pneg %p408
        %p889 = pneg %p432
        %p890 = pneg %p429
        %p891 = pneg %p453
        %p892 = pneg %p450
        %p893 = pneg %p474
        %p894 = pneg %p471
        %p895 = pneg %p495
        %p896 = pneg %p492
        %p897 = pneg %p516
        %p898 = pneg %p513
        %p899 = pneg %p537
        %p900 = pneg %p534
        %p901 = pneg %p558
        %p902 = pneg %p555
        %p903 = pneg %p579
        %p904 = pneg %p576
        %p905 = pneg %p600
        %p906 = pneg %p597
        %p907 = pneg %p621
        %p908 = pneg %p618
        %p909 = pneg %p642
        %p910 = pneg %p639
        %p911 = pneg %p663
        %p912 = pneg %p660
        %p913 = pneg %p684
        %p914 = pneg %p681
        %p915 = pneg %p705
        %p916 = pneg %p702
        %p917 = pneg %p731
        %p918 = pneg %p728
        %s919 = sand.u32 %s718, 1
        %s920 = scalar_lea.sflag [#allocation3], %s919
        %s921 = sand.u32 %s718, 1
        %s922 = smul.addr %s921, 16
        %s923 = scalar_lea.vmem [#allocation2], %s922
        %p924 = scmp.lt.s32.totalorder %s75, 1
        %s925 = scalar_select %p924, %s75, 1
        %s926 = smul.addr %s925, 2
        %s927 = smul.addr %s926, 8
        %s928 = scalar_lea.vmem %s1, %s927
        %v929 = vld [vmem:[%s928] sm:$0xff]
        %v930 = vld [vmem:[%s928 + $0x8] sm:$0xff]
        %vm931 = vcmp.ne.f32.partialorder %v929, %v929
        %vm932 = vcmp.ne.f32.partialorder %v930, %v930
        %v933 = vsel %vm931, 0.0, %v929
        %v934 = vsel %vm932, 0.0, %v930
        %vm935 = vcmp.eq.f32.partialorder %v933, inf
        %vm936 = vcmp.eq.f32.partialorder %v934, inf
        %v937 = vsel %vm935, 1.0, %v933
        %v938 = vsel %vm936, 1.0, %v934
        %vm939 = vcmp.eq.f32.partialorder %v937, -inf
        %vm940 = vcmp.eq.f32.partialorder %v938, -inf
        %v941 = vsel %vm939, -1.0, %v937
        %v942 = vsel %vm940, -1.0, %v938
        %s943 = scalar_lea.vmem %s5, 16
        %v944 = vld [vmem:[%s943] sm:$0xff]
        %s945 = scalar_lea.vmem %s3, 16
        %v946 = vld [vmem:[%s945] sm:$0xff]
        %v947 = vld [vmem:[%s945 + $0x8] sm:$0xff]
        %vm948 = vcmask 130048
        %v950 = vsel %vm948, %v946, 0
        %v953 = vsel %vm948, %v947, 0
        %955 = vmatprep.subr.mxu0 0.0
        %956 = vmatpush1.msra.mxu0 %v941
        %957 = vmatprep.subr.mxu0 0.0
        %958 = vmatpush1.msra.mxu0 %v942
        %959 = vmatprep.subr.mxu0 0.0
        %960 = vmatpush1.msra.mxu0 0.0
        %961 = vmatprep.subr.mxu0 0.0
        %962 = vmatpush1.msra.mxu0 0.0
        %963 = vmatprep.subr.mxu0 0.0
        %964 = vmatpush1.msra.mxu0 0.0
        %965 = vmatprep.subr.mxu0 0.0
        %966 = vmatpush1.msra.mxu0 0.0
        %967 = vmatprep.subr.mxu0 0.0
        %968 = vmatpush1.msra.mxu0 0.0
        %969 = vmatprep.subr.mxu0 0.0
        %970 = vmatpush1.msra.mxu0 0.0
        %971 = vmatprep.subr.mxu0 0.0
        %972 = vmatpush1.msra.mxu0 0.0
        %973 = vmatprep.subr.mxu0 0.0
        %974 = vmatpush1.msra.mxu0 0.0
        %975 = vmatprep.subr.mxu0 0.0
        %976 = vmatpush1.msra.mxu0 0.0
        %977 = vmatprep.subr.mxu0 0.0
        %978 = vmatpush1.msra.mxu0 0.0
        %979 = vmatprep.subr.mxu0 0.0
        %980 = vmatpush1.msra.mxu0 0.0
        %981 = vmatprep.subr.mxu0 0.0
        %982 = vmatpush1.msra.mxu0 0.0
        %983 = vmatprep.subr.mxu0 0.0
        %984 = vmatpush1.msra.mxu0 0.0
        %985 = vmatprep.subr.mxu0 0.0
        %986 = vmatpush1.msra.mxu0 0.0
        %987 = vmatprep.subr.mxu0 0.0
        %988 = vmatpush1.msra.mxu0 0.0
        %989 = vmatprep.subr.mxu0 0.0
        %990 = vmatpush1.msra.mxu0 0.0
        %991 = vmatprep.subr.mxu0 0.0
        %992 = vmatpush1.msra.mxu0 0.0
        %993 = vmatprep.subr.mxu0 0.0
        %994 = vmatpush1.msra.mxu0 0.0
        %995 = vmatprep.subr.mxu0 0.0
        %996 = vmatpush1.msra.mxu0 0.0
        %997 = vmatprep.subr.mxu0 0.0
        %998 = vmatpush1.msra.mxu0 0.0
        %999 = vmatprep.subr.mxu0 0.0
        %1000 = vmatpush1.msra.mxu0 0.0
        %1001 = vmatprep.subr.mxu0 0.0
        %1002 = vmatpush1.msra.mxu0 0.0
        %1003 = vmatprep.subr.mxu0 0.0
        %1004 = vmatpush1.msra.mxu0 0.0
        %1005 = vmatprep.subr.mxu0 0.0
        %1006 = vmatpush1.msra.mxu0 0.0
        %1007 = vmatprep.subr.mxu0 0.0
        %1008 = vmatpush1.msra.mxu0 0.0
        %1009 = vmatprep.subr.mxu0 0.0
        %1010 = vmatpush1.msra.mxu0 0.0
        %1011 = vmatprep.subr.mxu0 0.0
        %1012 = vmatpush1.msra.mxu0 0.0
        %1013 = vmatprep.subr.mxu0 0.0
        %1014 = vmatpush1.msra.mxu0 0.0
        %1015 = vmatprep.subr.mxu0 0.0
        %1016 = vmatpush1.msra.mxu0 0.0
        %1017 = vmatprep.subr.mxu0 0.0
        %1018 = vmatpush1.msra.mxu0 0.0
        %1019 = vmatprep.mubr.f32.mxu0 0.0
        %1020 = vmatmul.mubr.f32.gmra.mrb[0].mxu0 %v950
        %v1021 = vpop.f32.mrb[0].mxu0
        %v1022 = vadd.f32 0.0, %v1021
        %v1023 = vpop.f32.mrb[0].mxu0
        %1024 = vmatprep.mubr.f32.mxu0 0.0
        %1025 = vmatmul.mubr.f32.gmra.mrb[0].mxu0 %v953
        %v1026 = vpop.f32.mrb[0].mxu0
        %v1027 = vadd.f32 0.0, %v1026
        %v1028 = vpop.f32.mrb[0].mxu0
        %1029 = vdwg.mxu0
        %v1030 = vld [vmem:[%s5] sm:$0xff]
        %vm1031 = vcmask 64512
        %v1033 = vsel %vm1031, %v1022, 0
        %v1036 = vsel %vm1031, %v1027, 0
        %1038 = vmatprep.subr.mxu0 0.0
        %1039 = vmatpush1.msra.mxu0 %v1030
        %1040 = vmatprep.subr.mxu0 0.0
        %1041 = vmatpush1.msra.mxu0 0.0
        %1042 = vmatprep.subr.mxu0 0.0
        %1043 = vmatpush1.msra.mxu0 0.0
        %1044 = vmatprep.subr.mxu0 0.0
        %1045 = vmatpush1.msra.mxu0 0.0
        %1046 = vmatprep.subr.mxu0 0.0
        %1047 = vmatpush1.msra.mxu0 0.0
        %1048 = vmatprep.subr.mxu0 0.0
        %1049 = vmatpush1.msra.mxu0 0.0
        %1050 = vmatprep.subr.mxu0 0.0
        %1051 = vmatpush1.msra.mxu0 0.0
        %1052 = vmatprep.subr.mxu0 0.0
        %1053 = vmatpush1.msra.mxu0 0.0
        %1054 = vmatprep.subr.mxu0 0.0
        %1055 = vmatpush1.msra.mxu0 0.0
        %1056 = vmatprep.subr.mxu0 0.0
        %1057 = vmatpush1.msra.mxu0 0.0
        %1058 = vmatprep.subr.mxu0 0.0
        %1059 = vmatpush1.msra.mxu0 0.0
        %1060 = vmatprep.subr.mxu0 0.0
        %1061 = vmatpush1.msra.mxu0 0.0
        %1062 = vmatprep.subr.mxu0 0.0
        %1063 = vmatpush1.msra.mxu0 0.0
        %1064 = vmatprep.subr.mxu0 0.0
        %1065 = vmatpush1.msra.mxu0 0.0
        %1066 = vmatprep.subr.mxu0 0.0
        %1067 = vmatpush1.msra.mxu0 0.0
        %1068 = vmatprep.subr.mxu0 0.0
        %1069 = vmatpush1.msra.mxu0 0.0
        %1070 = vmatprep.subr.mxu0 0.0
        %1071 = vmatpush1.msra.mxu0 0.0
        %1072 = vmatprep.subr.mxu0 0.0
        %1073 = vmatpush1.msra.mxu0 0.0
        %1074 = vmatprep.subr.mxu0 0.0
        %1075 = vmatpush1.msra.mxu0 0.0
        %1076 = vmatprep.subr.mxu0 0.0
        %1077 = vmatpush1.msra.mxu0 0.0
        %1078 = vmatprep.subr.mxu0 0.0
        %1079 = vmatpush1.msra.mxu0 0.0
        %1080 = vmatprep.subr.mxu0 0.0
        %1081 = vmatpush1.msra.mxu0 0.0
        %1082 = vmatprep.subr.mxu0 0.0
        %1083 = vmatpush1.msra.mxu0 0.0
        %1084 = vmatprep.subr.mxu0 0.0
        %1085 = vmatpush1.msra.mxu0 0.0
        %1086 = vmatprep.subr.mxu0 0.0
        %1087 = vmatpush1.msra.mxu0 0.0
        %1088 = vmatprep.subr.mxu0 0.0
        %1089 = vmatpush1.msra.mxu0 0.0
        %1090 = vmatprep.subr.mxu0 0.0
        %1091 = vmatpush1.msra.mxu0 0.0
        %1092 = vmatprep.subr.mxu0 0.0
        %1093 = vmatpush1.msra.mxu0 0.0
        %1094 = vmatprep.subr.mxu0 0.0
        %1095 = vmatpush1.msra.mxu0 0.0
        %1096 = vmatprep.subr.mxu0 0.0
        %1097 = vmatpush1.msra.mxu0 0.0
        %1098 = vmatprep.subr.mxu0 0.0
        %1099 = vmatpush1.msra.mxu0 0.0
        %1100 = vmatprep.subr.mxu0 0.0
        %1101 = vmatpush1.msra.mxu0 0.0
        %1102 = vmatprep.mubr.f32.mxu0 0.0
        %1103 = vmatmul.mubr.f32.gmra.mrb[0].mxu0 %v1033
        %v1104 = vpop.f32.mrb[0].mxu0
        %v1105 = vadd.f32 0.0, %v1104
        %v1106 = vpop.f32.mrb[0].mxu0
        %1107 = vmatprep.mubr.f32.mxu0 0.0
        %1108 = vmatmul.mubr.f32.gmra.mrb[0].mxu0 %v1036
        %v1109 = vpop.f32.mrb[0].mxu0
        %v1110 = vadd.f32 0.0, %v1109
        %v1111 = vpop.f32.mrb[0].mxu0
        %1112 = vdwg.mxu0
        %v1114 = vsel %vm1031, %v941, 0
        %v1117 = vsel %vm1031, %v942, 0
        %1119 = vmatprep.subr.mxu0 0.0
        %1120 = vmatpush1.msra.mxu0 %v944
        %1121 = vmatprep.subr.mxu0 0.0
        %1122 = vmatpush1.msra.mxu0 0.0
        %1123 = vmatprep.subr.mxu0 0.0
        %1124 = vmatpush1.msra.mxu0 0.0
        %1125 = vmatprep.subr.mxu0 0.0
        %1126 = vmatpush1.msra.mxu0 0.0
        %1127 = vmatprep.subr.mxu0 0.0
        %1128 = vmatpush1.msra.mxu0 0.0
        %1129 = vmatprep.subr.mxu0 0.0
        %1130 = vmatpush1.msra.mxu0 0.0
        %1131 = vmatprep.subr.mxu0 0.0
        %1132 = vmatpush1.msra.mxu0 0.0
        %1133 = vmatprep.subr.mxu0 0.0
        %1134 = vmatpush1.msra.mxu0 0.0
        %1135 = vmatprep.subr.mxu0 0.0
        %1136 = vmatpush1.msra.mxu0 0.0
        %1137 = vmatprep.subr.mxu0 0.0
        %1138 = vmatpush1.msra.mxu0 0.0
        %1139 = vmatprep.subr.mxu0 0.0
        %1140 = vmatpush1.msra.mxu0 0.0
        %1141 = vmatprep.subr.mxu0 0.0
        %1142 = vmatpush1.msra.mxu0 0.0
        %1143 = vmatprep.subr.mxu0 0.0
        %1144 = vmatpush1.msra.mxu0 0.0
        %1145 = vmatprep.subr.mxu0 0.0
        %1146 = vmatpush1.msra.mxu0 0.0
        %1147 = vmatprep.subr.mxu0 0.0
        %1148 = vmatpush1.msra.mxu0 0.0
        %1149 = vmatprep.subr.mxu0 0.0
        %1150 = vmatpush1.msra.mxu0 0.0
        %1151 = vmatprep.subr.mxu0 0.0
        %1152 = vmatpush1.msra.mxu0 0.0
        %1153 = vmatprep.subr.mxu0 0.0
        %1154 = vmatpush1.msra.mxu0 0.0
        %1155 = vmatprep.subr.mxu0 0.0
        %1156 = vmatpush1.msra.mxu0 0.0
        %1157 = vmatprep.subr.mxu0 0.0
        %1158 = vmatpush1.msra.mxu0 0.0
        %1159 = vmatprep.subr.mxu0 0.0
        %1160 = vmatpush1.msra.mxu0 0.0
        %1161 = vmatprep.subr.mxu0 0.0
        %1162 = vmatpush1.msra.mxu0 0.0
        %1163 = vmatprep.subr.mxu0 0.0
        %1164 = vmatpush1.msra.mxu0 0.0
        %1165 = vmatprep.subr.mxu0 0.0
        %1166 = vmatpush1.msra.mxu0 0.0
        %1167 = vmatprep.subr.mxu0 0.0
        %1168 = vmatpush1.msra.mxu0 0.0
        %1169 = vmatprep.subr.mxu0 0.0
        %1170 = vmatpush1.msra.mxu0 0.0
        %1171 = vmatprep.subr.mxu0 0.0
        %1172 = vmatpush1.msra.mxu0 0.0
        %1173 = vmatprep.subr.mxu0 0.0
        %1174 = vmatpush1.msra.mxu0 0.0
        %1175 = vmatprep.subr.mxu0 0.0
        %1176 = vmatpush1.msra.mxu0 0.0
        %1177 = vmatprep.subr.mxu0 0.0
        %1178 = vmatpush1.msra.mxu0 0.0
        %1179 = vmatprep.subr.mxu0 0.0
        %1180 = vmatpush1.msra.mxu0 0.0
        %1181 = vmatprep.subr.mxu0 0.0
        %1182 = vmatpush1.msra.mxu0 0.0
        %1183 = vmatprep.mubr.f32.mxu0 0.0
        %1184 = vmatmul.mubr.f32.gmra.mrb[0].mxu0 %v1114
        %v1185 = vpop.f32.mrb[0].mxu0
        %v1186 = vadd.f32 %v1105, %v1185
        %v1187 = vpop.f32.mrb[0].mxu0
        %1188 = vmatprep.mubr.f32.mxu0 0.0
        %1189 = vmatmul.mubr.f32.gmra.mrb[0].mxu0 %v1117
        %v1190 = vpop.f32.mrb[0].mxu0
        %v1191 = vadd.f32 %v1110, %v1190
        %v1192 = vpop.f32.mrb[0].mxu0
        %1193 = vdwg.mxu0
        %v1194 = vld [vmem:[%s3] sm:$0xff]
        %v1195 = vld [vmem:[%s3 + $0x8] sm:$0xff]
        %v1197 = vsel %vm948, %v1194, 0
        %v1200 = vsel %vm948, %v1195, 0
        %1202 = vmatprep.subr.mxu0 0.0
        %1203 = vmatpush1.msra.mxu0 %v941
        %1204 = vmatprep.subr.mxu0 0.0
        %1205 = vmatpush1.msra.mxu0 %v942
        %1206 = vmatprep.subr.mxu0 0.0
        %1207 = vmatpush1.msra.mxu0 0.0
        %1208 = vmatprep.subr.mxu0 0.0
        %1209 = vmatpush1.msra.mxu0 0.0
        %1210 = vmatprep.subr.mxu0 0.0
        %1211 = vmatpush1.msra.mxu0 0.0
        %1212 = vmatprep.subr.mxu0 0.0
        %1213 = vmatpush1.msra.mxu0 0.0
        %1214 = vmatprep.subr.mxu0 0.0
        %1215 = vmatpush1.msra.mxu0 0.0
        %1216 = vmatprep.subr.mxu0 0.0
        %1217 = vmatpush1.msra.mxu0 0.0
        %1218 = vmatprep.subr.mxu0 0.0
        %1219 = vmatpush1.msra.mxu0 0.0
        %1220 = vmatprep.subr.mxu0 0.0
        %1221 = vmatpush1.msra.mxu0 0.0
        %1222 = vmatprep.subr.mxu0 0.0
        %1223 = vmatpush1.msra.mxu0 0.0
        %1224 = vmatprep.subr.mxu0 0.0
        %1225 = vmatpush1.msra.mxu0 0.0
        %1226 = vmatprep.subr.mxu0 0.0
        %1227 = vmatpush1.msra.mxu0 0.0
        %1228 = vmatprep.subr.mxu0 0.0
        %1229 = vmatpush1.msra.mxu0 0.0
        %1230 = vmatprep.subr.mxu0 0.0
        %1231 = vmatpush1.msra.mxu0 0.0
        %1232 = vmatprep.subr.mxu0 0.0
        %1233 = vmatpush1.msra.mxu0 0.0
        %1234 = vmatprep.subr.mxu0 0.0
        %1235 = vmatpush1.msra.mxu0 0.0
        %1236 = vmatprep.subr.mxu0 0.0
        %1237 = vmatpush1.msra.mxu0 0.0
        %1238 = vmatprep.subr.mxu0 0.0
        %1239 = vmatpush1.msra.mxu0 0.0
        %1240 = vmatprep.subr.mxu0 0.0
        %1241 = vmatpush1.msra.mxu0 0.0
        %1242 = vmatprep.subr.mxu0 0.0
        %1243 = vmatpush1.msra.mxu0 0.0
        %1244 = vmatprep.subr.mxu0 0.0
        %1245 = vmatpush1.msra.mxu0 0.0
        %1246 = vmatprep.subr.mxu0 0.0
        %1247 = vmatpush1.msra.mxu0 0.0
        %1248 = vmatprep.subr.mxu0 0.0
        %1249 = vmatpush1.msra.mxu0 0.0
        %1250 = vmatprep.subr.mxu0 0.0
        %1251 = vmatpush1.msra.mxu0 0.0
        %1252 = vmatprep.subr.mxu0 0.0
        %1253 = vmatpush1.msra.mxu0 0.0
        %1254 = vmatprep.subr.mxu0 0.0
        %1255 = vmatpush1.msra.mxu0 0.0
        %1256 = vmatprep.subr.mxu0 0.0
        %1257 = vmatpush1.msra.mxu0 0.0
        %1258 = vmatprep.subr.mxu0 0.0
        %1259 = vmatpush1.msra.mxu0 0.0
        %1260 = vmatprep.subr.mxu0 0.0
        %1261 = vmatpush1.msra.mxu0 0.0
        %1262 = vmatprep.subr.mxu0 0.0
        %1263 = vmatpush1.msra.mxu0 0.0
        %1264 = vmatprep.subr.mxu0 0.0
        %1265 = vmatpush1.msra.mxu0 0.0
        %1266 = vmatprep.mubr.f32.mxu0 0.0
        %1267 = vmatmul.mubr.f32.gmra.mrb[0].mxu0 %v1197
        %v1268 = vpop.f32.mrb[0].mxu0
        %v1269 = vadd.f32 0.0, %v1268
        %v1270 = vpop.f32.mrb[0].mxu0
        %1271 = vmatprep.mubr.f32.mxu0 0.0
        %1272 = vmatmul.mubr.f32.gmra.mrb[0].mxu0 %v1200
        %v1273 = vpop.f32.mrb[0].mxu0
        %v1274 = vadd.f32 0.0, %v1273
        %v1275 = vpop.f32.mrb[0].mxu0
        %1276 = vdwg.mxu0
        %s1277 = scalar_lea.vmem %s5, 8
        %v1278 = vld [vmem:[%s1277] sm:$0xff]
        %v1280 = vsel %vm1031, %v1269, 0
        %v1283 = vsel %vm1031, %v1274, 0
        %1285 = vmatprep.subr.mxu0 0.0
        %1286 = vmatpush1.msra.mxu0 %v1278
        %1287 = vmatprep.subr.mxu0 0.0
        %1288 = vmatpush1.msra.mxu0 0.0
        %1289 = vmatprep.subr.mxu0 0.0
        %1290 = vmatpush1.msra.mxu0 0.0
        %1291 = vmatprep.subr.mxu0 0.0
        %1292 = vmatpush1.msra.mxu0 0.0
        %1293 = vmatprep.subr.mxu0 0.0
        %1294 = vmatpush1.msra.mxu0 0.0
        %1295 = vmatprep.subr.mxu0 0.0
        %1296 = vmatpush1.msra.mxu0 0.0
        %1297 = vmatprep.subr.mxu0 0.0
        %1298 = vmatpush1.msra.mxu0 0.0
        %1299 = vmatprep.subr.mxu0 0.0
        %1300 = vmatpush1.msra.mxu0 0.0
        %1301 = vmatprep.subr.mxu0 0.0
        %1302 = vmatpush1.msra.mxu0 0.0
        %1303 = vmatprep.subr.mxu0 0.0
        %1304 = vmatpush1.msra.mxu0 0.0
        %1305 = vmatprep.subr.mxu0 0.0
        %1306 = vmatpush1.msra.mxu0 0.0
        %1307 = vmatprep.subr.mxu0 0.0
        %1308 = vmatpush1.msra.mxu0 0.0
        %1309 = vmatprep.subr.mxu0 0.0
        %1310 = vmatpush1.msra.mxu0 0.0
        %1311 = vmatprep.subr.mxu0 0.0
        %1312 = vmatpush1.msra.mxu0 0.0
        %1313 = vmatprep.subr.mxu0 0.0
        %1314 = vmatpush1.msra.mxu0 0.0
        %1315 = vmatprep.subr.mxu0 0.0
        %1316 = vmatpush1.msra.mxu0 0.0
        %1317 = vmatprep.subr.mxu0 0.0
        %1318 = vmatpush1.msra.mxu0 0.0
        %1319 = vmatprep.subr.mxu0 0.0
        %1320 = vmatpush1.msra.mxu0 0.0
        %1321 = vmatprep.subr.mxu0 0.0
        %1322 = vmatpush1.msra.mxu0 0.0
        %1323 = vmatprep.subr.mxu0 0.0
        %1324 = vmatpush1.msra.mxu0 0.0
        %1325 = vmatprep.subr.mxu0 0.0
        %1326 = vmatpush1.msra.mxu0 0.0
        %1327 = vmatprep.subr.mxu0 0.0
        %1328 = vmatpush1.msra.mxu0 0.0
        %1329 = vmatprep.subr.mxu0 0.0
        %1330 = vmatpush1.msra.mxu0 0.0
        %1331 = vmatprep.subr.mxu0 0.0
        %1332 = vmatpush1.msra.mxu0 0.0
        %1333 = vmatprep.subr.mxu0 0.0
        %1334 = vmatpush1.msra.mxu0 0.0
        %1335 = vmatprep.subr.mxu0 0.0
        %1336 = vmatpush1.msra.mxu0 0.0
        %1337 = vmatprep.subr.mxu0 0.0
        %1338 = vmatpush1.msra.mxu0 0.0
        %1339 = vmatprep.subr.mxu0 0.0
        %1340 = vmatpush1.msra.mxu0 0.0
        %1341 = vmatprep.subr.mxu0 0.0
        %1342 = vmatpush1.msra.mxu0 0.0
        %1343 = vmatprep.subr.mxu0 0.0
        %1344 = vmatpush1.msra.mxu0 0.0
        %1345 = vmatprep.subr.mxu0 0.0
        %1346 = vmatpush1.msra.mxu0 0.0
        %1347 = vmatprep.subr.mxu0 0.0
        %1348 = vmatpush1.msra.mxu0 0.0
        %1349 = vmatprep.mubr.f32.mxu0 0.0
        %1350 = vmatmul.mubr.f32.gmra.mrb[0].mxu0 %v1280
        %v1351 = vpop.f32.mrb[0].mxu0
        %v1352 = vadd.f32 0.0, %v1351
        %v1353 = vpop.f32.mrb[0].mxu0
        %1354 = vmatprep.mubr.f32.mxu0 0.0
        %1355 = vmatmul.mubr.f32.gmra.mrb[0].mxu0 %v1283
        %v1356 = vpop.f32.mrb[0].mxu0
        %v1357 = vadd.f32 0.0, %v1356
        %v1358 = vpop.f32.mrb[0].mxu0
        %1359 = vdwg.mxu0
        %v1360 = vadd.f32 %v1186, %v1352
        %v1361 = vadd.f32 %v1191, %v1357
        %v1362 = vld [vmem:[%s7] sm:$0x1]
        %v1364 = vlaneseq
        %v1365 = vshrl.u32 %v1364, 7
        %v1366 = vsub.s32 0, %v1365
        %v1367 = vrot.slane %v1362, %v1366
        %v1369 = vadd.f32 %v1360, %v1367
        %v1370 = vadd.f32 %v1361, %v1367
        %v1371 = vld [vmem:[%s9] sm:$0x1]
        %v1373 = vlaneseq
        %v1374 = vshrl.u32 %v1373, 7
        %v1375 = vsub.s32 0, %v1374
        %v1376 = vrot.slane %v1371, %v1375
        %v1378 = vmul.f32 %v1369, %v1376
        %v1379 = vmul.f32 %v1370, %v1376
        %v1380 = vld [vmem:[%s11] sm:$0x1]
        %v1382 = vlaneseq
        %v1383 = vshrl.u32 %v1382, 7
        %v1384 = vsub.s32 0, %v1383
        %v1385 = vrot.slane %v1380, %v1384
        %v1387 = vadd.f32 %v1378, %v1385
        %v1388 = vadd.f32 %v1379, %v1385
        %v1389 = vmax.f32 %v1387, 0.0
        %v1390 = vmax.f32 %v1388, 0.0
        %v1391 = vand.u32 2147483647, %v1387
        %v1392 = vand.u32 2147483647, %v1388
        %v1393 = vsub.f32 0.0, %v1391
        %v1394 = vsub.f32 0.0, %v1392
        %v1395 = vmul.f32 %v1393, 1.442695
        %v1396 = vpow.pop %v1395
        %v1397 = vmul.f32 %v1394, 1.442695
        %v1398 = vpow.pop %v1397
        %v1399 = vadd.f32 %v1396, 1.0
        %v1400 = vlog2.pop %v1399
        %v1401 = vmul.f32 %v1400, 0.6931472
        %v1402 = vmul.f32 -0.5, %v1396
        %v1403 = vadd.f32 %v1402, 1.0
        %v1404 = vmul.f32 %v1403, %v1396
        %v1405 = vand.u32 2147483647, %v1396
        %vm1406 = vcmp.lt.f32.partialorder %v1405, 0.0004427343
        %v1407 = vsel %vm1406, %v1404, %v1401
        %v1408 = vadd.f32 %v1398, 1.0
        %v1409 = vlog2.pop %v1408
        %v1410 = vmul.f32 %v1409, 0.6931472
        %v1411 = vmul.f32 -0.5, %v1398
        %v1412 = vadd.f32 %v1411, 1.0
        %v1413 = vmul.f32 %v1412, %v1398
        %v1414 = vand.u32 2147483647, %v1398
        %vm1415 = vcmp.lt.f32.partialorder %v1414, 0.0004427343
        %v1416 = vsel %vm1415, %v1413, %v1410
        %v1417 = vadd.f32 %v1389, %v1407
        %v1418 = vadd.f32 %v1390, %v1416
        %v1419 = vtanh.pop %v1417
        %v1420 = vtanh.pop %v1418
        %v1421 = vmul.f32 %v1387, %v1419
        %v1422 = vmul.f32 %v1388, %v1420
        %s1423 = scalar_lea.vmem %s13, 32
        %v1424 = vld [vmem:[%s1423] sm:$0xff]
        %v1425 = vld [vmem:[%s1423 + $0x8] sm:$0xff]
        %1426 = vmatprep.subr.mxu0 0.0
        %1427 = vmatpush1.msra.mxu0 %v1421
        %1428 = vmatprep.subr.mxu0 0.0
        %1429 = vmatpush1.msra.mxu0 %v1422
        %1430 = vmatprep.subr.mxu0 0.0
        %1431 = vmatpush1.msra.mxu0 0.0
        %1432 = vmatprep.subr.mxu0 0.0
        %1433 = vmatpush1.msra.mxu0 0.0
        %1434 = vmatprep.subr.mxu0 0.0
        %1435 = vmatpush1.msra.mxu0 0.0
        %1436 = vmatprep.subr.mxu0 0.0
        %1437 = vmatpush1.msra.mxu0 0.0
        %1438 = vmatprep.subr.mxu0 0.0
        %1439 = vmatpush1.msra.mxu0 0.0
        %1440 = vmatprep.subr.mxu0 0.0
        %1441 = vmatpush1.msra.mxu0 0.0
        %1442 = vmatprep.subr.mxu0 0.0
        %1443 = vmatpush1.msra.mxu0 0.0
        %1444 = vmatprep.subr.mxu0 0.0
        %1445 = vmatpush1.msra.mxu0 0.0
        %1446 = vmatprep.subr.mxu0 0.0
        %1447 = vmatpush1.msra.mxu0 0.0
        %1448 = vmatprep.subr.mxu0 0.0
        %1449 = vmatpush1.msra.mxu0 0.0
        %1450 = vmatprep.subr.mxu0 0.0
        %1451 = vmatpush1.msra.mxu0 0.0
        %1452 = vmatprep.subr.mxu0 0.0
        %1453 = vmatpush1.msra.mxu0 0.0
        %1454 = vmatprep.subr.mxu0 0.0
        %1455 = vmatpush1.msra.mxu0 0.0
        %1456 = vmatprep.subr.mxu0 0.0
        %1457 = vmatpush1.msra.mxu0 0.0
        %1458 = vmatprep.subr.mxu0 0.0
        %1459 = vmatpush1.msra.mxu0 0.0
        %1460 = vmatprep.subr.mxu0 0.0
        %1461 = vmatpush1.msra.mxu0 0.0
        %1462 = vmatprep.subr.mxu0 0.0
        %1463 = vmatpush1.msra.mxu0 0.0
        %1464 = vmatprep.subr.mxu0 0.0
        %1465 = vmatpush1.msra.mxu0 0.0
        %1466 = vmatprep.subr.mxu0 0.0
        %1467 = vmatpush1.msra.mxu0 0.0
        %1468 = vmatprep.subr.mxu0 0.0
        %1469 = vmatpush1.msra.mxu0 0.0
        %1470 = vmatprep.subr.mxu0 0.0
        %1471 = vmatpush1.msra.mxu0 0.0
        %1472 = vmatprep.subr.mxu0 0.0
        %1473 = vmatpush1.msra.mxu0 0.0
        %1474 = vmatprep.subr.mxu0 0.0
        %1475 = vmatpush1.msra.mxu0 0.0
        %1476 = vmatprep.subr.mxu0 0.0
        %1477 = vmatpush1.msra.mxu0 0.0
        %1478 = vmatprep.subr.mxu0 0.0
        %1479 = vmatpush1.msra.mxu0 0.0
        %1480 = vmatprep.subr.mxu0 0.0
        %1481 = vmatpush1.msra.mxu0 0.0
        %1482 = vmatprep.subr.mxu0 0.0
        %1483 = vmatpush1.msra.mxu0 0.0
        %1484 = vmatprep.subr.mxu0 0.0
        %1485 = vmatpush1.msra.mxu0 0.0
        %1486 = vmatprep.subr.mxu0 0.0
        %1487 = vmatpush1.msra.mxu0 0.0
        %1488 = vmatprep.subr.mxu0 0.0
        %1489 = vmatpush1.msra.mxu0 0.0
        %1490 = vmatprep.mubr.f32.mxu0 0.0
        %1491 = vmatmul.mubr.f32.gmra.mrb[0].mxu0 %v950
        %v1492 = vpop.f32.mrb[0].mxu0
        %v1493 = vadd.f32 0.0, %v1492
        %v1494 = vpop.f32.mrb[0].mxu0
        %1495 = vmatprep.mubr.f32.mxu0 0.0
        %1496 = vmatmul.mubr.f32.gmra.mrb[0].mxu0 %v953
        %v1497 = vpop.f32.mrb[0].mxu0
        %v1498 = vadd.f32 0.0, %v1497
        %v1499 = vpop.f32.mrb[0].mxu0
        %1500 = vdwg.mxu0
        %v1501 = vld [vmem:[%s13] sm:$0xff]
        %v1502 = vld [vmem:[%s13 + $0x8] sm:$0xff]
        %v1504 = vsel %vm948, %v1493, 0
        %v1507 = vsel %vm948, %v1498, 0
        %1509 = vmatprep.subr.mxu0 0.0
        %1510 = vmatpush1.msra.mxu0 %v1501
        %1511 = vmatprep.subr.mxu0 0.0
        %1512 = vmatpush1.msra.mxu0 %v1502
        %1513 = vmatprep.subr.mxu0 0.0
        %1514 = vmatpush1.msra.mxu0 0.0
        %1515 = vmatprep.subr.mxu0 0.0
        %1516 = vmatpush1.msra.mxu0 0.0
        %1517 = vmatprep.subr.mxu0 0.0
        %1518 = vmatpush1.msra.mxu0 0.0
        %1519 = vmatprep.subr.mxu0 0.0
        %1520 = vmatpush1.msra.mxu0 0.0
        %1521 = vmatprep.subr.mxu0 0.0
        %1522 = vmatpush1.msra.mxu0 0.0
        %1523 = vmatprep.subr.mxu0 0.0
        %1524 = vmatpush1.msra.mxu0 0.0
        %1525 = vmatprep.subr.mxu0 0.0
        %1526 = vmatpush1.msra.mxu0 0.0
        %1527 = vmatprep.subr.mxu0 0.0
        %1528 = vmatpush1.msra.mxu0 0.0
        %1529 = vmatprep.subr.mxu0 0.0
        %1530 = vmatpush1.msra.mxu0 0.0
        %1531 = vmatprep.subr.mxu0 0.0
        %1532 = vmatpush1.msra.mxu0 0.0
        %1533 = vmatprep.subr.mxu0 0.0
        %1534 = vmatpush1.msra.mxu0 0.0
        %1535 = vmatprep.subr.mxu0 0.0
        %1536 = vmatpush1.msra.mxu0 0.0
        %1537 = vmatprep.subr.mxu0 0.0
        %1538 = vmatpush1.msra.mxu0 0.0
        %1539 = vmatprep.subr.mxu0 0.0
        %1540 = vmatpush1.msra.mxu0 0.0
        %1541 = vmatprep.subr.mxu0 0.0
        %1542 = vmatpush1.msra.mxu0 0.0
        %1543 = vmatprep.subr.mxu0 0.0
        %1544 = vmatpush1.msra.mxu0 0.0
        %1545 = vmatprep.subr.mxu0 0.0
        %1546 = vmatpush1.msra.mxu0 0.0
        %1547 = vmatprep.subr.mxu0 0.0
        %1548 = vmatpush1.msra.mxu0 0.0
        %1549 = vmatprep.subr.mxu0 0.0
        %1550 = vmatpush1.msra.mxu0 0.0
        %1551 = vmatprep.subr.mxu0 0.0
        %1552 = vmatpush1.msra.mxu0 0.0
        %1553 = vmatprep.subr.mxu0 0.0
        %1554 = vmatpush1.msra.mxu0 0.0
        %1555 = vmatprep.subr.mxu0 0.0
        %1556 = vmatpush1.msra.mxu0 0.0
        %1557 = vmatprep.subr.mxu0 0.0
        %1558 = vmatpush1.msra.mxu0 0.0
        %1559 = vmatprep.subr.mxu0 0.0
        %1560 = vmatpush1.msra.mxu0 0.0
        %1561 = vmatprep.subr.mxu0 0.0
        %1562 = vmatpush1.msra.mxu0 0.0
        %1563 = vmatprep.subr.mxu0 0.0
        %1564 = vmatpush1.msra.mxu0 0.0
        %1565 = vmatprep.subr.mxu0 0.0
        %1566 = vmatpush1.msra.mxu0 0.0
        %1567 = vmatprep.subr.mxu0 0.0
        %1568 = vmatpush1.msra.mxu0 0.0
        %1569 = vmatprep.subr.mxu0 0.0
        %1570 = vmatpush1.msra.mxu0 0.0
        %1571 = vmatprep.subr.mxu0 0.0
        %1572 = vmatpush1.msra.mxu0 0.0
        %1573 = vmatprep.mubr.f32.mxu0 0.0
        %1574 = vmatmul.mubr.f32.gmra.mrb[0].mxu0 %v1504
        %v1575 = vpop.f32.mrb[0].mxu0
        %v1576 = vadd.f32 0.0, %v1575
        %v1577 = vpop.f32.mrb[0].mxu0
        %1578 = vmatprep.mubr.f32.mxu0 0.0
        %1579 = vmatmul.mubr.f32.gmra.mrb[0].mxu0 %v1507
        %v1580 = vpop.f32.mrb[0].mxu0
        %v1581 = vadd.f32 0.0, %v1580
        %v1582 = vpop.f32.mrb[0].mxu0
        %1583 = vdwg.mxu0
        %v1585 = vsel %vm948, %v1421, 0
        %v1588 = vsel %vm948, %v1422, 0
        %1590 = vmatprep.subr.mxu0 0.0
        %1591 = vmatpush1.msra.mxu0 %v1424
        %1592 = vmatprep.subr.mxu0 0.0
        %1593 = vmatpush1.msra.mxu0 %v1425
        %1594 = vmatprep.subr.mxu0 0.0
        %1595 = vmatpush1.msra.mxu0 0.0
        %1596 = vmatprep.subr.mxu0 0.0
        %1597 = vmatpush1.msra.mxu0 0.0
        %1598 = vmatprep.subr.mxu0 0.0
        %1599 = vmatpush1.msra.mxu0 0.0
        %1600 = vmatprep.subr.mxu0 0.0
        %1601 = vmatpush1.msra.mxu0 0.0
        %1602 = vmatprep.subr.mxu0 0.0
        %1603 = vmatpush1.msra.mxu0 0.0
        %1604 = vmatprep.subr.mxu0 0.0
        %1605 = vmatpush1.msra.mxu0 0.0
        %1606 = vmatprep.subr.mxu0 0.0
        %1607 = vmatpush1.msra.mxu0 0.0
        %1608 = vmatprep.subr.mxu0 0.0
        %1609 = vmatpush1.msra.mxu0 0.0
        %1610 = vmatprep.subr.mxu0 0.0
        %1611 = vmatpush1.msra.mxu0 0.0
        %1612 = vmatprep.subr.mxu0 0.0
        %1613 = vmatpush1.msra.mxu0 0.0
        %1614 = vmatprep.subr.mxu0 0.0
        %1615 = vmatpush1.msra.mxu0 0.0
        %1616 = vmatprep.subr.mxu0 0.0
        %1617 = vmatpush1.msra.mxu0 0.0
        %1618 = vmatprep.subr.mxu0 0.0
        %1619 = vmatpush1.msra.mxu0 0.0
        %1620 = vmatprep.subr.mxu0 0.0
        %1621 = vmatpush1.msra.mxu0 0.0
        %1622 = vmatprep.subr.mxu0 0.0
        %1623 = vmatpush1.msra.mxu0 0.0
        %1624 = vmatprep.subr.mxu0 0.0
        %1625 = vmatpush1.msra.mxu0 0.0
        %1626 = vmatprep.subr.mxu0 0.0
        %1627 = vmatpush1.msra.mxu0 0.0
        %1628 = vmatprep.subr.mxu0 0.0
        %1629 = vmatpush1.msra.mxu0 0.0
        %1630 = vmatprep.subr.mxu0 0.0
        %1631 = vmatpush1.msra.mxu0 0.0
        %1632 = vmatprep.subr.mxu0 0.0
        %1633 = vmatpush1.msra.mxu0 0.0
        %1634 = vmatprep.subr.mxu0 0.0
        %1635 = vmatpush1.msra.mxu0 0.0
        %1636 = vmatprep.subr.mxu0 0.0
        %1637 = vmatpush1.msra.mxu0 0.0
        %1638 = vmatprep.subr.mxu0 0.0
        %1639 = vmatpush1.msra.mxu0 0.0
        %1640 = vmatprep.subr.mxu0 0.0
        %1641 = vmatpush1.msra.mxu0 0.0
        %1642 = vmatprep.subr.mxu0 0.0
        %1643 = vmatpush1.msra.mxu0 0.0
        %1644 = vmatprep.subr.mxu0 0.0
        %1645 = vmatpush1.msra.mxu0 0.0
        %1646 = vmatprep.subr.mxu0 0.0
        %1647 = vmatpush1.msra.mxu0 0.0
        %1648 = vmatprep.subr.mxu0 0.0
        %1649 = vmatpush1.msra.mxu0 0.0
        %1650 = vmatprep.subr.mxu0 0.0
        %1651 = vmatpush1.msra.mxu0 0.0
        %1652 = vmatprep.subr.mxu0 0.0
        %1653 = vmatpush1.msra.mxu0 0.0
        %1654 = vmatprep.mubr.f32.mxu0 0.0
        %1655 = vmatmul.mubr.f32.gmra.mrb[0].mxu0 %v1585
        %v1656 = vpop.f32.mrb[0].mxu0
        %v1657 = vadd.f32 %v1576, %v1656
        %v1658 = vpop.f32.mrb[0].mxu0
        %1659 = vmatprep.mubr.f32.mxu0 0.0
        %1660 = vmatmul.mubr.f32.gmra.mrb[0].mxu0 %v1588
        %v1661 = vpop.f32.mrb[0].mxu0
        %v1662 = vadd.f32 %v1581, %v1661
        %v1663 = vpop.f32.mrb[0].mxu0
        %1664 = vdwg.mxu0
        %1665 = vmatprep.subr.mxu0 0.0
        %1666 = vmatpush1.msra.mxu0 %v1421
        %1667 = vmatprep.subr.mxu0 0.0
        %1668 = vmatpush1.msra.mxu0 %v1422
        %1669 = vmatprep.subr.mxu0 0.0
        %1670 = vmatpush1.msra.mxu0 0.0
        %1671 = vmatprep.subr.mxu0 0.0
        %1672 = vmatpush1.msra.mxu0 0.0
        %1673 = vmatprep.subr.mxu0 0.0
        %1674 = vmatpush1.msra.mxu0 0.0
        %1675 = vmatprep.subr.mxu0 0.0
        %1676 = vmatpush1.msra.mxu0 0.0
        %1677 = vmatprep.subr.mxu0 0.0
        %1678 = vmatpush1.msra.mxu0 0.0
        %1679 = vmatprep.subr.mxu0 0.0
        %1680 = vmatpush1.msra.mxu0 0.0
        %1681 = vmatprep.subr.mxu0 0.0
        %1682 = vmatpush1.msra.mxu0 0.0
        %1683 = vmatprep.subr.mxu0 0.0
        %1684 = vmatpush1.msra.mxu0 0.0
        %1685 = vmatprep.subr.mxu0 0.0
        %1686 = vmatpush1.msra.mxu0 0.0
        %1687 = vmatprep.subr.mxu0 0.0
        %1688 = vmatpush1.msra.mxu0 0.0
        %1689 = vmatprep.subr.mxu0 0.0
        %1690 = vmatpush1.msra.mxu0 0.0
        %1691 = vmatprep.subr.mxu0 0.0
        %1692 = vmatpush1.msra.mxu0 0.0
        %1693 = vmatprep.subr.mxu0 0.0
        %1694 = vmatpush1.msra.mxu0 0.0
        %1695 = vmatprep.subr.mxu0 0.0
        %1696 = vmatpush1.msra.mxu0 0.0
        %1697 = vmatprep.subr.mxu0 0.0
        %1698 = vmatpush1.msra.mxu0 0.0
        %1699 = vmatprep.subr.mxu0 0.0
        %1700 = vmatpush1.msra.mxu0 0.0
        %1701 = vmatprep.subr.mxu0 0.0
        %1702 = vmatpush1.msra.mxu0 0.0
        %1703 = vmatprep.subr.mxu0 0.0
        %1704 = vmatpush1.msra.mxu0 0.0
        %1705 = vmatprep.subr.mxu0 0.0
        %1706 = vmatpush1.msra.mxu0 0.0
        %1707 = vmatprep.subr.mxu0 0.0
        %1708 = vmatpush1.msra.mxu0 0.0
        %1709 = vmatprep.subr.mxu0 0.0
        %1710 = vmatpush1.msra.mxu0 0.0
        %1711 = vmatprep.subr.mxu0 0.0
        %1712 = vmatpush1.msra.mxu0 0.0
        %1713 = vmatprep.subr.mxu0 0.0
        %1714 = vmatpush1.msra.mxu0 0.0
        %1715 = vmatprep.subr.mxu0 0.0
        %1716 = vmatpush1.msra.mxu0 0.0
        %1717 = vmatprep.subr.mxu0 0.0
        %1718 = vmatpush1.msra.mxu0 0.0
        %1719 = vmatprep.subr.mxu0 0.0
        %1720 = vmatpush1.msra.mxu0 0.0
        %1721 = vmatprep.subr.mxu0 0.0
        %1722 = vmatpush1.msra.mxu0 0.0
        %1723 = vmatprep.subr.mxu0 0.0
        %1724 = vmatpush1.msra.mxu0 0.0
        %1725 = vmatprep.subr.mxu0 0.0
        %1726 = vmatpush1.msra.mxu0 0.0
        %1727 = vmatprep.subr.mxu0 0.0
        %1728 = vmatpush1.msra.mxu0 0.0
        %1729 = vmatprep.mubr.f32.mxu0 0.0
        %1730 = vmatmul.mubr.f32.gmra.mrb[0].mxu0 %v1197
        %v1731 = vpop.f32.mrb[0].mxu0
        %v1732 = vadd.f32 0.0, %v1731
        %v1733 = vpop.f32.mrb[0].mxu0
        %1734 = vmatprep.mubr.f32.mxu0 0.0
        %1735 = vmatmul.mubr.f32.gmra.mrb[0].mxu0 %v1200
        %v1736 = vpop.f32.mrb[0].mxu0
        %v1737 = vadd.f32 0.0, %v1736
        %v1738 = vpop.f32.mrb[0].mxu0
        %1739 = vdwg.mxu0
        %s1740 = scalar_lea.vmem %s13, 16
        %v1741 = vld [vmem:[%s1740] sm:$0xff]
        %v1742 = vld [vmem:[%s1740 + $0x8] sm:$0xff]
        %v1744 = vsel %vm948, %v1732, 0
        %v1747 = vsel %vm948, %v1737, 0
        %1749 = vmatprep.subr.mxu0 0.0
        %1750 = vmatpush1.msra.mxu0 %v1741
        %1751 = vmatprep.subr.mxu0 0.0
        %1752 = vmatpush1.msra.mxu0 %v1742
        %1753 = vmatprep.subr.mxu0 0.0
        %1754 = vmatpush1.msra.mxu0 0.0
        %1755 = vmatprep.subr.mxu0 0.0
        %1756 = vmatpush1.msra.mxu0 0.0
        %1757 = vmatprep.subr.mxu0 0.0
        %1758 = vmatpush1.msra.mxu0 0.0
        %1759 = vmatprep.subr.mxu0 0.0
        %1760 = vmatpush1.msra.mxu0 0.0
        %1761 = vmatprep.subr.mxu0 0.0
        %1762 = vmatpush1.msra.mxu0 0.0
        %1763 = vmatprep.subr.mxu0 0.0
        %1764 = vmatpush1.msra.mxu0 0.0
        %1765 = vmatprep.subr.mxu0 0.0
        %1766 = vmatpush1.msra.mxu0 0.0
        %1767 = vmatprep.subr.mxu0 0.0
        %1768 = vmatpush1.msra.mxu0 0.0
        %1769 = vmatprep.subr.mxu0 0.0
        %1770 = vmatpush1.msra.mxu0 0.0
        %1771 = vmatprep.subr.mxu0 0.0
        %1772 = vmatpush1.msra.mxu0 0.0
        %1773 = vmatprep.subr.mxu0 0.0
        %1774 = vmatpush1.msra.mxu0 0.0
        %1775 = vmatprep.subr.mxu0 0.0
        %1776 = vmatpush1.msra.mxu0 0.0
        %1777 = vmatprep.subr.mxu0 0.0
        %1778 = vmatpush1.msra.mxu0 0.0
        %1779 = vmatprep.subr.mxu0 0.0
        %1780 = vmatpush1.msra.mxu0 0.0
        %1781 = vmatprep.subr.mxu0 0.0
        %1782 = vmatpush1.msra.mxu0 0.0
        %1783 = vmatprep.subr.mxu0 0.0
        %1784 = vmatpush1.msra.mxu0 0.0
        %1785 = vmatprep.subr.mxu0 0.0
        %1786 = vmatpush1.msra.mxu0 0.0
        %1787 = vmatprep.subr.mxu0 0.0
        %1788 = vmatpush1.msra.mxu0 0.0
        %1789 = vmatprep.subr.mxu0 0.0
        %1790 = vmatpush1.msra.mxu0 0.0
        %1791 = vmatprep.subr.mxu0 0.0
        %1792 = vmatpush1.msra.mxu0 0.0
        %1793 = vmatprep.subr.mxu0 0.0
        %1794 = vmatpush1.msra.mxu0 0.0
        %1795 = vmatprep.subr.mxu0 0.0
        %1796 = vmatpush1.msra.mxu0 0.0
        %1797 = vmatprep.subr.mxu0 0.0
        %1798 = vmatpush1.msra.mxu0 0.0
        %1799 = vmatprep.subr.mxu0 0.0
        %1800 = vmatpush1.msra.mxu0 0.0
        %1801 = vmatprep.subr.mxu0 0.0
        %1802 = vmatpush1.msra.mxu0 0.0
        %1803 = vmatprep.subr.mxu0 0.0
        %1804 = vmatpush1.msra.mxu0 0.0
        %1805 = vmatprep.subr.mxu0 0.0
        %1806 = vmatpush1.msra.mxu0 0.0
        %1807 = vmatprep.subr.mxu0 0.0
        %1808 = vmatpush1.msra.mxu0 0.0
        %1809 = vmatprep.subr.mxu0 0.0
        %1810 = vmatpush1.msra.mxu0 0.0
        %1811 = vmatprep.subr.mxu0 0.0
        %1812 = vmatpush1.msra.mxu0 0.0
        %1813 = vmatprep.mubr.f32.mxu0 0.0
        %1814 = vmatmul.mubr.f32.gmra.mrb[0].mxu0 %v1744
        %v1815 = vpop.f32.mrb[0].mxu0
        %v1816 = vadd.f32 0.0, %v1815
        %v1817 = vpop.f32.mrb[0].mxu0
        %1818 = vmatprep.mubr.f32.mxu0 0.0
        %1819 = vmatmul.mubr.f32.gmra.mrb[0].mxu0 %v1747
        %v1820 = vpop.f32.mrb[0].mxu0
        %v1821 = vadd.f32 0.0, %v1820
        %v1822 = vpop.f32.mrb[0].mxu0
        %1823 = vdwg.mxu0
        %v1824 = vadd.f32 %v1657, %v1816
        %v1825 = vadd.f32 %v1662, %v1821
        %v1826 = vld [vmem:[%s15] sm:$0x1]
        %v1828 = vlaneseq
        %v1829 = vshrl.u32 %v1828, 7
        %v1830 = vsub.s32 0, %v1829
        %v1831 = vrot.slane %v1826, %v1830
        %v1833 = vadd.f32 %v1824, %v1831
        %v1834 = vadd.f32 %v1825, %v1831
        %v1835 = vld [vmem:[%s17] sm:$0x1]
        %v1837 = vlaneseq
        %v1838 = vshrl.u32 %v1837, 7
        %v1839 = vsub.s32 0, %v1838
        %v1840 = vrot.slane %v1835, %v1839
        %v1842 = vmul.f32 %v1833, %v1840
        %v1843 = vmul.f32 %v1834, %v1840
        %v1844 = vld [vmem:[%s19] sm:$0x1]
        %v1846 = vlaneseq
        %v1847 = vshrl.u32 %v1846, 7
        %v1848 = vsub.s32 0, %v1847
        %v1849 = vrot.slane %v1844, %v1848
        %v1851 = vadd.f32 %v1842, %v1849
        %v1852 = vadd.f32 %v1843, %v1849
        %v1853 = vmax.f32 %v1851, 0.0
        %v1854 = vmax.f32 %v1852, 0.0
        %v1855 = vand.u32 2147483647, %v1851
        %v1856 = vand.u32 2147483647, %v1852
        %v1857 = vsub.f32 0.0, %v1855
        %v1858 = vsub.f32 0.0, %v1856
        %v1859 = vmul.f32 %v1857, 1.442695
        %v1860 = vpow.pop %v1859
        %v1861 = vmul.f32 %v1858, 1.442695
        %v1862 = vpow.pop %v1861
        %v1863 = vadd.f32 %v1860, 1.0
        %v1864 = vlog2.pop %v1863
        %v1865 = vmul.f32 %v1864, 0.6931472
        %v1866 = vmul.f32 -0.5, %v1860
        %v1867 = vadd.f32 %v1866, 1.0
        %v1868 = vmul.f32 %v1867, %v1860
        %v1869 = vand.u32 2147483647, %v1860
        %vm1870 = vcmp.lt.f32.partialorder %v1869, 0.0004427343
        %v1871 = vsel %vm1870, %v1868, %v1865
        %v1872 = vadd.f32 %v1862, 1.0
        %v1873 = vlog2.pop %v1872
        %v1874 = vmul.f32 %v1873, 0.6931472
        %v1875 = vmul.f32 -0.5, %v1862
        %v1876 = vadd.f32 %v1875, 1.0
        %v1877 = vmul.f32 %v1876, %v1862
        %v1878 = vand.u32 2147483647, %v1862
        %vm1879 = vcmp.lt.f32.partialorder %v1878, 0.0004427343
        %v1880 = vsel %vm1879, %v1877, %v1874
        %v1881 = vadd.f32 %v1853, %v1871
        %v1882 = vadd.f32 %v1854, %v1880
        %v1883 = vtanh.pop %v1881
        %v1884 = vtanh.pop %v1882
        %v1885 = vmul.f32 %v1851, %v1883
        %v1886 = vmul.f32 %v1852, %v1884
        %v1887 = vld [vmem:[%s21] sm:$0xff]
        %v1888 = vld [vmem:[%s23] sm:$0x1]
        %v1890 = vlaneseq
        %v1891 = vshrl.u32 %v1890, 7
        %v1892 = vsub.s32 0, %v1891
        %v1893 = vrot.slane %v1888, %v1892
        %1895 = vmatprep.subr.mxu0 0.0
        %1896 = vmatpush1.msra.mxu0 %v1887
        %1897 = vmatprep.subr.mxu0 0.0
        %1898 = vmatpush1.msra.mxu0 0.0
        %1899 = vmatprep.subr.mxu0 0.0
        %1900 = vmatpush1.msra.mxu0 0.0
        %1901 = vmatprep.subr.mxu0 0.0
        %1902 = vmatpush1.msra.mxu0 0.0
        %1903 = vmatprep.subr.mxu0 0.0
        %1904 = vmatpush1.msra.mxu0 0.0
        %1905 = vmatprep.subr.mxu0 0.0
        %1906 = vmatpush1.msra.mxu0 0.0
        %1907 = vmatprep.subr.mxu0 0.0
        %1908 = vmatpush1.msra.mxu0 0.0
        %1909 = vmatprep.subr.mxu0 0.0
        %1910 = vmatpush1.msra.mxu0 0.0
        %1911 = vmatprep.subr.mxu0 0.0
        %1912 = vmatpush1.msra.mxu0 0.0
        %1913 = vmatprep.subr.mxu0 0.0
        %1914 = vmatpush1.msra.mxu0 0.0
        %1915 = vmatprep.subr.mxu0 0.0
        %1916 = vmatpush1.msra.mxu0 0.0
        %1917 = vmatprep.subr.mxu0 0.0
        %1918 = vmatpush1.msra.mxu0 0.0
        %1919 = vmatprep.subr.mxu0 0.0
        %1920 = vmatpush1.msra.mxu0 0.0
        %1921 = vmatprep.subr.mxu0 0.0
        %1922 = vmatpush1.msra.mxu0 0.0
        %1923 = vmatprep.subr.mxu0 0.0
        %1924 = vmatpush1.msra.mxu0 0.0
        %1925 = vmatprep.subr.mxu0 0.0
        %1926 = vmatpush1.msra.mxu0 0.0
        %1927 = vmatprep.subr.mxu0 0.0
        %1928 = vmatpush1.msra.mxu0 0.0
        %1929 = vmatprep.subr.mxu0 0.0
        %1930 = vmatpush1.msra.mxu0 0.0
        %1931 = vmatprep.subr.mxu0 0.0
        %1932 = vmatpush1.msra.mxu0 0.0
        %1933 = vmatprep.subr.mxu0 0.0
        %1934 = vmatpush1.msra.mxu0 0.0
        %1935 = vmatprep.subr.mxu0 0.0
        %1936 = vmatpush1.msra.mxu0 0.0
        %1937 = vmatprep.subr.mxu0 0.0
        %1938 = vmatpush1.msra.mxu0 0.0
        %1939 = vmatprep.subr.mxu0 0.0
        %1940 = vmatpush1.msra.mxu0 0.0
        %1941 = vmatprep.subr.mxu0 0.0
        %1942 = vmatpush1.msra.mxu0 0.0
        %1943 = vmatprep.subr.mxu0 0.0
        %1944 = vmatpush1.msra.mxu0 0.0
        %1945 = vmatprep.subr.mxu0 0.0
        %1946 = vmatpush1.msra.mxu0 0.0
        %1947 = vmatprep.subr.mxu0 0.0
        %1948 = vmatpush1.msra.mxu0 0.0
        %1949 = vmatprep.subr.mxu0 0.0
        %1950 = vmatpush1.msra.mxu0 0.0
        %1951 = vmatprep.subr.mxu0 0.0
        %1952 = vmatpush1.msra.mxu0 0.0
        %1953 = vmatprep.subr.mxu0 0.0
        %1954 = vmatpush1.msra.mxu0 0.0
        %1955 = vmatprep.subr.mxu0 0.0
        %1956 = vmatpush1.msra.mxu0 0.0
        %1957 = vmatprep.subr.mxu0 0.0
        %1958 = vmatpush1.msra.mxu0 0.0
        %1959 = vmatprep.mubr.f32.mxu0 0.0
        %1960 = vmatmul.mubr.f32.gmra.mrb[0].mxu0 %v1114
        %v1961 = vpop.f32.mrb[0].mxu0
        %v1962 = vadd.f32 %v1893, %v1961
        %v1963 = vpop.f32.mrb[0].mxu0
        %1964 = vmatprep.mubr.f32.mxu0 0.0
        %1965 = vmatmul.mubr.f32.gmra.mrb[0].mxu0 %v1117
        %v1966 = vpop.f32.mrb[0].mxu0
        %v1967 = vadd.f32 %v1893, %v1966
        %v1968 = vpop.f32.mrb[0].mxu0
        %1969 = vdwg.mxu0
        %v1970 = vadd.f32 %v1885, %v1962
        %v1971 = vadd.f32 %v1886, %v1967
        %s1972 = scalar_lea.vmem %s25, 32
        %v1973 = vld [vmem:[%s1972] sm:$0xff]
        %v1974 = vld [vmem:[%s1972 + $0x8] sm:$0xff]
        %s1975 = scalar_lea.vmem %s3, 32
        %v1976 = vld [vmem:[%s1975] sm:$0xff]
        %v1977 = vld [vmem:[%s1975 + $0x8] sm:$0xff]
        %v1979 = vsel %vm948, %v1976, 0
        %v1982 = vsel %vm948, %v1977, 0
        %1984 = vmatprep.subr.mxu0 0.0
        %1985 = vmatpush1.msra.mxu0 %v1970
        %1986 = vmatprep.subr.mxu0 0.0
        %1987 = vmatpush1.msra.mxu0 %v1971
        %1988 = vmatprep.subr.mxu0 0.0
        %1989 = vmatpush1.msra.mxu0 0.0
        %1990 = vmatprep.subr.mxu0 0.0
        %1991 = vmatpush1.msra.mxu0 0.0
        %1992 = vmatprep.subr.mxu0 0.0
        %1993 = vmatpush1.msra.mxu0 0.0
        %1994 = vmatprep.subr.mxu0 0.0
        %1995 = vmatpush1.msra.mxu0 0.0
        %1996 = vmatprep.subr.mxu0 0.0
        %1997 = vmatpush1.msra.mxu0 0.0
        %1998 = vmatprep.subr.mxu0 0.0
        %1999 = vmatpush1.msra.mxu0 0.0
        %2000 = vmatprep.subr.mxu0 0.0
        %2001 = vmatpush1.msra.mxu0 0.0
        %2002 = vmatprep.subr.mxu0 0.0
        %2003 = vmatpush1.msra.mxu0 0.0
        %2004 = vmatprep.subr.mxu0 0.0
        %2005 = vmatpush1.msra.mxu0 0.0
        %2006 = vmatprep.subr.mxu0 0.0
        %2007 = vmatpush1.msra.mxu0 0.0
        %2008 = vmatprep.subr.mxu0 0.0
        %2009 = vmatpush1.msra.mxu0 0.0
        %2010 = vmatprep.subr.mxu0 0.0
        %2011 = vmatpush1.msra.mxu0 0.0
        %2012 = vmatprep.subr.mxu0 0.0
        %2013 = vmatpush1.msra.mxu0 0.0
        %2014 = vmatprep.subr.mxu0 0.0
        %2015 = vmatpush1.msra.mxu0 0.0
        %2016 = vmatprep.subr.mxu0 0.0
        %2017 = vmatpush1.msra.mxu0 0.0
        %2018 = vmatprep.subr.mxu0 0.0
        %2019 = vmatpush1.msra.mxu0 0.0
        %2020 = vmatprep.subr.mxu0 0.0
        %2021 = vmatpush1.msra.mxu0 0.0
        %2022 = vmatprep.subr.mxu0 0.0
        %2023 = vmatpush1.msra.mxu0 0.0
        %2024 = vmatprep.subr.mxu0 0.0
        %2025 = vmatpush1.msra.mxu0 0.0
        %2026 = vmatprep.subr.mxu0 0.0
        %2027 = vmatpush1.msra.mxu0 0.0
        %2028 = vmatprep.subr.mxu0 0.0
        %2029 = vmatpush1.msra.mxu0 0.0
        %2030 = vmatprep.subr.mxu0 0.0
        %2031 = vmatpush1.msra.mxu0 0.0
        %2032 = vmatprep.subr.mxu0 0.0
        %2033 = vmatpush1.msra.mxu0 0.0
        %2034 = vmatprep.subr.mxu0 0.0
        %2035 = vmatpush1.msra.mxu0 0.0
        %2036 = vmatprep.subr.mxu0 0.0
        %2037 = vmatpush1.msra.mxu0 0.0
        %2038 = vmatprep.subr.mxu0 0.0
        %2039 = vmatpush1.msra.mxu0 0.0
        %2040 = vmatprep.subr.mxu0 0.0
        %2041 = vmatpush1.msra.mxu0 0.0
        %2042 = vmatprep.subr.mxu0 0.0
        %2043 = vmatpush1.msra.mxu0 0.0
        %2044 = vmatprep.subr.mxu0 0.0
        %2045 = vmatpush1.msra.mxu0 0.0
        %2046 = vmatprep.subr.mxu0 0.0
        %2047 = vmatpush1.msra.mxu0 0.0
        %2048 = vmatprep.mubr.f32.mxu0 0.0
        %2049 = vmatmul.mubr.f32.gmra.mrb[0].mxu0 %v1979
        %v2050 = vpop.f32.mrb[0].mxu0
        %v2051 = vadd.f32 0.0, %v2050
        %v2052 = vpop.f32.mrb[0].mxu0
        %2053 = vmatprep.mubr.f32.mxu0 0.0
        %2054 = vmatmul.mubr.f32.gmra.mrb[0].mxu0 %v1982
        %v2055 = vpop.f32.mrb[0].mxu0
        %v2056 = vadd.f32 0.0, %v2055
        %v2057 = vpop.f32.mrb[0].mxu0
        %2058 = vdwg.mxu0
        %v2059 = vld [vmem:[%s25] sm:$0xff]
        %v2060 = vld [vmem:[%s25 + $0x8] sm:$0xff]
        %v2062 = vsel %vm948, %v2051, 0
        %v2065 = vsel %vm948, %v2056, 0
        %2067 = vmatprep.subr.mxu0 0.0
        %2068 = vmatpush1.msra.mxu0 %v2059
        %2069 = vmatprep.subr.mxu0 0.0
        %2070 = vmatpush1.msra.mxu0 %v2060
        %2071 = vmatprep.subr.mxu0 0.0
        %2072 = vmatpush1.msra.mxu0 0.0
        %2073 = vmatprep.subr.mxu0 0.0
        %2074 = vmatpush1.msra.mxu0 0.0
        %2075 = vmatprep.subr.mxu0 0.0
        %2076 = vmatpush1.msra.mxu0 0.0
        %2077 = vmatprep.subr.mxu0 0.0
        %2078 = vmatpush1.msra.mxu0 0.0
        %2079 = vmatprep.subr.mxu0 0.0
        %2080 = vmatpush1.msra.mxu0 0.0
        %2081 = vmatprep.subr.mxu0 0.0
        %2082 = vmatpush1.msra.mxu0 0.0
        %2083 = vmatprep.subr.mxu0 0.0
        %2084 = vmatpush1.msra.mxu0 0.0
        %2085 = vmatprep.subr.mxu0 0.0
        %2086 = vmatpush1.msra.mxu0 0.0
        %2087 = vmatprep.subr.mxu0 0.0
        %2088 = vmatpush1.msra.mxu0 0.0
        %2089 = vmatprep.subr.mxu0 0.0
        %2090 = vmatpush1.msra.mxu0 0.0
        %2091 = vmatprep.subr.mxu0 0.0
        %2092 = vmatpush1.msra.mxu0 0.0
        %2093 = vmatprep.subr.mxu0 0.0
        %2094 = vmatpush1.msra.mxu0 0.0
        %2095 = vmatprep.subr.mxu0 0.0
        %2096 = vmatpush1.msra.mxu0 0.0
        %2097 = vmatprep.subr.mxu0 0.0
        %2098 = vmatpush1.msra.mxu0 0.0
        %2099 = vmatprep.subr.mxu0 0.0
        %2100 = vmatpush1.msra.mxu0 0.0
        %2101 = vmatprep.subr.mxu0 0.0
        %2102 = vmatpush1.msra.mxu0 0.0
        %2103 = vmatprep.subr.mxu0 0.0
        %2104 = vmatpush1.msra.mxu0 0.0
        %2105 = vmatprep.subr.mxu0 0.0
        %2106 = vmatpush1.msra.mxu0 0.0
        %2107 = vmatprep.subr.mxu0 0.0
        %2108 = vmatpush1.msra.mxu0 0.0
        %2109 = vmatprep.subr.mxu0 0.0
        %2110 = vmatpush1.msra.mxu0 0.0
        %2111 = vmatprep.subr.mxu0 0.0
        %2112 = vmatpush1.msra.mxu0 0.0
        %2113 = vmatprep.subr.mxu0 0.0
        %2114 = vmatpush1.msra.mxu0 0.0
        %2115 = vmatprep.subr.mxu0 0.0
        %2116 = vmatpush1.msra.mxu0 0.0
        %2117 = vmatprep.subr.mxu0 0.0
        %2118 = vmatpush1.msra.mxu0 0.0
        %2119 = vmatprep.subr.mxu0 0.0
        %2120 = vmatpush1.msra.mxu0 0.0
        %2121 = vmatprep.subr.mxu0 0.0
        %2122 = vmatpush1.msra.mxu0 0.0
        %2123 = vmatprep.subr.mxu0 0.0
        %2124 = vmatpush1.msra.mxu0 0.0
        %2125 = vmatprep.subr.mxu0 0.0
        %2126 = vmatpush1.msra.mxu0 0.0
        %2127 = vmatprep.subr.mxu0 0.0
        %2128 = vmatpush1.msra.mxu0 0.0
        %2129 = vmatprep.subr.mxu0 0.0
        %2130 = vmatpush1.msra.mxu0 0.0
        %2131 = vmatprep.mubr.f32.mxu0 0.0
        %2132 = vmatmul.mubr.f32.gmra.mrb[0].mxu0 %v2062
        %v2133 = vpop.f32.mrb[0].mxu0
        %v2134 = vadd.f32 0.0, %v2133
        %v2135 = vpop.f32.mrb[0].mxu0
        %2136 = vmatprep.mubr.f32.mxu0 0.0
        %2137 = vmatmul.mubr.f32.gmra.mrb[0].mxu0 %v2065
        %v2138 = vpop.f32.mrb[0].mxu0
        %v2139 = vadd.f32 0.0, %v2138
        %v2140 = vpop.f32.mrb[0].mxu0
        %2141 = vdwg.mxu0
        %v2143 = vsel %vm948, %v1970, 0
        %v2146 = vsel %vm948, %v1971, 0
        %2148 = vmatprep.subr.mxu0 0.0
        %2149 = vmatpush1.msra.mxu0 %v1973
        %2150 = vmatprep.subr.mxu0 0.0
        %2151 = vmatpush1.msra.mxu0 %v1974
        %2152 = vmatprep.subr.mxu0 0.0
        %2153 = vmatpush1.msra.mxu0 0.0
        %2154 = vmatprep.subr.mxu0 0.0
        %2155 = vmatpush1.msra.mxu0 0.0
        %2156 = vmatprep.subr.mxu0 0.0
        %2157 = vmatpush1.msra.mxu0 0.0
        %2158 = vmatprep.subr.mxu0 0.0
        %2159 = vmatpush1.msra.mxu0 0.0
        %2160 = vmatprep.subr.mxu0 0.0
        %2161 = vmatpush1.msra.mxu0 0.0
        %2162 = vmatprep.subr.mxu0 0.0
        %2163 = vmatpush1.msra.mxu0 0.0
        %2164 = vmatprep.subr.mxu0 0.0
        %2165 = vmatpush1.msra.mxu0 0.0
        %2166 = vmatprep.subr.mxu0 0.0
        %2167 = vmatpush1.msra.mxu0 0.0
        %2168 = vmatprep.subr.mxu0 0.0
        %2169 = vmatpush1.msra.mxu0 0.0
        %2170 = vmatprep.subr.mxu0 0.0
        %2171 = vmatpush1.msra.mxu0 0.0
        %2172 = vmatprep.subr.mxu0 0.0
        %2173 = vmatpush1.msra.mxu0 0.0
        %2174 = vmatprep.subr.mxu0 0.0
        %2175 = vmatpush1.msra.mxu0 0.0
        %2176 = vmatprep.subr.mxu0 0.0
        %2177 = vmatpush1.msra.mxu0 0.0
        %2178 = vmatprep.subr.mxu0 0.0
        %2179 = vmatpush1.msra.mxu0 0.0
        %2180 = vmatprep.subr.mxu0 0.0
        %2181 = vmatpush1.msra.mxu0 0.0
        %2182 = vmatprep.subr.mxu0 0.0
        %2183 = vmatpush1.msra.mxu0 0.0
        %2184 = vmatprep.subr.mxu0 0.0
        %2185 = vmatpush1.msra.mxu0 0.0
        %2186 = vmatprep.subr.mxu0 0.0
        %2187 = vmatpush1.msra.mxu0 0.0
        %2188 = vmatprep.subr.mxu0 0.0
        %2189 = vmatpush1.msra.mxu0 0.0
        %2190 = vmatprep.subr.mxu0 0.0
        %2191 = vmatpush1.msra.mxu0 0.0
        %2192 = vmatprep.subr.mxu0 0.0
        %2193 = vmatpush1.msra.mxu0 0.0
        %2194 = vmatprep.subr.mxu0 0.0
        %2195 = vmatpush1.msra.mxu0 0.0
        %2196 = vmatprep.subr.mxu0 0.0
        %2197 = vmatpush1.msra.mxu0 0.0
        %2198 = vmatprep.subr.mxu0 0.0
        %2199 = vmatpush1.msra.mxu0 0.0
        %2200 = vmatprep.subr.mxu0 0.0
        %2201 = vmatpush1.msra.mxu0 0.0
        %2202 = vmatprep.subr.mxu0 0.0
        %2203 = vmatpush1.msra.mxu0 0.0
        %2204 = vmatprep.subr.mxu0 0.0
        %2205 = vmatpush1.msra.mxu0 0.0
        %2206 = vmatprep.subr.mxu0 0.0
        %2207 = vmatpush1.msra.mxu0 0.0
        %2208 = vmatprep.subr.mxu0 0.0
        %2209 = vmatpush1.msra.mxu0 0.0
        %2210 = vmatprep.subr.mxu0 0.0
        %2211 = vmatpush1.msra.mxu0 0.0
        %2212 = vmatprep.mubr.f32.mxu0 0.0
        %2213 = vmatmul.mubr.f32.gmra.mrb[0].mxu0 %v2143
        %v2214 = vpop.f32.mrb[0].mxu0
        %v2215 = vadd.f32 %v2134, %v2214
        %v2216 = vpop.f32.mrb[0].mxu0
        %2217 = vmatprep.mubr.f32.mxu0 0.0
        %2218 = vmatmul.mubr.f32.gmra.mrb[0].mxu0 %v2146
        %v2219 = vpop.f32.mrb[0].mxu0
        %v2220 = vadd.f32 %v2139, %v2219
        %v2221 = vpop.f32.mrb[0].mxu0
        %2222 = vdwg.mxu0
        %2223 = vmatprep.subr.mxu0 0.0
        %2224 = vmatpush1.msra.mxu0 %v1970
        %2225 = vmatprep.subr.mxu0 0.0
        %2226 = vmatpush1.msra.mxu0 %v1971
        %2227 = vmatprep.subr.mxu0 0.0
        %2228 = vmatpush1.msra.mxu0 0.0
        %2229 = vmatprep.subr.mxu0 0.0
        %2230 = vmatpush1.msra.mxu0 0.0
        %2231 = vmatprep.subr.mxu0 0.0
        %2232 = vmatpush1.msra.mxu0 0.0
        %2233 = vmatprep.subr.mxu0 0.0
        %2234 = vmatpush1.msra.mxu0 0.0
        %2235 = vmatprep.subr.mxu0 0.0
        %2236 = vmatpush1.msra.mxu0 0.0
        %2237 = vmatprep.subr.mxu0 0.0
        %2238 = vmatpush1.msra.mxu0 0.0
        %2239 = vmatprep.subr.mxu0 0.0
        %2240 = vmatpush1.msra.mxu0 0.0
        %2241 = vmatprep.subr.mxu0 0.0
        %2242 = vmatpush1.msra.mxu0 0.0
        %2243 = vmatprep.subr.mxu0 0.0
        %2244 = vmatpush1.msra.mxu0 0.0
        %2245 = vmatprep.subr.mxu0 0.0
        %2246 = vmatpush1.msra.mxu0 0.0
        %2247 = vmatprep.subr.mxu0 0.0
        %2248 = vmatpush1.msra.mxu0 0.0
        %2249 = vmatprep.subr.mxu0 0.0
        %2250 = vmatpush1.msra.mxu0 0.0
        %2251 = vmatprep.subr.mxu0 0.0
        %2252 = vmatpush1.msra.mxu0 0.0
        %2253 = vmatprep.subr.mxu0 0.0
        %2254 = vmatpush1.msra.mxu0 0.0
        %2255 = vmatprep.subr.mxu0 0.0
        %2256 = vmatpush1.msra.mxu0 0.0
        %2257 = vmatprep.subr.mxu0 0.0
        %2258 = vmatpush1.msra.mxu0 0.0
        %2259 = vmatprep.subr.mxu0 0.0
        %2260 = vmatpush1.msra.mxu0 0.0
        %2261 = vmatprep.subr.mxu0 0.0
        %2262 = vmatpush1.msra.mxu0 0.0
        %2263 = vmatprep.subr.mxu0 0.0
        %2264 = vmatpush1.msra.mxu0 0.0
        %2265 = vmatprep.subr.mxu0 0.0
        %2266 = vmatpush1.msra.mxu0 0.0
        %2267 = vmatprep.subr.mxu0 0.0
        %2268 = vmatpush1.msra.mxu0 0.0
        %2269 = vmatprep.subr.mxu0 0.0
        %2270 = vmatpush1.msra.mxu0 0.0
        %2271 = vmatprep.subr.mxu0 0.0
        %2272 = vmatpush1.msra.mxu0 0.0
        %2273 = vmatprep.subr.mxu0 0.0
        %2274 = vmatpush1.msra.mxu0 0.0
        %2275 = vmatprep.subr.mxu0 0.0
        %2276 = vmatpush1.msra.mxu0 0.0
        %2277 = vmatprep.subr.mxu0 0.0
        %2278 = vmatpush1.msra.mxu0 0.0
        %2279 = vmatprep.subr.mxu0 0.0
        %2280 = vmatpush1.msra.mxu0 0.0
        %2281 = vmatprep.subr.mxu0 0.0
        %2282 = vmatpush1.msra.mxu0 0.0
        %2283 = vmatprep.subr.mxu0 0.0
        %2284 = vmatpush1.msra.mxu0 0.0
        %2285 = vmatprep.subr.mxu0 0.0
        %2286 = vmatpush1.msra.mxu0 0.0
        %2287 = vmatprep.mubr.f32.mxu0 0.0
        %2288 = vmatmul.mubr.f32.gmra.mrb[0].mxu0 %v950
        %v2289 = vpop.f32.mrb[0].mxu0
        %v2290 = vadd.f32 0.0, %v2289
        %v2291 = vpop.f32.mrb[0].mxu0
        %2292 = vmatprep.mubr.f32.mxu0 0.0
        %2293 = vmatmul.mubr.f32.gmra.mrb[0].mxu0 %v953
        %v2294 = vpop.f32.mrb[0].mxu0
        %v2295 = vadd.f32 0.0, %v2294
        %v2296 = vpop.f32.mrb[0].mxu0
        %2297 = vdwg.mxu0
        %s2298 = scalar_lea.vmem %s25, 16
        %v2299 = vld [vmem:[%s2298] sm:$0xff]
        %v2300 = vld [vmem:[%s2298 + $0x8] sm:$0xff]
        %v2302 = vsel %vm948, %v2290, 0
        %v2305 = vsel %vm948, %v2295, 0
        %2307 = vmatprep.subr.mxu0 0.0
        %2308 = vmatpush1.msra.mxu0 %v2299
        %2309 = vmatprep.subr.mxu0 0.0
        %2310 = vmatpush1.msra.mxu0 %v2300
        %2311 = vmatprep.subr.mxu0 0.0
        %2312 = vmatpush1.msra.mxu0 0.0
        %2313 = vmatprep.subr.mxu0 0.0
        %2314 = vmatpush1.msra.mxu0 0.0
        %2315 = vmatprep.subr.mxu0 0.0
        %2316 = vmatpush1.msra.mxu0 0.0
        %2317 = vmatprep.subr.mxu0 0.0
        %2318 = vmatpush1.msra.mxu0 0.0
        %2319 = vmatprep.subr.mxu0 0.0
        %2320 = vmatpush1.msra.mxu0 0.0
        %2321 = vmatprep.subr.mxu0 0.0
        %2322 = vmatpush1.msra.mxu0 0.0
        %2323 = vmatprep.subr.mxu0 0.0
        %2324 = vmatpush1.msra.mxu0 0.0
        %2325 = vmatprep.subr.mxu0 0.0
        %2326 = vmatpush1.msra.mxu0 0.0
        %2327 = vmatprep.subr.mxu0 0.0
        %2328 = vmatpush1.msra.mxu0 0.0
        %2329 = vmatprep.subr.mxu0 0.0
        %2330 = vmatpush1.msra.mxu0 0.0
        %2331 = vmatprep.subr.mxu0 0.0
        %2332 = vmatpush1.msra.mxu0 0.0
        %2333 = vmatprep.subr.mxu0 0.0
        %2334 = vmatpush1.msra.mxu0 0.0
        %2335 = vmatprep.subr.mxu0 0.0
        %2336 = vmatpush1.msra.mxu0 0.0
        %2337 = vmatprep.subr.mxu0 0.0
        %2338 = vmatpush1.msra.mxu0 0.0
        %2339 = vmatprep.subr.mxu0 0.0
        %2340 = vmatpush1.msra.mxu0 0.0
        %2341 = vmatprep.subr.mxu0 0.0
        %2342 = vmatpush1.msra.mxu0 0.0
        %2343 = vmatprep.subr.mxu0 0.0
        %2344 = vmatpush1.msra.mxu0 0.0
        %2345 = vmatprep.subr.mxu0 0.0
        %2346 = vmatpush1.msra.mxu0 0.0
        %2347 = vmatprep.subr.mxu0 0.0
        %2348 = vmatpush1.msra.mxu0 0.0
        %2349 = vmatprep.subr.mxu0 0.0
        %2350 = vmatpush1.msra.mxu0 0.0
        %2351 = vmatprep.subr.mxu0 0.0
        %2352 = vmatpush1.msra.mxu0 0.0
        %2353 = vmatprep.subr.mxu0 0.0
        %2354 = vmatpush1.msra.mxu0 0.0
        %2355 = vmatprep.subr.mxu0 0.0
        %2356 = vmatpush1.msra.mxu0 0.0
        %2357 = vmatprep.subr.mxu0 0.0
        %2358 = vmatpush1.msra.mxu0 0.0
        %2359 = vmatprep.subr.mxu0 0.0
        %2360 = vmatpush1.msra.mxu0 0.0
        %2361 = vmatprep.subr.mxu0 0.0
        %2362 = vmatpush1.msra.mxu0 0.0
        %2363 = vmatprep.subr.mxu0 0.0
        %2364 = vmatpush1.msra.mxu0 0.0
        %2365 = vmatprep.subr.mxu0 0.0
        %2366 = vmatpush1.msra.mxu0 0.0
        %2367 = vmatprep.subr.mxu0 0.0
        %2368 = vmatpush1.msra.mxu0 0.0
        %2369 = vmatprep.subr.mxu0 0.0
        %2370 = vmatpush1.msra.mxu0 0.0
        %2371 = vmatprep.mubr.f32.mxu0 0.0
        %2372 = vmatmul.mubr.f32.gmra.mrb[0].mxu0 %v2302
        %v2373 = vpop.f32.mrb[0].mxu0
        %v2374 = vadd.f32 0.0, %v2373
        %v2375 = vpop.f32.mrb[0].mxu0
        %2376 = vmatprep.mubr.f32.mxu0 0.0
        %2377 = vmatmul.mubr.f32.gmra.mrb[0].mxu0 %v2305
        %v2378 = vpop.f32.mrb[0].mxu0
        %v2379 = vadd.f32 0.0, %v2378
        %v2380 = vpop.f32.mrb[0].mxu0
        %2381 = vdwg.mxu0
        %v2382 = vadd.f32 %v2215, %v2374
        %v2383 = vadd.f32 %v2220, %v2379
        %v2384 = vld [vmem:[%s27] sm:$0x1]
        %v2386 = vlaneseq
        %v2387 = vshrl.u32 %v2386, 7
        %v2388 = vsub.s32 0, %v2387
        %v2389 = vrot.slane %v2384, %v2388
        %v2391 = vadd.f32 %v2382, %v2389
        %v2392 = vadd.f32 %v2383, %v2389
        %v2393 = vld [vmem:[%s29] sm:$0x1]
        %v2395 = vlaneseq
        %v2396 = vshrl.u32 %v2395, 7
        %v2397 = vsub.s32 0, %v2396
        %v2398 = vrot.slane %v2393, %v2397
        %v2400 = vmul.f32 %v2391, %v2398
        %v2401 = vmul.f32 %v2392, %v2398
        %v2402 = vld [vmem:[%s31] sm:$0x1]
        %v2404 = vlaneseq
        %v2405 = vshrl.u32 %v2404, 7
        %v2406 = vsub.s32 0, %v2405
        %v2407 = vrot.slane %v2402, %v2406
        %v2409 = vadd.f32 %v2400, %v2407
        %v2410 = vadd.f32 %v2401, %v2407
        %v2411 = vmax.f32 %v2409, 0.0
        %v2412 = vmax.f32 %v2410, 0.0
        %v2413 = vand.u32 2147483647, %v2409
        %v2414 = vand.u32 2147483647, %v2410
        %v2415 = vsub.f32 0.0, %v2413
        %v2416 = vsub.f32 0.0, %v2414
        %v2417 = vmul.f32 %v2415, 1.442695
        %v2418 = vpow.pop %v2417
        %v2419 = vmul.f32 %v2416, 1.442695
        %v2420 = vpow.pop %v2419
        %v2421 = vadd.f32 %v2418, 1.0
        %v2422 = vlog2.pop %v2421
        %v2423 = vmul.f32 %v2422, 0.6931472
        %v2424 = vmul.f32 -0.5, %v2418
        %v2425 = vadd.f32 %v2424, 1.0
        %v2426 = vmul.f32 %v2425, %v2418
        %v2427 = vand.u32 2147483647, %v2418
        %vm2428 = vcmp.lt.f32.partialorder %v2427, 0.0004427343
        %v2429 = vsel %vm2428, %v2426, %v2423
        %v2430 = vadd.f32 %v2420, 1.0
        %v2431 = vlog2.pop %v2430
        %v2432 = vmul.f32 %v2431, 0.6931472
        %v2433 = vmul.f32 -0.5, %v2420
        %v2434 = vadd.f32 %v2433, 1.0
        %v2435 = vmul.f32 %v2434, %v2420
        %v2436 = vand.u32 2147483647, %v2420
        %vm2437 = vcmp.lt.f32.partialorder %v2436, 0.0004427343
        %v2438 = vsel %vm2437, %v2435, %v2432
        %v2439 = vadd.f32 %v2411, %v2429
        %v2440 = vadd.f32 %v2412, %v2438
        %v2441 = vtanh.pop %v2439
        %v2442 = vtanh.pop %v2440
        %v2443 = vmul.f32 %v2409, %v2441
        %v2444 = vmul.f32 %v2410, %v2442
        %s2445 = scalar_lea.vmem %s33, 32
        %v2446 = vld [vmem:[%s2445] sm:$0xff]
        %v2447 = vld [vmem:[%s2445 + $0x8] sm:$0xff]
        %2448 = vmatprep.subr.mxu0 0.0
        %2449 = vmatpush1.msra.mxu0 %v2443
        %2450 = vmatprep.subr.mxu0 0.0
        %2451 = vmatpush1.msra.mxu0 %v2444
        %2452 = vmatprep.subr.mxu0 0.0
        %2453 = vmatpush1.msra.mxu0 0.0
        %2454 = vmatprep.subr.mxu0 0.0
        %2455 = vmatpush1.msra.mxu0 0.0
        %2456 = vmatprep.subr.mxu0 0.0
        %2457 = vmatpush1.msra.mxu0 0.0
        %2458 = vmatprep.subr.mxu0 0.0
        %2459 = vmatpush1.msra.mxu0 0.0
        %2460 = vmatprep.subr.mxu0 0.0
        %2461 = vmatpush1.msra.mxu0 0.0
        %2462 = vmatprep.subr.mxu0 0.0
        %2463 = vmatpush1.msra.mxu0 0.0
        %2464 = vmatprep.subr.mxu0 0.0
        %2465 = vmatpush1.msra.mxu0 0.0
        %2466 = vmatprep.subr.mxu0 0.0
        %2467 = vmatpush1.msra.mxu0 0.0
        %2468 = vmatprep.subr.mxu0 0.0
        %2469 = vmatpush1.msra.mxu0 0.0
        %2470 = vmatprep.subr.mxu0 0.0
        %2471 = vmatpush1.msra.mxu0 0.0
        %2472 = vmatprep.subr.mxu0 0.0
        %2473 = vmatpush1.msra.mxu0 0.0
        %2474 = vmatprep.subr.mxu0 0.0
        %2475 = vmatpush1.msra.mxu0 0.0
        %2476 = vmatprep.subr.mxu0 0.0
        %2477 = vmatpush1.msra.mxu0 0.0
        %2478 = vmatprep.subr.mxu0 0.0
        %2479 = vmatpush1.msra.mxu0 0.0
        %2480 = vmatprep.subr.mxu0 0.0
        %2481 = vmatpush1.msra.mxu0 0.0
        %2482 = vmatprep.subr.mxu0 0.0
        %2483 = vmatpush1.msra.mxu0 0.0
        %2484 = vmatprep.subr.mxu0 0.0
        %2485 = vmatpush1.msra.mxu0 0.0
        %2486 = vmatprep.subr.mxu0 0.0
        %2487 = vmatpush1.msra.mxu0 0.0
        %2488 = vmatprep.subr.mxu0 0.0
        %2489 = vmatpush1.msra.mxu0 0.0
        %2490 = vmatprep.subr.mxu0 0.0
        %2491 = vmatpush1.msra.mxu0 0.0
        %2492 = vmatprep.subr.mxu0 0.0
        %2493 = vmatpush1.msra.mxu0 0.0
        %2494 = vmatprep.subr.mxu0 0.0
        %2495 = vmatpush1.msra.mxu0 0.0
        %2496 = vmatprep.subr.mxu0 0.0
        %2497 = vmatpush1.msra.mxu0 0.0
        %2498 = vmatprep.subr.mxu0 0.0
        %2499 = vmatpush1.msra.mxu0 0.0
        %2500 = vmatprep.subr.mxu0 0.0
        %2501 = vmatpush1.msra.mxu0 0.0
        %2502 = vmatprep.subr.mxu0 0.0
        %2503 = vmatpush1.msra.mxu0 0.0
        %2504 = vmatprep.subr.mxu0 0.0
        %2505 = vmatpush1.msra.mxu0 0.0
        %2506 = vmatprep.subr.mxu0 0.0
        %2507 = vmatpush1.msra.mxu0 0.0
        %2508 = vmatprep.subr.mxu0 0.0
        %2509 = vmatpush1.msra.mxu0 0.0
        %2510 = vmatprep.subr.mxu0 0.0
        %2511 = vmatpush1.msra.mxu0 0.0
        %2512 = vmatprep.mubr.f32.mxu0 0.0
        %2513 = vmatmul.mubr.f32.gmra.mrb[0].mxu0 %v1979
        %v2514 = vpop.f32.mrb[0].mxu0
        %v2515 = vadd.f32 0.0, %v2514
        %v2516 = vpop.f32.mrb[0].mxu0
        %2517 = vmatprep.mubr.f32.mxu0 0.0
        %2518 = vmatmul.mubr.f32.gmra.mrb[0].mxu0 %v1982
        %v2519 = vpop.f32.mrb[0].mxu0
        %v2520 = vadd.f32 0.0, %v2519
        %v2521 = vpop.f32.mrb[0].mxu0
        %2522 = vdwg.mxu0
        %v2523 = vld [vmem:[%s33] sm:$0xff]
        %v2524 = vld [vmem:[%s33 + $0x8] sm:$0xff]
        %v2526 = vsel %vm948, %v2515, 0
        %v2529 = vsel %vm948, %v2520, 0
        %2531 = vmatprep.subr.mxu0 0.0
        %2532 = vmatpush1.msra.mxu0 %v2523
        %2533 = vmatprep.subr.mxu0 0.0
        %2534 = vmatpush1.msra.mxu0 %v2524
        %2535 = vmatprep.subr.mxu0 0.0
        %2536 = vmatpush1.msra.mxu0 0.0
        %2537 = vmatprep.subr.mxu0 0.0
        %2538 = vmatpush1.msra.mxu0 0.0
        %2539 = vmatprep.subr.mxu0 0.0
        %2540 = vmatpush1.msra.mxu0 0.0
        %2541 = vmatprep.subr.mxu0 0.0
        %2542 = vmatpush1.msra.mxu0 0.0
        %2543 = vmatprep.subr.mxu0 0.0
        %2544 = vmatpush1.msra.mxu0 0.0
        %2545 = vmatprep.subr.mxu0 0.0
        %2546 = vmatpush1.msra.mxu0 0.0
        %2547 = vmatprep.subr.mxu0 0.0
        %2548 = vmatpush1.msra.mxu0 0.0
        %2549 = vmatprep.subr.mxu0 0.0
        %2550 = vmatpush1.msra.mxu0 0.0
        %2551 = vmatprep.subr.mxu0 0.0
        %2552 = vmatpush1.msra.mxu0 0.0
        %2553 = vmatprep.subr.mxu0 0.0
        %2554 = vmatpush1.msra.mxu0 0.0
        %2555 = vmatprep.subr.mxu0 0.0
        %2556 = vmatpush1.msra.mxu0 0.0
        %2557 = vmatprep.subr.mxu0 0.0
        %2558 = vmatpush1.msra.mxu0 0.0
        %2559 = vmatprep.subr.mxu0 0.0
        %2560 = vmatpush1.msra.mxu0 0.0
        %2561 = vmatprep.subr.mxu0 0.0
        %2562 = vmatpush1.msra.mxu0 0.0
        %2563 = vmatprep.subr.mxu0 0.0
        %2564 = vmatpush1.msra.mxu0 0.0
        %2565 = vmatprep.subr.mxu0 0.0
        %2566 = vmatpush1.msra.mxu0 0.0
        %2567 = vmatprep.subr.mxu0 0.0
        %2568 = vmatpush1.msra.mxu0 0.0
        %2569 = vmatprep.subr.mxu0 0.0
        %2570 = vmatpush1.msra.mxu0 0.0
        %2571 = vmatprep.subr.mxu0 0.0
        %2572 = vmatpush1.msra.mxu0 0.0
        %2573 = vmatprep.subr.mxu0 0.0
        %2574 = vmatpush1.msra.mxu0 0.0
        %2575 = vmatprep.subr.mxu0 0.0
        %2576 = vmatpush1.msra.mxu0 0.0
        %2577 = vmatprep.subr.mxu0 0.0
        %2578 = vmatpush1.msra.mxu0 0.0
        %2579 = vmatprep.subr.mxu0 0.0
        %2580 = vmatpush1.msra.mxu0 0.0
        %2581 = vmatprep.subr.mxu0 0.0
        %2582 = vmatpush1.msra.mxu0 0.0
        %2583 = vmatprep.subr.mxu0 0.0
        %2584 = vmatpush1.msra.mxu0 0.0
        %2585 = vmatprep.subr.mxu0 0.0
        %2586 = vmatpush1.msra.mxu0 0.0
        %2587 = vmatprep.subr.mxu0 0.0
        %2588 = vmatpush1.msra.mxu0 0.0
        %2589 = vmatprep.subr.mxu0 0.0
        %2590 = vmatpush1.msra.mxu0 0.0
        %2591 = vmatprep.subr.mxu0 0.0
        %2592 = vmatpush1.msra.mxu0 0.0
        %2593 = vmatprep.subr.mxu0 0.0
        %2594 = vmatpush1.msra.mxu0 0.0
        %2595 = vmatprep.mubr.f32.mxu0 0.0
        %2596 = vmatmul.mubr.f32.gmra.mrb[0].mxu0 %v2526
        %v2597 = vpop.f32.mrb[0].mxu0
        %v2598 = vadd.f32 0.0, %v2597
        %v2599 = vpop.f32.mrb[0].mxu0
        %2600 = vmatprep.mubr.f32.mxu0 0.0
        %2601 = vmatmul.mubr.f32.gmra.mrb[0].mxu0 %v2529
        %v2602 = vpop.f32.mrb[0].mxu0
        %v2603 = vadd.f32 0.0, %v2602
        %v2604 = vpop.f32.mrb[0].mxu0
        %2605 = vdwg.mxu0
        %v2607 = vsel %vm948, %v2443, 0
        %v2610 = vsel %vm948, %v2444, 0
        %2612 = vmatprep.subr.mxu0 0.0
        %2613 = vmatpush1.msra.mxu0 %v2446
        %2614 = vmatprep.subr.mxu0 0.0
        %2615 = vmatpush1.msra.mxu0 %v2447
        %2616 = vmatprep.subr.mxu0 0.0
        %2617 = vmatpush1.msra.mxu0 0.0
        %2618 = vmatprep.subr.mxu0 0.0
        %2619 = vmatpush1.msra.mxu0 0.0
        %2620 = vmatprep.subr.mxu0 0.0
        %2621 = vmatpush1.msra.mxu0 0.0
        %2622 = vmatprep.subr.mxu0 0.0
        %2623 = vmatpush1.msra.mxu0 0.0
        %2624 = vmatprep.subr.mxu0 0.0
        %2625 = vmatpush1.msra.mxu0 0.0
        %2626 = vmatprep.subr.mxu0 0.0
        %2627 = vmatpush1.msra.mxu0 0.0
        %2628 = vmatprep.subr.mxu0 0.0
        %2629 = vmatpush1.msra.mxu0 0.0
        %2630 = vmatprep.subr.mxu0 0.0
        %2631 = vmatpush1.msra.mxu0 0.0
        %2632 = vmatprep.subr.mxu0 0.0
        %2633 = vmatpush1.msra.mxu0 0.0
        %2634 = vmatprep.subr.mxu0 0.0
        %2635 = vmatpush1.msra.mxu0 0.0
        %2636 = vmatprep.subr.mxu0 0.0
        %2637 = vmatpush1.msra.mxu0 0.0
        %2638 = vmatprep.subr.mxu0 0.0
        %2639 = vmatpush1.msra.mxu0 0.0
        %2640 = vmatprep.subr.mxu0 0.0
        %2641 = vmatpush1.msra.mxu0 0.0
        %2642 = vmatprep.subr.mxu0 0.0
        %2643 = vmatpush1.msra.mxu0 0.0
        %2644 = vmatprep.subr.mxu0 0.0
        %2645 = vmatpush1.msra.mxu0 0.0
        %2646 = vmatprep.subr.mxu0 0.0
        %2647 = vmatpush1.msra.mxu0 0.0
        %2648 = vmatprep.subr.mxu0 0.0
        %2649 = vmatpush1.msra.mxu0 0.0
        %2650 = vmatprep.subr.mxu0 0.0
        %2651 = vmatpush1.msra.mxu0 0.0
        %2652 = vmatprep.subr.mxu0 0.0
        %2653 = vmatpush1.msra.mxu0 0.0
        %2654 = vmatprep.subr.mxu0 0.0
        %2655 = vmatpush1.msra.mxu0 0.0
        %2656 = vmatprep.subr.mxu0 0.0
        %2657 = vmatpush1.msra.mxu0 0.0
        %2658 = vmatprep.subr.mxu0 0.0
        %2659 = vmatpush1.msra.mxu0 0.0
        %2660 = vmatprep.subr.mxu0 0.0
        %2661 = vmatpush1.msra.mxu0 0.0
        %2662 = vmatprep.subr.mxu0 0.0
        %2663 = vmatpush1.msra.mxu0 0.0
        %2664 = vmatprep.subr.mxu0 0.0
        %2665 = vmatpush1.msra.mxu0 0.0
        %2666 = vmatprep.subr.mxu0 0.0
        %2667 = vmatpush1.msra.mxu0 0.0
        %2668 = vmatprep.subr.mxu0 0.0
        %2669 = vmatpush1.msra.mxu0 0.0
        %2670 = vmatprep.subr.mxu0 0.0
        %2671 = vmatpush1.msra.mxu0 0.0
        %2672 = vmatprep.subr.mxu0 0.0
        %2673 = vmatpush1.msra.mxu0 0.0
        %2674 = vmatprep.subr.mxu0 0.0
        %2675 = vmatpush1.msra.mxu0 0.0
        %2676 = vmatprep.mubr.f32.mxu0 0.0
        %2677 = vmatmul.mubr.f32.gmra.mrb[0].mxu0 %v2607
        %v2678 = vpop.f32.mrb[0].mxu0
        %v2679 = vadd.f32 %v2598, %v2678
        %v2680 = vpop.f32.mrb[0].mxu0
        %2681 = vmatprep.mubr.f32.mxu0 0.0
        %2682 = vmatmul.mubr.f32.gmra.mrb[0].mxu0 %v2610
        %v2683 = vpop.f32.mrb[0].mxu0
        %v2684 = vadd.f32 %v2603, %v2683
        %v2685 = vpop.f32.mrb[0].mxu0
        %2686 = vdwg.mxu0
        %2687 = vmatprep.subr.mxu0 0.0
        %2688 = vmatpush1.msra.mxu0 %v2443
        %2689 = vmatprep.subr.mxu0 0.0
        %2690 = vmatpush1.msra.mxu0 %v2444
        %2691 = vmatprep.subr.mxu0 0.0
        %2692 = vmatpush1.msra.mxu0 0.0
        %2693 = vmatprep.subr.mxu0 0.0
        %2694 = vmatpush1.msra.mxu0 0.0
        %2695 = vmatprep.subr.mxu0 0.0
        %2696 = vmatpush1.msra.mxu0 0.0
        %2697 = vmatprep.subr.mxu0 0.0
        %2698 = vmatpush1.msra.mxu0 0.0
        %2699 = vmatprep.subr.mxu0 0.0
        %2700 = vmatpush1.msra.mxu0 0.0
        %2701 = vmatprep.subr.mxu0 0.0
        %2702 = vmatpush1.msra.mxu0 0.0
        %2703 = vmatprep.subr.mxu0 0.0
        %2704 = vmatpush1.msra.mxu0 0.0
        %2705 = vmatprep.subr.mxu0 0.0
        %2706 = vmatpush1.msra.mxu0 0.0
        %2707 = vmatprep.subr.mxu0 0.0
        %2708 = vmatpush1.msra.mxu0 0.0
        %2709 = vmatprep.subr.mxu0 0.0
        %2710 = vmatpush1.msra.mxu0 0.0
        %2711 = vmatprep.subr.mxu0 0.0
        %2712 = vmatpush1.msra.mxu0 0.0
        %2713 = vmatprep.subr.mxu0 0.0
        %2714 = vmatpush1.msra.mxu0 0.0
        %2715 = vmatprep.subr.mxu0 0.0
        %2716 = vmatpush1.msra.mxu0 0.0
        %2717 = vmatprep.subr.mxu0 0.0
        %2718 = vmatpush1.msra.mxu0 0.0
        %2719 = vmatprep.subr.mxu0 0.0
        %2720 = vmatpush1.msra.mxu0 0.0
        %2721 = vmatprep.subr.mxu0 0.0
        %2722 = vmatpush1.msra.mxu0 0.0
        %2723 = vmatprep.subr.mxu0 0.0
        %2724 = vmatpush1.msra.mxu0 0.0
        %2725 = vmatprep.subr.mxu0 0.0
        %2726 = vmatpush1.msra.mxu0 0.0
        %2727 = vmatprep.subr.mxu0 0.0
        %2728 = vmatpush1.msra.mxu0 0.0
        %2729 = vmatprep.subr.mxu0 0.0
        %2730 = vmatpush1.msra.mxu0 0.0
        %2731 = vmatprep.subr.mxu0 0.0
        %2732 = vmatpush1.msra.mxu0 0.0
        %2733 = vmatprep.subr.mxu0 0.0
        %2734 = vmatpush1.msra.mxu0 0.0
        %2735 = vmatprep.subr.mxu0 0.0
        %2736 = vmatpush1.msra.mxu0 0.0
        %2737 = vmatprep.subr.mxu0 0.0
        %2738 = vmatpush1.msra.mxu0 0.0
        %2739 = vmatprep.subr.mxu0 0.0
        %2740 = vmatpush1.msra.mxu0 0.0
        %2741 = vmatprep.subr.mxu0 0.0
        %2742 = vmatpush1.msra.mxu0 0.0
        %2743 = vmatprep.subr.mxu0 0.0
        %2744 = vmatpush1.msra.mxu0 0.0
        %2745 = vmatprep.subr.mxu0 0.0
        %2746 = vmatpush1.msra.mxu0 0.0
        %2747 = vmatprep.subr.mxu0 0.0
        %2748 = vmatpush1.msra.mxu0 0.0
        %2749 = vmatprep.subr.mxu0 0.0
        %2750 = vmatpush1.msra.mxu0 0.0
        %2751 = vmatprep.mubr.f32.mxu0 0.0
        %2752 = vmatmul.mubr.f32.gmra.mrb[0].mxu0 %v950
        %v2753 = vpop.f32.mrb[0].mxu0
        %v2754 = vadd.f32 0.0, %v2753
        %v2755 = vpop.f32.mrb[0].mxu0
        %2756 = vmatprep.mubr.f32.mxu0 0.0
        %2757 = vmatmul.mubr.f32.gmra.mrb[0].mxu0 %v953
        %v2758 = vpop.f32.mrb[0].mxu0
        %v2759 = vadd.f32 0.0, %v2758
        %v2760 = vpop.f32.mrb[0].mxu0
        %2761 = vdwg.mxu0
        %s2762 = scalar_lea.vmem %s33, 16
        %v2763 = vld [vmem:[%s2762] sm:$0xff]
        %v2764 = vld [vmem:[%s2762 + $0x8] sm:$0xff]
        %v2766 = vsel %vm948, %v2754, 0
        %v2769 = vsel %vm948, %v2759, 0
        %2771 = vmatprep.subr.mxu0 0.0
        %2772 = vmatpush1.msra.mxu0 %v2763
        %2773 = vmatprep.subr.mxu0 0.0
        %2774 = vmatpush1.msra.mxu0 %v2764
        %2775 = vmatprep.subr.mxu0 0.0
        %2776 = vmatpush1.msra.mxu0 0.0
        %2777 = vmatprep.subr.mxu0 0.0
        %2778 = vmatpush1.msra.mxu0 0.0
        %2779 = vmatprep.subr.mxu0 0.0
        %2780 = vmatpush1.msra.mxu0 0.0
        %2781 = vmatprep.subr.mxu0 0.0
        %2782 = vmatpush1.msra.mxu0 0.0
        %2783 = vmatprep.subr.mxu0 0.0
        %2784 = vmatpush1.msra.mxu0 0.0
        %2785 = vmatprep.subr.mxu0 0.0
        %2786 = vmatpush1.msra.mxu0 0.0
        %2787 = vmatprep.subr.mxu0 0.0
        %2788 = vmatpush1.msra.mxu0 0.0
        %2789 = vmatprep.subr.mxu0 0.0
        %2790 = vmatpush1.msra.mxu0 0.0
        %2791 = vmatprep.subr.mxu0 0.0
        %2792 = vmatpush1.msra.mxu0 0.0
        %2793 = vmatprep.subr.mxu0 0.0
        %2794 = vmatpush1.msra.mxu0 0.0
        %2795 = vmatprep.subr.mxu0 0.0
        %2796 = vmatpush1.msra.mxu0 0.0
        %2797 = vmatprep.subr.mxu0 0.0
        %2798 = vmatpush1.msra.mxu0 0.0
        %2799 = vmatprep.subr.mxu0 0.0
        %2800 = vmatpush1.msra.mxu0 0.0
        %2801 = vmatprep.subr.mxu0 0.0
        %2802 = vmatpush1.msra.mxu0 0.0
        %2803 = vmatprep.subr.mxu0 0.0
        %2804 = vmatpush1.msra.mxu0 0.0
        %2805 = vmatprep.subr.mxu0 0.0
        %2806 = vmatpush1.msra.mxu0 0.0
        %2807 = vmatprep.subr.mxu0 0.0
        %2808 = vmatpush1.msra.mxu0 0.0
        %2809 = vmatprep.subr.mxu0 0.0
        %2810 = vmatpush1.msra.mxu0 0.0
        %2811 = vmatprep.subr.mxu0 0.0
        %2812 = vmatpush1.msra.mxu0 0.0
        %2813 = vmatprep.subr.mxu0 0.0
        %2814 = vmatpush1.msra.mxu0 0.0
        %2815 = vmatprep.subr.mxu0 0.0
        %2816 = vmatpush1.msra.mxu0 0.0
        %2817 = vmatprep.subr.mxu0 0.0
        %2818 = vmatpush1.msra.mxu0 0.0
        %2819 = vmatprep.subr.mxu0 0.0
        %2820 = vmatpush1.msra.mxu0 0.0
        %2821 = vmatprep.subr.mxu0 0.0
        %2822 = vmatpush1.msra.mxu0 0.0
        %2823 = vmatprep.subr.mxu0 0.0
        %2824 = vmatpush1.msra.mxu0 0.0
        %2825 = vmatprep.subr.mxu0 0.0
        %2826 = vmatpush1.msra.mxu0 0.0
        %2827 = vmatprep.subr.mxu0 0.0
        %2828 = vmatpush1.msra.mxu0 0.0
        %2829 = vmatprep.subr.mxu0 0.0
        %2830 = vmatpush1.msra.mxu0 0.0
        %2831 = vmatprep.subr.mxu0 0.0
        %2832 = vmatpush1.msra.mxu0 0.0
        %2833 = vmatprep.subr.mxu0 0.0
        %2834 = vmatpush1.msra.mxu0 0.0
        %2835 = vmatprep.mubr.f32.mxu0 0.0
        %2836 = vmatmul.mubr.f32.gmra.mrb[0].mxu0 %v2766
        %v2837 = vpop.f32.mrb[0].mxu0
        %v2838 = vadd.f32 0.0, %v2837
        %v2839 = vpop.f32.mrb[0].mxu0
        %2840 = vmatprep.mubr.f32.mxu0 0.0
        %2841 = vmatmul.mubr.f32.gmra.mrb[0].mxu0 %v2769
        %v2842 = vpop.f32.mrb[0].mxu0
        %v2843 = vadd.f32 0.0, %v2842
        %v2844 = vpop.f32.mrb[0].mxu0
        %2845 = vdwg.mxu0
        %v2846 = vadd.f32 %v2679, %v2838
        %v2847 = vadd.f32 %v2684, %v2843
        %v2848 = vld [vmem:[%s35] sm:$0x1]
        %v2850 = vlaneseq
        %v2851 = vshrl.u32 %v2850, 7
        %v2852 = vsub.s32 0, %v2851
        %v2853 = vrot.slane %v2848, %v2852
        %v2855 = vadd.f32 %v2846, %v2853
        %v2856 = vadd.f32 %v2847, %v2853
        %v2857 = vld [vmem:[%s37] sm:$0x1]
        %v2859 = vlaneseq
        %v2860 = vshrl.u32 %v2859, 7
        %v2861 = vsub.s32 0, %v2860
        %v2862 = vrot.slane %v2857, %v2861
        %v2864 = vmul.f32 %v2855, %v2862
        %v2865 = vmul.f32 %v2856, %v2862
        %v2866 = vld [vmem:[%s39] sm:$0x1]
        %v2868 = vlaneseq
        %v2869 = vshrl.u32 %v2868, 7
        %v2870 = vsub.s32 0, %v2869
        %v2871 = vrot.slane %v2866, %v2870
        %v2873 = vadd.f32 %v2864, %v2871
        %v2874 = vadd.f32 %v2865, %v2871
        %v2875 = vmax.f32 %v2873, 0.0
        %v2876 = vmax.f32 %v2874, 0.0
        %v2877 = vand.u32 2147483647, %v2873
        %v2878 = vand.u32 2147483647, %v2874
        %v2879 = vsub.f32 0.0, %v2877
        %v2880 = vsub.f32 0.0, %v2878
        %v2881 = vmul.f32 %v2879, 1.442695
        %v2882 = vpow.pop %v2881
        %v2883 = vmul.f32 %v2880, 1.442695
        %v2884 = vpow.pop %v2883
        %v2885 = vadd.f32 %v2882, 1.0
        %v2886 = vlog2.pop %v2885
        %v2887 = vmul.f32 %v2886, 0.6931472
        %v2888 = vmul.f32 -0.5, %v2882
        %v2889 = vadd.f32 %v2888, 1.0
        %v2890 = vmul.f32 %v2889, %v2882
        %v2891 = vand.u32 2147483647, %v2882
        %vm2892 = vcmp.lt.f32.partialorder %v2891, 0.0004427343
        %v2893 = vsel %vm2892, %v2890, %v2887
        %v2894 = vadd.f32 %v2884, 1.0
        %v2895 = vlog2.pop %v2894
        %v2896 = vmul.f32 %v2895, 0.6931472
        %v2897 = vmul.f32 -0.5, %v2884
        %v2898 = vadd.f32 %v2897, 1.0
        %v2899 = vmul.f32 %v2898, %v2884
        %v2900 = vand.u32 2147483647, %v2884
        %vm2901 = vcmp.lt.f32.partialorder %v2900, 0.0004427343
        %v2902 = vsel %vm2901, %v2899, %v2896
        %v2903 = vadd.f32 %v2875, %v2893
        %v2904 = vadd.f32 %v2876, %v2902
        %v2905 = vtanh.pop %v2903
        %v2906 = vtanh.pop %v2904
        %v2907 = vmul.f32 %v2873, %v2905
        %v2908 = vmul.f32 %v2874, %v2906
        %v2909 = vadd.f32 %v2907, %v1970
        %v2910 = vadd.f32 %v2908, %v1971
        %s2911 = scalar_lea.vmem %s41, 32
        %v2912 = vld [vmem:[%s2911] sm:$0xff]
        %v2913 = vld [vmem:[%s2911 + $0x8] sm:$0xff]
        %s2914 = scalar_lea.vmem %s3, 48
        %v2915 = vld [vmem:[%s2914] sm:$0xff]
        %v2916 = vld [vmem:[%s2914 + $0x8] sm:$0xff]
        %v2918 = vsel %vm948, %v2915, 0
        %v2921 = vsel %vm948, %v2916, 0
        %2923 = vmatprep.subr.mxu0 0.0
        %2924 = vmatpush1.msra.mxu0 %v2909
        %2925 = vmatprep.subr.mxu0 0.0
        %2926 = vmatpush1.msra.mxu0 %v2910
        %2927 = vmatprep.subr.mxu0 0.0
        %2928 = vmatpush1.msra.mxu0 0.0
        %2929 = vmatprep.subr.mxu0 0.0
        %2930 = vmatpush1.msra.mxu0 0.0
        %2931 = vmatprep.subr.mxu0 0.0
        %2932 = vmatpush1.msra.mxu0 0.0
        %2933 = vmatprep.subr.mxu0 0.0
        %2934 = vmatpush1.msra.mxu0 0.0
        %2935 = vmatprep.subr.mxu0 0.0
        %2936 = vmatpush1.msra.mxu0 0.0
        %2937 = vmatprep.subr.mxu0 0.0
        %2938 = vmatpush1.msra.mxu0 0.0
        %2939 = vmatprep.subr.mxu0 0.0
        %2940 = vmatpush1.msra.mxu0 0.0
        %2941 = vmatprep.subr.mxu0 0.0
        %2942 = vmatpush1.msra.mxu0 0.0
        %2943 = vmatprep.subr.mxu0 0.0
        %2944 = vmatpush1.msra.mxu0 0.0
        %2945 = vmatprep.subr.mxu0 0.0
        %2946 = vmatpush1.msra.mxu0 0.0
        %2947 = vmatprep.subr.mxu0 0.0
        %2948 = vmatpush1.msra.mxu0 0.0
        %2949 = vmatprep.subr.mxu0 0.0
        %2950 = vmatpush1.msra.mxu0 0.0
        %2951 = vmatprep.subr.mxu0 0.0
        %2952 = vmatpush1.msra.mxu0 0.0
        %2953 = vmatprep.subr.mxu0 0.0
        %2954 = vmatpush1.msra.mxu0 0.0
        %2955 = vmatprep.subr.mxu0 0.0
        %2956 = vmatpush1.msra.mxu0 0.0
        %2957 = vmatprep.subr.mxu0 0.0
        %2958 = vmatpush1.msra.mxu0 0.0
        %2959 = vmatprep.subr.mxu0 0.0
        %2960 = vmatpush1.msra.mxu0 0.0
        %2961 = vmatprep.subr.mxu0 0.0
        %2962 = vmatpush1.msra.mxu0 0.0
        %2963 = vmatprep.subr.mxu0 0.0
        %2964 = vmatpush1.msra.mxu0 0.0
        %2965 = vmatprep.subr.mxu0 0.0
        %2966 = vmatpush1.msra.mxu0 0.0
        %2967 = vmatprep.subr.mxu0 0.0
        %2968 = vmatpush1.msra.mxu0 0.0
        %2969 = vmatprep.subr.mxu0 0.0
        %2970 = vmatpush1.msra.mxu0 0.0
        %2971 = vmatprep.subr.mxu0 0.0
        %2972 = vmatpush1.msra.mxu0 0.0
        %2973 = vmatprep.subr.mxu0 0.0
        %2974 = vmatpush1.msra.mxu0 0.0
        %2975 = vmatprep.subr.mxu0 0.0
        %2976 = vmatpush1.msra.mxu0 0.0
        %2977 = vmatprep.subr.mxu0 0.0
        %2978 = vmatpush1.msra.mxu0 0.0
        %2979 = vmatprep.subr.mxu0 0.0
        %2980 = vmatpush1.msra.mxu0 0.0
        %2981 = vmatprep.subr.mxu0 0.0
        %2982 = vmatpush1.msra.mxu0 0.0
        %2983 = vmatprep.subr.mxu0 0.0
        %2984 = vmatpush1.msra.mxu0 0.0
        %2985 = vmatprep.subr.mxu0 0.0
        %2986 = vmatpush1.msra.mxu0 0.0
        %2987 = vmatprep.mubr.f32.mxu0 0.0
        %2988 = vmatmul.mubr.f32.gmra.mrb[0].mxu0 %v2918
        %v2989 = vpop.f32.mrb[0].mxu0
        %v2990 = vadd.f32 0.0, %v2989
        %v2991 = vpop.f32.mrb[0].mxu0
        %2992 = vmatprep.mubr.f32.mxu0 0.0
        %2993 = vmatmul.mubr.f32.gmra.mrb[0].mxu0 %v2921
        %v2994 = vpop.f32.mrb[0].mxu0
        %v2995 = vadd.f32 0.0, %v2994
        %v2996 = vpop.f32.mrb[0].mxu0
        %2997 = vdwg.mxu0
        %v2998 = vld [vmem:[%s41] sm:$0xff]
        %v2999 = vld [vmem:[%s41 + $0x8] sm:$0xff]
        %v3001 = vsel %vm948, %v2990, 0
        %v3004 = vsel %vm948, %v2995, 0
        %3006 = vmatprep.subr.mxu0 0.0
        %3007 = vmatpush1.msra.mxu0 %v2998
        %3008 = vmatprep.subr.mxu0 0.0
        %3009 = vmatpush1.msra.mxu0 %v2999
        %3010 = vmatprep.subr.mxu0 0.0
        %3011 = vmatpush1.msra.mxu0 0.0
        %3012 = vmatprep.subr.mxu0 0.0
        %3013 = vmatpush1.msra.mxu0 0.0
        %3014 = vmatprep.subr.mxu0 0.0
        %3015 = vmatpush1.msra.mxu0 0.0
        %3016 = vmatprep.subr.mxu0 0.0
        %3017 = vmatpush1.msra.mxu0 0.0
        %3018 = vmatprep.subr.mxu0 0.0
        %3019 = vmatpush1.msra.mxu0 0.0
        %3020 = vmatprep.subr.mxu0 0.0
        %3021 = vmatpush1.msra.mxu0 0.0
        %3022 = vmatprep.subr.mxu0 0.0
        %3023 = vmatpush1.msra.mxu0 0.0
        %3024 = vmatprep.subr.mxu0 0.0
        %3025 = vmatpush1.msra.mxu0 0.0
        %3026 = vmatprep.subr.mxu0 0.0
        %3027 = vmatpush1.msra.mxu0 0.0
        %3028 = vmatprep.subr.mxu0 0.0
        %3029 = vmatpush1.msra.mxu0 0.0
        %3030 = vmatprep.subr.mxu0 0.0
        %3031 = vmatpush1.msra.mxu0 0.0
        %3032 = vmatprep.subr.mxu0 0.0
        %3033 = vmatpush1.msra.mxu0 0.0
        %3034 = vmatprep.subr.mxu0 0.0
        %3035 = vmatpush1.msra.mxu0 0.0
        %3036 = vmatprep.subr.mxu0 0.0
        %3037 = vmatpush1.msra.mxu0 0.0
        %3038 = vmatprep.subr.mxu0 0.0
        %3039 = vmatpush1.msra.mxu0 0.0
        %3040 = vmatprep.subr.mxu0 0.0
        %3041 = vmatpush1.msra.mxu0 0.0
        %3042 = vmatprep.subr.mxu0 0.0
        %3043 = vmatpush1.msra.mxu0 0.0
        %3044 = vmatprep.subr.mxu0 0.0
        %3045 = vmatpush1.msra.mxu0 0.0
        %3046 = vmatprep.subr.mxu0 0.0
        %3047 = vmatpush1.msra.mxu0 0.0
        %3048 = vmatprep.subr.mxu0 0.0
        %3049 = vmatpush1.msra.mxu0 0.0
        %3050 = vmatprep.subr.mxu0 0.0
        %3051 = vmatpush1.msra.mxu0 0.0
        %3052 = vmatprep.subr.mxu0 0.0
        %3053 = vmatpush1.msra.mxu0 0.0
        %3054 = vmatprep.subr.mxu0 0.0
        %3055 = vmatpush1.msra.mxu0 0.0
        %3056 = vmatprep.subr.mxu0 0.0
        %3057 = vmatpush1.msra.mxu0 0.0
        %3058 = vmatprep.subr.mxu0 0.0
        %3059 = vmatpush1.msra.mxu0 0.0
        %3060 = vmatprep.subr.mxu0 0.0
        %3061 = vmatpush1.msra.mxu0 0.0
        %3062 = vmatprep.subr.mxu0 0.0
        %3063 = vmatpush1.msra.mxu0 0.0
        %3064 = vmatprep.subr.mxu0 0.0
        %3065 = vmatpush1.msra.mxu0 0.0
        %3066 = vmatprep.subr.mxu0 0.0
        %3067 = vmatpush1.msra.mxu0 0.0
        %3068 = vmatprep.subr.mxu0 0.0
        %3069 = vmatpush1.msra.mxu0 0.0
        %3070 = vmatprep.mubr.f32.mxu0 0.0
        %3071 = vmatmul.mubr.f32.gmra.mrb[0].mxu0 %v3001
        %v3072 = vpop.f32.mrb[0].mxu0
        %v3073 = vadd.f32 0.0, %v3072
        %v3074 = vpop.f32.mrb[0].mxu0
        %3075 = vmatprep.mubr.f32.mxu0 0.0
        %3076 = vmatmul.mubr.f32.gmra.mrb[0].mxu0 %v3004
        %v3077 = vpop.f32.mrb[0].mxu0
        %v3078 = vadd.f32 0.0, %v3077
        %v3079 = vpop.f32.mrb[0].mxu0
        %3080 = vdwg.mxu0
        %v3082 = vsel %vm948, %v2909, 0
        %v3085 = vsel %vm948, %v2910, 0
        %3087 = vmatprep.subr.mxu0 0.0
        %3088 = vmatpush1.msra.mxu0 %v2912
        %3089 = vmatprep.subr.mxu0 0.0
        %3090 = vmatpush1.msra.mxu0 %v2913
        %3091 = vmatprep.subr.mxu0 0.0
        %3092 = vmatpush1.msra.mxu0 0.0
        %3093 = vmatprep.subr.mxu0 0.0
        %3094 = vmatpush1.msra.mxu0 0.0
        %3095 = vmatprep.subr.mxu0 0.0
        %3096 = vmatpush1.msra.mxu0 0.0
        %3097 = vmatprep.subr.mxu0 0.0
        %3098 = vmatpush1.msra.mxu0 0.0
        %3099 = vmatprep.subr.mxu0 0.0
        %3100 = vmatpush1.msra.mxu0 0.0
        %3101 = vmatprep.subr.mxu0 0.0
        %3102 = vmatpush1.msra.mxu0 0.0
        %3103 = vmatprep.subr.mxu0 0.0
        %3104 = vmatpush1.msra.mxu0 0.0
        %3105 = vmatprep.subr.mxu0 0.0
        %3106 = vmatpush1.msra.mxu0 0.0
        %3107 = vmatprep.subr.mxu0 0.0
        %3108 = vmatpush1.msra.mxu0 0.0
        %3109 = vmatprep.subr.mxu0 0.0
        %3110 = vmatpush1.msra.mxu0 0.0
        %3111 = vmatprep.subr.mxu0 0.0
        %3112 = vmatpush1.msra.mxu0 0.0
        %3113 = vmatprep.subr.mxu0 0.0
        %3114 = vmatpush1.msra.mxu0 0.0
        %3115 = vmatprep.subr.mxu0 0.0
        %3116 = vmatpush1.msra.mxu0 0.0
        %3117 = vmatprep.subr.mxu0 0.0
        %3118 = vmatpush1.msra.mxu0 0.0
        %3119 = vmatprep.subr.mxu0 0.0
        %3120 = vmatpush1.msra.mxu0 0.0
        %3121 = vmatprep.subr.mxu0 0.0
        %3122 = vmatpush1.msra.mxu0 0.0
        %3123 = vmatprep.subr.mxu0 0.0
        %3124 = vmatpush1.msra.mxu0 0.0
        %3125 = vmatprep.subr.mxu0 0.0
        %3126 = vmatpush1.msra.mxu0 0.0
        %3127 = vmatprep.subr.mxu0 0.0
        %3128 = vmatpush1.msra.mxu0 0.0
        %3129 = vmatprep.subr.mxu0 0.0
        %3130 = vmatpush1.msra.mxu0 0.0
        %3131 = vmatprep.subr.mxu0 0.0
        %3132 = vmatpush1.msra.mxu0 0.0
        %3133 = vmatprep.subr.mxu0 0.0
        %3134 = vmatpush1.msra.mxu0 0.0
        %3135 = vmatprep.subr.mxu0 0.0
        %3136 = vmatpush1.msra.mxu0 0.0
        %3137 = vmatprep.subr.mxu0 0.0
        %3138 = vmatpush1.msra.mxu0 0.0
        %3139 = vmatprep.subr.mxu0 0.0
        %3140 = vmatpush1.msra.mxu0 0.0
        %3141 = vmatprep.subr.mxu0 0.0
        %3142 = vmatpush1.msra.mxu0 0.0
        %3143 = vmatprep.subr.mxu0 0.0
        %3144 = vmatpush1.msra.mxu0 0.0
        %3145 = vmatprep.subr.mxu0 0.0
        %3146 = vmatpush1.msra.mxu0 0.0
        %3147 = vmatprep.subr.mxu0 0.0
        %3148 = vmatpush1.msra.mxu0 0.0
        %3149 = vmatprep.subr.mxu0 0.0
        %3150 = vmatpush1.msra.mxu0 0.0
        %3151 = vmatprep.mubr.f32.mxu0 0.0
        %3152 = vmatmul.mubr.f32.gmra.mrb[0].mxu0 %v3082
        %v3153 = vpop.f32.mrb[0].mxu0
        %v3154 = vadd.f32 %v3073, %v3153
        %v3155 = vpop.f32.mrb[0].mxu0
        %3156 = vmatprep.mubr.f32.mxu0 0.0
        %3157 = vmatmul.mubr.f32.gmra.mrb[0].mxu0 %v3085
        %v3158 = vpop.f32.mrb[0].mxu0
        %v3159 = vadd.f32 %v3078, %v3158
        %v3160 = vpop.f32.mrb[0].mxu0
        %3161 = vdwg.mxu0
        %3162 = vmatprep.subr.mxu0 0.0
        %3163 = vmatpush1.msra.mxu0 %v2909
        %3164 = vmatprep.subr.mxu0 0.0
        %3165 = vmatpush1.msra.mxu0 %v2910
        %3166 = vmatprep.subr.mxu0 0.0
        %3167 = vmatpush1.msra.mxu0 0.0
        %3168 = vmatprep.subr.mxu0 0.0
        %3169 = vmatpush1.msra.mxu0 0.0
        %3170 = vmatprep.subr.mxu0 0.0
        %3171 = vmatpush1.msra.mxu0 0.0
        %3172 = vmatprep.subr.mxu0 0.0
        %3173 = vmatpush1.msra.mxu0 0.0
        %3174 = vmatprep.subr.mxu0 0.0
        %3175 = vmatpush1.msra.mxu0 0.0
        %3176 = vmatprep.subr.mxu0 0.0
        %3177 = vmatpush1.msra.mxu0 0.0
        %3178 = vmatprep.subr.mxu0 0.0
        %3179 = vmatpush1.msra.mxu0 0.0
        %3180 = vmatprep.subr.mxu0 0.0
        %3181 = vmatpush1.msra.mxu0 0.0
        %3182 = vmatprep.subr.mxu0 0.0
        %3183 = vmatpush1.msra.mxu0 0.0
        %3184 = vmatprep.subr.mxu0 0.0
        %3185 = vmatpush1.msra.mxu0 0.0
        %3186 = vmatprep.subr.mxu0 0.0
        %3187 = vmatpush1.msra.mxu0 0.0
        %3188 = vmatprep.subr.mxu0 0.0
        %3189 = vmatpush1.msra.mxu0 0.0
        %3190 = vmatprep.subr.mxu0 0.0
        %3191 = vmatpush1.msra.mxu0 0.0
        %3192 = vmatprep.subr.mxu0 0.0
        %3193 = vmatpush1.msra.mxu0 0.0
        %3194 = vmatprep.subr.mxu0 0.0
        %3195 = vmatpush1.msra.mxu0 0.0
        %3196 = vmatprep.subr.mxu0 0.0
        %3197 = vmatpush1.msra.mxu0 0.0
        %3198 = vmatprep.subr.mxu0 0.0
        %3199 = vmatpush1.msra.mxu0 0.0
        %3200 = vmatprep.subr.mxu0 0.0
        %3201 = vmatpush1.msra.mxu0 0.0
        %3202 = vmatprep.subr.mxu0 0.0
        %3203 = vmatpush1.msra.mxu0 0.0
        %3204 = vmatprep.subr.mxu0 0.0
        %3205 = vmatpush1.msra.mxu0 0.0
        %3206 = vmatprep.subr.mxu0 0.0
        %3207 = vmatpush1.msra.mxu0 0.0
        %3208 = vmatprep.subr.mxu0 0.0
        %3209 = vmatpush1.msra.mxu0 0.0
        %3210 = vmatprep.subr.mxu0 0.0
        %3211 = vmatpush1.msra.mxu0 0.0
        %3212 = vmatprep.subr.mxu0 0.0
        %3213 = vmatpush1.msra.mxu0 0.0
        %3214 = vmatprep.subr.mxu0 0.0
        %3215 = vmatpush1.msra.mxu0 0.0
        %3216 = vmatprep.subr.mxu0 0.0
        %3217 = vmatpush1.msra.mxu0 0.0
        %3218 = vmatprep.subr.mxu0 0.0
        %3219 = vmatpush1.msra.mxu0 0.0
        %3220 = vmatprep.subr.mxu0 0.0
        %3221 = vmatpush1.msra.mxu0 0.0
        %3222 = vmatprep.subr.mxu0 0.0
        %3223 = vmatpush1.msra.mxu0 0.0
        %3224 = vmatprep.subr.mxu0 0.0
        %3225 = vmatpush1.msra.mxu0 0.0
        %3226 = vmatprep.mubr.f32.mxu0 0.0
        %3227 = vmatmul.mubr.f32.gmra.mrb[0].mxu0 %v1979
        %v3228 = vpop.f32.mrb[0].mxu0
        %v3229 = vadd.f32 0.0, %v3228
        %v3230 = vpop.f32.mrb[0].mxu0
        %3231 = vmatprep.mubr.f32.mxu0 0.0
        %3232 = vmatmul.mubr.f32.gmra.mrb[0].mxu0 %v1982
        %v3233 = vpop.f32.mrb[0].mxu0
        %v3234 = vadd.f32 0.0, %v3233
        %v3235 = vpop.f32.mrb[0].mxu0
        %3236 = vdwg.mxu0
        %s3237 = scalar_lea.vmem %s41, 16
        %v3238 = vld [vmem:[%s3237] sm:$0xff]
        %v3239 = vld [vmem:[%s3237 + $0x8] sm:$0xff]
        %v3241 = vsel %vm948, %v3229, 0
        %v3244 = vsel %vm948, %v3234, 0
        %3246 = vmatprep.subr.mxu0 0.0
        %3247 = vmatpush1.msra.mxu0 %v3238
        %3248 = vmatprep.subr.mxu0 0.0
        %3249 = vmatpush1.msra.mxu0 %v3239
        %3250 = vmatprep.subr.mxu0 0.0
        %3251 = vmatpush1.msra.mxu0 0.0
        %3252 = vmatprep.subr.mxu0 0.0
        %3253 = vmatpush1.msra.mxu0 0.0
        %3254 = vmatprep.subr.mxu0 0.0
        %3255 = vmatpush1.msra.mxu0 0.0
        %3256 = vmatprep.subr.mxu0 0.0
        %3257 = vmatpush1.msra.mxu0 0.0
        %3258 = vmatprep.subr.mxu0 0.0
        %3259 = vmatpush1.msra.mxu0 0.0
        %3260 = vmatprep.subr.mxu0 0.0
        %3261 = vmatpush1.msra.mxu0 0.0
        %3262 = vmatprep.subr.mxu0 0.0
        %3263 = vmatpush1.msra.mxu0 0.0
        %3264 = vmatprep.subr.mxu0 0.0
        %3265 = vmatpush1.msra.mxu0 0.0
        %3266 = vmatprep.subr.mxu0 0.0
        %3267 = vmatpush1.msra.mxu0 0.0
        %3268 = vmatprep.subr.mxu0 0.0
        %3269 = vmatpush1.msra.mxu0 0.0
        %3270 = vmatprep.subr.mxu0 0.0
        %3271 = vmatpush1.msra.mxu0 0.0
        %3272 = vmatprep.subr.mxu0 0.0
        %3273 = vmatpush1.msra.mxu0 0.0
        %3274 = vmatprep.subr.mxu0 0.0
        %3275 = vmatpush1.msra.mxu0 0.0
        %3276 = vmatprep.subr.mxu0 0.0
        %3277 = vmatpush1.msra.mxu0 0.0
        %3278 = vmatprep.subr.mxu0 0.0
        %3279 = vmatpush1.msra.mxu0 0.0
        %3280 = vmatprep.subr.mxu0 0.0
        %3281 = vmatpush1.msra.mxu0 0.0
        %3282 = vmatprep.subr.mxu0 0.0
        %3283 = vmatpush1.msra.mxu0 0.0
        %3284 = vmatprep.subr.mxu0 0.0
        %3285 = vmatpush1.msra.mxu0 0.0
        %3286 = vmatprep.subr.mxu0 0.0
        %3287 = vmatpush1.msra.mxu0 0.0
        %3288 = vmatprep.subr.mxu0 0.0
        %3289 = vmatpush1.msra.mxu0 0.0
        %3290 = vmatprep.subr.mxu0 0.0
        %3291 = vmatpush1.msra.mxu0 0.0
        %3292 = vmatprep.subr.mxu0 0.0
        %3293 = vmatpush1.msra.mxu0 0.0
        %3294 = vmatprep.subr.mxu0 0.0
        %3295 = vmatpush1.msra.mxu0 0.0
        %3296 = vmatprep.subr.mxu0 0.0
        %3297 = vmatpush1.msra.mxu0 0.0
        %3298 = vmatprep.subr.mxu0 0.0
        %3299 = vmatpush1.msra.mxu0 0.0
        %3300 = vmatprep.subr.mxu0 0.0
        %3301 = vmatpush1.msra.mxu0 0.0
        %3302 = vmatprep.subr.mxu0 0.0
        %3303 = vmatpush1.msra.mxu0 0.0
        %3304 = vmatprep.subr.mxu0 0.0
        %3305 = vmatpush1.msra.mxu0 0.0
        %3306 = vmatprep.subr.mxu0 0.0
        %3307 = vmatpush1.msra.mxu0 0.0
        %3308 = vmatprep.subr.mxu0 0.0
        %3309 = vmatpush1.msra.mxu0 0.0
        %3310 = vmatprep.mubr.f32.mxu0 0.0
        %3311 = vmatmul.mubr.f32.gmra.mrb[0].mxu0 %v3241
        %v3312 = vpop.f32.mrb[0].mxu0
        %v3313 = vadd.f32 0.0, %v3312
        %v3314 = vpop.f32.mrb[0].mxu0
        %3315 = vmatprep.mubr.f32.mxu0 0.0
        %3316 = vmatmul.mubr.f32.gmra.mrb[0].mxu0 %v3244
        %v3317 = vpop.f32.mrb[0].mxu0
        %v3318 = vadd.f32 0.0, %v3317
        %v3319 = vpop.f32.mrb[0].mxu0
        %3320 = vdwg.mxu0
        %v3321 = vadd.f32 %v3154, %v3313
        %v3322 = vadd.f32 %v3159, %v3318
        %v3323 = vld [vmem:[%s43] sm:$0x1]
        %v3325 = vlaneseq
        %v3326 = vshrl.u32 %v3325, 7
        %v3327 = vsub.s32 0, %v3326
        %v3328 = vrot.slane %v3323, %v3327
        %v3330 = vadd.f32 %v3321, %v3328
        %v3331 = vadd.f32 %v3322, %v3328
        %v3332 = vld [vmem:[%s45] sm:$0x1]
        %v3334 = vlaneseq
        %v3335 = vshrl.u32 %v3334, 7
        %v3336 = vsub.s32 0, %v3335
        %v3337 = vrot.slane %v3332, %v3336
        %v3339 = vmul.f32 %v3330, %v3337
        %v3340 = vmul.f32 %v3331, %v3337
        %v3341 = vld [vmem:[%s47] sm:$0x1]
        %v3343 = vlaneseq
        %v3344 = vshrl.u32 %v3343, 7
        %v3345 = vsub.s32 0, %v3344
        %v3346 = vrot.slane %v3341, %v3345
        %v3348 = vadd.f32 %v3339, %v3346
        %v3349 = vadd.f32 %v3340, %v3346
        %v3350 = vmax.f32 %v3348, 0.0
        %v3351 = vmax.f32 %v3349, 0.0
        %v3352 = vand.u32 2147483647, %v3348
        %v3353 = vand.u32 2147483647, %v3349
        %v3354 = vsub.f32 0.0, %v3352
        %v3355 = vsub.f32 0.0, %v3353
        %v3356 = vmul.f32 %v3354, 1.442695
        %v3357 = vpow.pop %v3356
        %v3358 = vmul.f32 %v3355, 1.442695
        %v3359 = vpow.pop %v3358
        %v3360 = vadd.f32 %v3357, 1.0
        %v3361 = vlog2.pop %v3360
        %v3362 = vmul.f32 %v3361, 0.6931472
        %v3363 = vmul.f32 -0.5, %v3357
        %v3364 = vadd.f32 %v3363, 1.0
        %v3365 = vmul.f32 %v3364, %v3357
        %v3366 = vand.u32 2147483647, %v3357
        %vm3367 = vcmp.lt.f32.partialorder %v3366, 0.0004427343
        %v3368 = vsel %vm3367, %v3365, %v3362
        %v3369 = vadd.f32 %v3359, 1.0
        %v3370 = vlog2.pop %v3369
        %v3371 = vmul.f32 %v3370, 0.6931472
        %v3372 = vmul.f32 -0.5, %v3359
        %v3373 = vadd.f32 %v3372, 1.0
        %v3374 = vmul.f32 %v3373, %v3359
        %v3375 = vand.u32 2147483647, %v3359
        %vm3376 = vcmp.lt.f32.partialorder %v3375, 0.0004427343
        %v3377 = vsel %vm3376, %v3374, %v3371
        %v3378 = vadd.f32 %v3350, %v3368
        %v3379 = vadd.f32 %v3351, %v3377
        %v3380 = vtanh.pop %v3378
        %v3381 = vtanh.pop %v3379
        %v3382 = vmul.f32 %v3348, %v3380
        %v3383 = vmul.f32 %v3349, %v3381
        %s3384 = scalar_lea.vmem %s49, 64
        %v3385 = vld [vmem:[%s3384] sm:$0xff]
        %v3386 = vld [vmem:[%s3384 + $0x8] sm:$0xff]
        %v3387 = vld [vmem:[%s3384 + $0x10] sm:$0xff]
        %v3388 = vld [vmem:[%s3384 + $0x18] sm:$0xff]
        %3389 = vmatprep.subr.mxu0 0.0
        %3390 = vmatpush1.msra.mxu0 %v3382
        %3391 = vmatprep.subr.mxu0 0.0
        %3392 = vmatpush1.msra.mxu0 %v3383
        %3393 = vmatprep.subr.mxu0 0.0
        %3394 = vmatpush1.msra.mxu0 0.0
        %3395 = vmatprep.subr.mxu0 0.0
        %3396 = vmatpush1.msra.mxu0 0.0
        %3397 = vmatprep.subr.mxu0 0.0
        %3398 = vmatpush1.msra.mxu0 0.0
        %3399 = vmatprep.subr.mxu0 0.0
        %3400 = vmatpush1.msra.mxu0 0.0
        %3401 = vmatprep.subr.mxu0 0.0
        %3402 = vmatpush1.msra.mxu0 0.0
        %3403 = vmatprep.subr.mxu0 0.0
        %3404 = vmatpush1.msra.mxu0 0.0
        %3405 = vmatprep.subr.mxu0 0.0
        %3406 = vmatpush1.msra.mxu0 0.0
        %3407 = vmatprep.subr.mxu0 0.0
        %3408 = vmatpush1.msra.mxu0 0.0
        %3409 = vmatprep.subr.mxu0 0.0
        %3410 = vmatpush1.msra.mxu0 0.0
        %3411 = vmatprep.subr.mxu0 0.0
        %3412 = vmatpush1.msra.mxu0 0.0
        %3413 = vmatprep.subr.mxu0 0.0
        %3414 = vmatpush1.msra.mxu0 0.0
        %3415 = vmatprep.subr.mxu0 0.0
        %3416 = vmatpush1.msra.mxu0 0.0
        %3417 = vmatprep.subr.mxu0 0.0
        %3418 = vmatpush1.msra.mxu0 0.0
        %3419 = vmatprep.subr.mxu0 0.0
        %3420 = vmatpush1.msra.mxu0 0.0
        %3421 = vmatprep.subr.mxu0 0.0
        %3422 = vmatpush1.msra.mxu0 0.0
        %3423 = vmatprep.subr.mxu0 0.0
        %3424 = vmatpush1.msra.mxu0 0.0
        %3425 = vmatprep.subr.mxu0 0.0
        %3426 = vmatpush1.msra.mxu0 0.0
        %3427 = vmatprep.subr.mxu0 0.0
        %3428 = vmatpush1.msra.mxu0 0.0
        %3429 = vmatprep.subr.mxu0 0.0
        %3430 = vmatpush1.msra.mxu0 0.0
        %3431 = vmatprep.subr.mxu0 0.0
        %3432 = vmatpush1.msra.mxu0 0.0
        %3433 = vmatprep.subr.mxu0 0.0
        %3434 = vmatpush1.msra.mxu0 0.0
        %3435 = vmatprep.subr.mxu0 0.0
        %3436 = vmatpush1.msra.mxu0 0.0
        %3437 = vmatprep.subr.mxu0 0.0
        %3438 = vmatpush1.msra.mxu0 0.0
        %3439 = vmatprep.subr.mxu0 0.0
        %3440 = vmatpush1.msra.mxu0 0.0
        %3441 = vmatprep.subr.mxu0 0.0
        %3442 = vmatpush1.msra.mxu0 0.0
        %3443 = vmatprep.subr.mxu0 0.0
        %3444 = vmatpush1.msra.mxu0 0.0
        %3445 = vmatprep.subr.mxu0 0.0
        %3446 = vmatpush1.msra.mxu0 0.0
        %3447 = vmatprep.subr.mxu0 0.0
        %3448 = vmatpush1.msra.mxu0 0.0
        %3449 = vmatprep.subr.mxu0 0.0
        %3450 = vmatpush1.msra.mxu0 0.0
        %3451 = vmatprep.subr.mxu0 0.0
        %3452 = vmatpush1.msra.mxu0 0.0
        %3453 = vmatprep.mubr.f32.mxu0 0.0
        %3454 = vmatmul.mubr.f32.gmra.mrb[0].mxu0 %v2918
        %v3455 = vpop.f32.mrb[0].mxu0
        %v3456 = vadd.f32 0.0, %v3455
        %v3457 = vpop.f32.mrb[0].mxu0
        %3458 = vmatprep.mubr.f32.mxu0 0.0
        %3459 = vmatmul.mubr.f32.gmra.mrb[0].mxu0 %v2921
        %v3460 = vpop.f32.mrb[0].mxu0
        %v3461 = vadd.f32 0.0, %v3460
        %v3462 = vpop.f32.mrb[0].mxu0
        %3463 = vdwg.mxu0
        %v3464 = vld [vmem:[%s49] sm:$0xff]
        %v3465 = vld [vmem:[%s49 + $0x8] sm:$0xff]
        %v3466 = vld [vmem:[%s49 + $0x10] sm:$0xff]
        %v3467 = vld [vmem:[%s49 + $0x18] sm:$0xff]
        %vm3468 = vcmask 261120
        %v3470 = vsel %vm3468, %v3456, 0
        %v3473 = vsel %vm3468, %v3461, 0
        %3475 = vmatprep.subr.mxu0 0.0
        %3476 = vmatpush1.msra.mxu0 %v3464
        %3477 = vmatprep.subr.mxu0 0.0
        %3478 = vmatpush1.msra.mxu0 %v3465
        %3479 = vmatprep.subr.mxu0 0.0
        %3480 = vmatpush1.msra.mxu0 %v3466
        %3481 = vmatprep.subr.mxu0 0.0
        %3482 = vmatpush1.msra.mxu0 %v3467
        %3483 = vmatprep.subr.mxu0 0.0
        %3484 = vmatpush1.msra.mxu0 0.0
        %3485 = vmatprep.subr.mxu0 0.0
        %3486 = vmatpush1.msra.mxu0 0.0
        %3487 = vmatprep.subr.mxu0 0.0
        %3488 = vmatpush1.msra.mxu0 0.0
        %3489 = vmatprep.subr.mxu0 0.0
        %3490 = vmatpush1.msra.mxu0 0.0
        %3491 = vmatprep.subr.mxu0 0.0
        %3492 = vmatpush1.msra.mxu0 0.0
        %3493 = vmatprep.subr.mxu0 0.0
        %3494 = vmatpush1.msra.mxu0 0.0
        %3495 = vmatprep.subr.mxu0 0.0
        %3496 = vmatpush1.msra.mxu0 0.0
        %3497 = vmatprep.subr.mxu0 0.0
        %3498 = vmatpush1.msra.mxu0 0.0
        %3499 = vmatprep.subr.mxu0 0.0
        %3500 = vmatpush1.msra.mxu0 0.0
        %3501 = vmatprep.subr.mxu0 0.0
        %3502 = vmatpush1.msra.mxu0 0.0
        %3503 = vmatprep.subr.mxu0 0.0
        %3504 = vmatpush1.msra.mxu0 0.0
        %3505 = vmatprep.subr.mxu0 0.0
        %3506 = vmatpush1.msra.mxu0 0.0
        %3507 = vmatprep.subr.mxu0 0.0
        %3508 = vmatpush1.msra.mxu0 0.0
        %3509 = vmatprep.subr.mxu0 0.0
        %3510 = vmatpush1.msra.mxu0 0.0
        %3511 = vmatprep.subr.mxu0 0.0
        %3512 = vmatpush1.msra.mxu0 0.0
        %3513 = vmatprep.subr.mxu0 0.0
        %3514 = vmatpush1.msra.mxu0 0.0
        %3515 = vmatprep.subr.mxu0 0.0
        %3516 = vmatpush1.msra.mxu0 0.0
        %3517 = vmatprep.subr.mxu0 0.0
        %3518 = vmatpush1.msra.mxu0 0.0
        %3519 = vmatprep.subr.mxu0 0.0
        %3520 = vmatpush1.msra.mxu0 0.0
        %3521 = vmatprep.subr.mxu0 0.0
        %3522 = vmatpush1.msra.mxu0 0.0
        %3523 = vmatprep.subr.mxu0 0.0
        %3524 = vmatpush1.msra.mxu0 0.0
        %3525 = vmatprep.subr.mxu0 0.0
        %3526 = vmatpush1.msra.mxu0 0.0
        %3527 = vmatprep.subr.mxu0 0.0
        %3528 = vmatpush1.msra.mxu0 0.0
        %3529 = vmatprep.subr.mxu0 0.0
        %3530 = vmatpush1.msra.mxu0 0.0
        %3531 = vmatprep.subr.mxu0 0.0
        %3532 = vmatpush1.msra.mxu0 0.0
        %3533 = vmatprep.subr.mxu0 0.0
        %3534 = vmatpush1.msra.mxu0 0.0
        %3535 = vmatprep.subr.mxu0 0.0
        %3536 = vmatpush1.msra.mxu0 0.0
        %3537 = vmatprep.subr.mxu0 0.0
        %3538 = vmatpush1.msra.mxu0 0.0
        %3539 = vmatprep.mubr.f32.mxu0 0.0
        %3540 = vmatmul.mubr.f32.gmra.mrb[0].mxu0 %v3470
        %v3541 = vpop.f32.mrb[0].mxu0
        %v3542 = vadd.f32 0.0, %v3541
        %v3543 = vpop.f32.mrb[0].mxu0
        %3544 = vmatprep.mubr.f32.mxu0 0.0
        %3545 = vmatmul.mubr.f32.gmra.mrb[0].mxu0 %v3473
        %v3546 = vpop.f32.mrb[0].mxu0
        %v3547 = vadd.f32 0.0, %v3546
        %v3548 = vpop.f32.mrb[0].mxu0
        %3549 = vdwg.mxu0
        %v3551 = vsel %vm3468, %v3382, 0
        %v3554 = vsel %vm3468, %v3383, 0
        %3556 = vmatprep.subr.mxu0 0.0
        %3557 = vmatpush1.msra.mxu0 %v3385
        %3558 = vmatprep.subr.mxu0 0.0
        %3559 = vmatpush1.msra.mxu0 %v3386
        %3560 = vmatprep.subr.mxu0 0.0
        %3561 = vmatpush1.msra.mxu0 %v3387
        %3562 = vmatprep.subr.mxu0 0.0
        %3563 = vmatpush1.msra.mxu0 %v3388
        %3564 = vmatprep.subr.mxu0 0.0
        %3565 = vmatpush1.msra.mxu0 0.0
        %3566 = vmatprep.subr.mxu0 0.0
        %3567 = vmatpush1.msra.mxu0 0.0
        %3568 = vmatprep.subr.mxu0 0.0
        %3569 = vmatpush1.msra.mxu0 0.0
        %3570 = vmatprep.subr.mxu0 0.0
        %3571 = vmatpush1.msra.mxu0 0.0
        %3572 = vmatprep.subr.mxu0 0.0
        %3573 = vmatpush1.msra.mxu0 0.0
        %3574 = vmatprep.subr.mxu0 0.0
        %3575 = vmatpush1.msra.mxu0 0.0
        %3576 = vmatprep.subr.mxu0 0.0
        %3577 = vmatpush1.msra.mxu0 0.0
        %3578 = vmatprep.subr.mxu0 0.0
        %3579 = vmatpush1.msra.mxu0 0.0
        %3580 = vmatprep.subr.mxu0 0.0
        %3581 = vmatpush1.msra.mxu0 0.0
        %3582 = vmatprep.subr.mxu0 0.0
        %3583 = vmatpush1.msra.mxu0 0.0
        %3584 = vmatprep.subr.mxu0 0.0
        %3585 = vmatpush1.msra.mxu0 0.0
        %3586 = vmatprep.subr.mxu0 0.0
        %3587 = vmatpush1.msra.mxu0 0.0
        %3588 = vmatprep.subr.mxu0 0.0
        %3589 = vmatpush1.msra.mxu0 0.0
        %3590 = vmatprep.subr.mxu0 0.0
        %3591 = vmatpush1.msra.mxu0 0.0
        %3592 = vmatprep.subr.mxu0 0.0
        %3593 = vmatpush1.msra.mxu0 0.0
        %3594 = vmatprep.subr.mxu0 0.0
        %3595 = vmatpush1.msra.mxu0 0.0
        %3596 = vmatprep.subr.mxu0 0.0
        %3597 = vmatpush1.msra.mxu0 0.0
        %3598 = vmatprep.subr.mxu0 0.0
        %3599 = vmatpush1.msra.mxu0 0.0
        %3600 = vmatprep.subr.mxu0 0.0
        %3601 = vmatpush1.msra.mxu0 0.0
        %3602 = vmatprep.subr.mxu0 0.0
        %3603 = vmatpush1.msra.mxu0 0.0
        %3604 = vmatprep.subr.mxu0 0.0
        %3605 = vmatpush1.msra.mxu0 0.0
        %3606 = vmatprep.subr.mxu0 0.0
        %3607 = vmatpush1.msra.mxu0 0.0
        %3608 = vmatprep.subr.mxu0 0.0
        %3609 = vmatpush1.msra.mxu0 0.0
        %3610 = vmatprep.subr.mxu0 0.0
        %3611 = vmatpush1.msra.mxu0 0.0
        %3612 = vmatprep.subr.mxu0 0.0
        %3613 = vmatpush1.msra.mxu0 0.0
        %3614 = vmatprep.subr.mxu0 0.0
        %3615 = vmatpush1.msra.mxu0 0.0
        %3616 = vmatprep.subr.mxu0 0.0
        %3617 = vmatpush1.msra.mxu0 0.0
        %3618 = vmatprep.subr.mxu0 0.0
        %3619 = vmatpush1.msra.mxu0 0.0
        %3620 = vmatprep.mubr.f32.mxu0 0.0
        %3621 = vmatmul.mubr.f32.gmra.mrb[0].mxu0 %v3551
        %v3622 = vpop.f32.mrb[0].mxu0
        %v3623 = vadd.f32 %v3542, %v3622
        %v3624 = vpop.f32.mrb[0].mxu0
        %3625 = vmatprep.mubr.f32.mxu0 0.0
        %3626 = vmatmul.mubr.f32.gmra.mrb[0].mxu0 %v3554
        %v3627 = vpop.f32.mrb[0].mxu0
        %v3628 = vadd.f32 %v3547, %v3627
        %v3629 = vpop.f32.mrb[0].mxu0
        %3630 = vdwg.mxu0
        %3631 = vmatprep.subr.mxu0 0.0
        %3632 = vmatpush1.msra.mxu0 %v3382
        %3633 = vmatprep.subr.mxu0 0.0
        %3634 = vmatpush1.msra.mxu0 %v3383
        %3635 = vmatprep.subr.mxu0 0.0
        %3636 = vmatpush1.msra.mxu0 0.0
        %3637 = vmatprep.subr.mxu0 0.0
        %3638 = vmatpush1.msra.mxu0 0.0
        %3639 = vmatprep.subr.mxu0 0.0
        %3640 = vmatpush1.msra.mxu0 0.0
        %3641 = vmatprep.subr.mxu0 0.0
        %3642 = vmatpush1.msra.mxu0 0.0
        %3643 = vmatprep.subr.mxu0 0.0
        %3644 = vmatpush1.msra.mxu0 0.0
        %3645 = vmatprep.subr.mxu0 0.0
        %3646 = vmatpush1.msra.mxu0 0.0
        %3647 = vmatprep.subr.mxu0 0.0
        %3648 = vmatpush1.msra.mxu0 0.0
        %3649 = vmatprep.subr.mxu0 0.0
        %3650 = vmatpush1.msra.mxu0 0.0
        %3651 = vmatprep.subr.mxu0 0.0
        %3652 = vmatpush1.msra.mxu0 0.0
        %3653 = vmatprep.subr.mxu0 0.0
        %3654 = vmatpush1.msra.mxu0 0.0
        %3655 = vmatprep.subr.mxu0 0.0
        %3656 = vmatpush1.msra.mxu0 0.0
        %3657 = vmatprep.subr.mxu0 0.0
        %3658 = vmatpush1.msra.mxu0 0.0
        %3659 = vmatprep.subr.mxu0 0.0
        %3660 = vmatpush1.msra.mxu0 0.0
        %3661 = vmatprep.subr.mxu0 0.0
        %3662 = vmatpush1.msra.mxu0 0.0
        %3663 = vmatprep.subr.mxu0 0.0
        %3664 = vmatpush1.msra.mxu0 0.0
        %3665 = vmatprep.subr.mxu0 0.0
        %3666 = vmatpush1.msra.mxu0 0.0
        %3667 = vmatprep.subr.mxu0 0.0
        %3668 = vmatpush1.msra.mxu0 0.0
        %3669 = vmatprep.subr.mxu0 0.0
        %3670 = vmatpush1.msra.mxu0 0.0
        %3671 = vmatprep.subr.mxu0 0.0
        %3672 = vmatpush1.msra.mxu0 0.0
        %3673 = vmatprep.subr.mxu0 0.0
        %3674 = vmatpush1.msra.mxu0 0.0
        %3675 = vmatprep.subr.mxu0 0.0
        %3676 = vmatpush1.msra.mxu0 0.0
        %3677 = vmatprep.subr.mxu0 0.0
        %3678 = vmatpush1.msra.mxu0 0.0
        %3679 = vmatprep.subr.mxu0 0.0
        %3680 = vmatpush1.msra.mxu0 0.0
        %3681 = vmatprep.subr.mxu0 0.0
        %3682 = vmatpush1.msra.mxu0 0.0
        %3683 = vmatprep.subr.mxu0 0.0
        %3684 = vmatpush1.msra.mxu0 0.0
        %3685 = vmatprep.subr.mxu0 0.0
        %3686 = vmatpush1.msra.mxu0 0.0
        %3687 = vmatprep.subr.mxu0 0.0
        %3688 = vmatpush1.msra.mxu0 0.0
        %3689 = vmatprep.subr.mxu0 0.0
        %3690 = vmatpush1.msra.mxu0 0.0
        %3691 = vmatprep.subr.mxu0 0.0
        %3692 = vmatpush1.msra.mxu0 0.0
        %3693 = vmatprep.subr.mxu0 0.0
        %3694 = vmatpush1.msra.mxu0 0.0
        %3695 = vmatprep.mubr.f32.mxu0 0.0
        %3696 = vmatmul.mubr.f32.gmra.mrb[0].mxu0 %v1979
        %v3697 = vpop.f32.mrb[0].mxu0
        %v3698 = vadd.f32 0.0, %v3697
        %v3699 = vpop.f32.mrb[0].mxu0
        %3700 = vmatprep.mubr.f32.mxu0 0.0
        %3701 = vmatmul.mubr.f32.gmra.mrb[0].mxu0 %v1982
        %v3702 = vpop.f32.mrb[0].mxu0
        %v3703 = vadd.f32 0.0, %v3702
        %v3704 = vpop.f32.mrb[0].mxu0
        %3705 = vdwg.mxu0
        %s3706 = scalar_lea.vmem %s49, 32
        %v3707 = vld [vmem:[%s3706] sm:$0xff]
        %v3708 = vld [vmem:[%s3706 + $0x8] sm:$0xff]
        %v3709 = vld [vmem:[%s3706 + $0x10] sm:$0xff]
        %v3710 = vld [vmem:[%s3706 + $0x18] sm:$0xff]
        %v3712 = vsel %vm3468, %v3698, 0
        %v3715 = vsel %vm3468, %v3703, 0
        %3717 = vmatprep.subr.mxu0 0.0
        %3718 = vmatpush1.msra.mxu0 %v3707
        %3719 = vmatprep.subr.mxu0 0.0
        %3720 = vmatpush1.msra.mxu0 %v3708
        %3721 = vmatprep.subr.mxu0 0.0
        %3722 = vmatpush1.msra.mxu0 %v3709
        %3723 = vmatprep.subr.mxu0 0.0
        %3724 = vmatpush1.msra.mxu0 %v3710
        %3725 = vmatprep.subr.mxu0 0.0
        %3726 = vmatpush1.msra.mxu0 0.0
        %3727 = vmatprep.subr.mxu0 0.0
        %3728 = vmatpush1.msra.mxu0 0.0
        %3729 = vmatprep.subr.mxu0 0.0
        %3730 = vmatpush1.msra.mxu0 0.0
        %3731 = vmatprep.subr.mxu0 0.0
        %3732 = vmatpush1.msra.mxu0 0.0
        %3733 = vmatprep.subr.mxu0 0.0
        %3734 = vmatpush1.msra.mxu0 0.0
        %3735 = vmatprep.subr.mxu0 0.0
        %3736 = vmatpush1.msra.mxu0 0.0
        %3737 = vmatprep.subr.mxu0 0.0
        %3738 = vmatpush1.msra.mxu0 0.0
        %3739 = vmatprep.subr.mxu0 0.0
        %3740 = vmatpush1.msra.mxu0 0.0
        %3741 = vmatprep.subr.mxu0 0.0
        %3742 = vmatpush1.msra.mxu0 0.0
        %3743 = vmatprep.subr.mxu0 0.0
        %3744 = vmatpush1.msra.mxu0 0.0
        %3745 = vmatprep.subr.mxu0 0.0
        %3746 = vmatpush1.msra.mxu0 0.0
        %3747 = vmatprep.subr.mxu0 0.0
        %3748 = vmatpush1.msra.mxu0 0.0
        %3749 = vmatprep.subr.mxu0 0.0
        %3750 = vmatpush1.msra.mxu0 0.0
        %3751 = vmatprep.subr.mxu0 0.0
        %3752 = vmatpush1.msra.mxu0 0.0
        %3753 = vmatprep.subr.mxu0 0.0
        %3754 = vmatpush1.msra.mxu0 0.0
        %3755 = vmatprep.subr.mxu0 0.0
        %3756 = vmatpush1.msra.mxu0 0.0
        %3757 = vmatprep.subr.mxu0 0.0
        %3758 = vmatpush1.msra.mxu0 0.0
        %3759 = vmatprep.subr.mxu0 0.0
        %3760 = vmatpush1.msra.mxu0 0.0
        %3761 = vmatprep.subr.mxu0 0.0
        %3762 = vmatpush1.msra.mxu0 0.0
        %3763 = vmatprep.subr.mxu0 0.0
        %3764 = vmatpush1.msra.mxu0 0.0
        %3765 = vmatprep.subr.mxu0 0.0
        %3766 = vmatpush1.msra.mxu0 0.0
        %3767 = vmatprep.subr.mxu0 0.0
        %3768 = vmatpush1.msra.mxu0 0.0
        %3769 = vmatprep.subr.mxu0 0.0
        %3770 = vmatpush1.msra.mxu0 0.0
        %3771 = vmatprep.subr.mxu0 0.0
        %3772 = vmatpush1.msra.mxu0 0.0
        %3773 = vmatprep.subr.mxu0 0.0
        %3774 = vmatpush1.msra.mxu0 0.0
        %3775 = vmatprep.subr.mxu0 0.0
        %3776 = vmatpush1.msra.mxu0 0.0
        %3777 = vmatprep.subr.mxu0 0.0
        %3778 = vmatpush1.msra.mxu0 0.0
        %3779 = vmatprep.subr.mxu0 0.0
        %3780 = vmatpush1.msra.mxu0 0.0
        %3781 = vmatprep.mubr.f32.mxu0 0.0
        %3782 = vmatmul.mubr.f32.gmra.mrb[0].mxu0 %v3712
        %v3783 = vpop.f32.mrb[0].mxu0
        %v3784 = vadd.f32 0.0, %v3783
        %v3785 = vpop.f32.mrb[0].mxu0
        %3786 = vmatprep.mubr.f32.mxu0 0.0
        %3787 = vmatmul.mubr.f32.gmra.mrb[0].mxu0 %v3715
        %v3788 = vpop.f32.mrb[0].mxu0
        %v3789 = vadd.f32 0.0, %v3788
        %v3790 = vpop.f32.mrb[0].mxu0
        %3791 = vdwg.mxu0
        %v3792 = vadd.f32 %v3623, %v3784
        %v3793 = vadd.f32 %v3628, %v3789
        %v3794 = vld [vmem:[%s51] sm:$0x1]
        %v3796 = vlaneseq
        %v3797 = vshrl.u32 %v3796, 7
        %v3798 = vsub.s32 0, %v3797
        %v3799 = vrot.slane %v3794, %v3798
        %v3801 = vadd.f32 %v3792, %v3799
        %v3802 = vadd.f32 %v3793, %v3799
        %v3803 = vld [vmem:[%s53] sm:$0x1]
        %v3805 = vlaneseq
        %v3806 = vshrl.u32 %v3805, 7
        %v3807 = vsub.s32 0, %v3806
        %v3808 = vrot.slane %v3803, %v3807
        %v3810 = vmul.f32 %v3801, %v3808
        %v3811 = vmul.f32 %v3802, %v3808
        %v3812 = vld [vmem:[%s55] sm:$0x1]
        %v3814 = vlaneseq
        %v3815 = vshrl.u32 %v3814, 7
        %v3816 = vsub.s32 0, %v3815
        %v3817 = vrot.slane %v3812, %v3816
        %v3819 = vadd.f32 %v3810, %v3817
        %v3820 = vadd.f32 %v3811, %v3817
        %v3821 = vmax.f32 %v3819, 0.0
        %v3822 = vmax.f32 %v3820, 0.0
        %v3823 = vand.u32 2147483647, %v3819
        %v3824 = vand.u32 2147483647, %v3820
        %v3825 = vsub.f32 0.0, %v3823
        %v3826 = vsub.f32 0.0, %v3824
        %v3827 = vmul.f32 %v3825, 1.442695
        %v3828 = vpow.pop %v3827
        %v3829 = vmul.f32 %v3826, 1.442695
        %v3830 = vpow.pop %v3829
        %v3831 = vadd.f32 %v3828, 1.0
        %v3832 = vlog2.pop %v3831
        %v3833 = vmul.f32 %v3832, 0.6931472
        %v3834 = vmul.f32 -0.5, %v3828
        %v3835 = vadd.f32 %v3834, 1.0
        %v3836 = vmul.f32 %v3835, %v3828
        %v3837 = vand.u32 2147483647, %v3828
        %vm3838 = vcmp.lt.f32.partialorder %v3837, 0.0004427343
        %v3839 = vsel %vm3838, %v3836, %v3833
        %v3840 = vadd.f32 %v3830, 1.0
        %v3841 = vlog2.pop %v3840
        %v3842 = vmul.f32 %v3841, 0.6931472
        %v3843 = vmul.f32 -0.5, %v3830
        %v3844 = vadd.f32 %v3843, 1.0
        %v3845 = vmul.f32 %v3844, %v3830
        %v3846 = vand.u32 2147483647, %v3830
        %vm3847 = vcmp.lt.f32.partialorder %v3846, 0.0004427343
        %v3848 = vsel %vm3847, %v3845, %v3842
        %v3849 = vadd.f32 %v3821, %v3839
        %v3850 = vadd.f32 %v3822, %v3848
        %v3851 = vtanh.pop %v3849
        %v3852 = vtanh.pop %v3850
        %v3853 = vmul.f32 %v3819, %v3851
        %v3854 = vmul.f32 %v3820, %v3852
        %v3855 = vld [vmem:[%s57] sm:$0xff]
        %v3856 = vld [vmem:[%s57 + $0x8] sm:$0xff]
        %v3857 = vld [vmem:[%s59] sm:$0x1]
        %v3859 = vlaneseq
        %v3860 = vshrl.u32 %v3859, 7
        %v3861 = vsub.s32 0, %v3860
        %v3862 = vrot.slane %v3857, %v3861
        %3864 = vmatprep.subr.mxu0 0.0
        %3865 = vmatpush1.msra.mxu0 %v3855
        %3866 = vmatprep.subr.mxu0 0.0
        %3867 = vmatpush1.msra.mxu0 %v3856
        %3868 = vmatprep.subr.mxu0 0.0
        %3869 = vmatpush1.msra.mxu0 0.0
        %3870 = vmatprep.subr.mxu0 0.0
        %3871 = vmatpush1.msra.mxu0 0.0
        %3872 = vmatprep.subr.mxu0 0.0
        %3873 = vmatpush1.msra.mxu0 0.0
        %3874 = vmatprep.subr.mxu0 0.0
        %3875 = vmatpush1.msra.mxu0 0.0
        %3876 = vmatprep.subr.mxu0 0.0
        %3877 = vmatpush1.msra.mxu0 0.0
        %3878 = vmatprep.subr.mxu0 0.0
        %3879 = vmatpush1.msra.mxu0 0.0
        %3880 = vmatprep.subr.mxu0 0.0
        %3881 = vmatpush1.msra.mxu0 0.0
        %3882 = vmatprep.subr.mxu0 0.0
        %3883 = vmatpush1.msra.mxu0 0.0
        %3884 = vmatprep.subr.mxu0 0.0
        %3885 = vmatpush1.msra.mxu0 0.0
        %3886 = vmatprep.subr.mxu0 0.0
        %3887 = vmatpush1.msra.mxu0 0.0
        %3888 = vmatprep.subr.mxu0 0.0
        %3889 = vmatpush1.msra.mxu0 0.0
        %3890 = vmatprep.subr.mxu0 0.0
        %3891 = vmatpush1.msra.mxu0 0.0
        %3892 = vmatprep.subr.mxu0 0.0
        %3893 = vmatpush1.msra.mxu0 0.0
        %3894 = vmatprep.subr.mxu0 0.0
        %3895 = vmatpush1.msra.mxu0 0.0
        %3896 = vmatprep.subr.mxu0 0.0
        %3897 = vmatpush1.msra.mxu0 0.0
        %3898 = vmatprep.subr.mxu0 0.0
        %3899 = vmatpush1.msra.mxu0 0.0
        %3900 = vmatprep.subr.mxu0 0.0
        %3901 = vmatpush1.msra.mxu0 0.0
        %3902 = vmatprep.subr.mxu0 0.0
        %3903 = vmatpush1.msra.mxu0 0.0
        %3904 = vmatprep.subr.mxu0 0.0
        %3905 = vmatpush1.msra.mxu0 0.0
        %3906 = vmatprep.subr.mxu0 0.0
        %3907 = vmatpush1.msra.mxu0 0.0
        %3908 = vmatprep.subr.mxu0 0.0
        %3909 = vmatpush1.msra.mxu0 0.0
        %3910 = vmatprep.subr.mxu0 0.0
        %3911 = vmatpush1.msra.mxu0 0.0
        %3912 = vmatprep.subr.mxu0 0.0
        %3913 = vmatpush1.msra.mxu0 0.0
        %3914 = vmatprep.subr.mxu0 0.0
        %3915 = vmatpush1.msra.mxu0 0.0
        %3916 = vmatprep.subr.mxu0 0.0
        %3917 = vmatpush1.msra.mxu0 0.0
        %3918 = vmatprep.subr.mxu0 0.0
        %3919 = vmatpush1.msra.mxu0 0.0
        %3920 = vmatprep.subr.mxu0 0.0
        %3921 = vmatpush1.msra.mxu0 0.0
        %3922 = vmatprep.subr.mxu0 0.0
        %3923 = vmatpush1.msra.mxu0 0.0
        %3924 = vmatprep.subr.mxu0 0.0
        %3925 = vmatpush1.msra.mxu0 0.0
        %3926 = vmatprep.subr.mxu0 0.0
        %3927 = vmatpush1.msra.mxu0 0.0
        %3928 = vmatprep.mubr.f32.mxu0 0.0
        %3929 = vmatmul.mubr.f32.gmra.mrb[0].mxu0 %v3082
        %v3930 = vpop.f32.mrb[0].mxu0
        %v3931 = vadd.f32 %v3862, %v3930
        %v3932 = vpop.f32.mrb[0].mxu0
        %3933 = vmatprep.mubr.f32.mxu0 0.0
        %3934 = vmatmul.mubr.f32.gmra.mrb[0].mxu0 %v3085
        %v3935 = vpop.f32.mrb[0].mxu0
        %v3936 = vadd.f32 %v3862, %v3935
        %v3937 = vpop.f32.mrb[0].mxu0
        %3938 = vdwg.mxu0
        %v3939 = vadd.f32 %v3853, %v3931
        %v3940 = vadd.f32 %v3854, %v3936
        %3941 = vst.msk [vmem:[%s923] sm:$0xff] %vm3468, %v3939
        %3942 = vst.msk [vmem:[%s923 + $0x8] sm:$0xff] %vm3468, %v3940
        %s3943 = sand.u32 %s718, 1
        %s3944 = scalar_lea.sflag [#allocation3], %s3943
        %s3945 = sand.u32 %s718, 1
        %s3946 = smul.addr %s3945, 16
        %s3947 = scalar_lea.vmem [#allocation2], %s3946
        // Predicated region
        $region141: #{temporal_conv_net.1} parent=139 // pred_check
          %p3948 = pneg %p728
        $region142: #{temporal_conv_net.1} parent=139 // pred_check_branch
          %3950 = sbr.rel (%p3948) target = $region144
        $region143: #{temporal_conv_net.1} parent=139 // pred_region
          %s3952 = ssub.s32 256, 256
          %3953 = vsyncadd %s3944, %s3952
          %s3954 = smul.addr %s75, 2
          %s3955 = smul.addr %s3954, 128
          %s3956 = scalar_lea.hbm %s61, %s3955
          %s3957 = sshll.u32 %s3947, 4
          %s3958 = int_to_ptr.vmem [resolvable:$true] %s3957
          %3963 = dma.vmem_to_hbm [thread:$0]  %s3958, 256, %s3956, %s3944, 128, 128, 8
        $region144: #{temporal_conv_net.1} parent=139 // pred_fallthru
          _
      $region140: #{temporal_conv_net.1} parent=5 // pred_fallthru
        _
      %p3964 = scmp.le.s32.totalorder 2, %s70
      // Predicated region
      $region145: #{temporal_conv_net.1} parent=5 // pred_check
        %p3965 = pneg %p3964
      $region146: #{temporal_conv_net.1} parent=5 // pred_check_branch
        %3967 = sbr.rel (%p3965) target = $region148
      $region147: #{temporal_conv_net.1} parent=5 // pred_region
        %s3968 = ssub.s32 %s70, 2
        // Predicated region
        $region149: #{temporal_conv_net.1} parent=147 // pred_check
          %p3969 = pneg %p734
        $region150: #{temporal_conv_net.1} parent=147 // pred_check_branch
          %3971 = sbr.rel (%p3969) target = $region152
        $region151: #{temporal_conv_net.1} parent=147 // pred_region
          %s3972 = sand.u32 %s719, 1
          %s3973 = scalar_lea.sflag [#allocation3], %s3972
          %s3974 = sand.u32 %s719, 1
          %s3975 = smul.addr %s3974, 16
          %s3976 = scalar_lea.vmem [#allocation2], %s3975
          %3977 = dma.done %s3973, 256
        $region152: #{temporal_conv_net.1} parent=147 // pred_fallthru
          _
      $region148: #{temporal_conv_net.1} parent=5 // pred_fallthru
        _
    $region6: #{temporal_conv_net.1} parent=1 // loop_footer
      %s74 = sadd.s32 1, %s70
    $region7: #{temporal_conv_net.1} parent=1 // loop_footer_branch
      %69 = sbr.rel target = $region3
    $region8: #{temporal_conv_net.1} parent=1 // loop_exit
      _
    %3978 = vsyncpa [#allocation3], 1
    %s3979 = scalar_lea.sflag [#allocation3], 1
    %3980 = vsyncpa %s3979, 1

</llo_original>
